<compile_context>
chip_gen: v7x
topology: tpu7x:2x2x1
jax: 0.10.0
libtpu: 0.0.40
codegen_flags: <defaults>
</compile_context>

<pallas_src>
import functools

import jax
import jax.numpy as jnp
from jax import lax
from jax.experimental import pallas as pl
from jax.experimental.pallas import tpu as pltpu


# dot_general dimension numbers for 2-D operands
_NN = (((1,), (0,)), ((), ()))   # A   @ B
_NT = (((1,), (1,)), ((), ()))   # A   @ B.T  (contract last/last)
_TN = (((0,), (0,)), ((), ()))   # A.T @ B    (contract first/first)


def _choose_tm(M):
    """Adaptive row tile: full extent for small M, 256/512 tiles for large M."""
    if M >= 1024 and M % 512 == 0:
        return 512
    if M >= 512 and M % 256 == 0:
        return 256
    return M   # full-extent block is always legal


# ----------------------------------------------------------------------------
# Pallas kernels: fused matmul + bias (+ReLU) forward, and its backward GEMMs
# ----------------------------------------------------------------------------
def _fwd_kernel(a_ref, b_ref, bias_ref, o_ref, *, apply_relu):
    acc = jnp.dot(a_ref[...], b_ref[...], preferred_element_type=jnp.float32)
    acc = acc + bias_ref[...]
    if apply_relu:
        acc = jnp.maximum(acc, 0.0)
    o_ref[...] = acc


def _bwd_da_kernel(g_ref, y_ref, b_ref, da_ref, *, apply_relu):
    # da = g_eff @ B^T, computed with NT contraction (no .T materialization)
    g = g_ref[...]
    if apply_relu:
        g = jnp.where(y_ref[...] > 0.0, g, 0.0)
    da_ref[...] = lax.dot_general(
        g.astype(jnp.bfloat16), b_ref[...], _NT,
        preferred_element_type=jnp.float32)


def _bwd_db_kernel(a_ref, g_ref, y_ref, db_ref, dbias_ref, *, apply_relu):
    # db = A^T @ g_eff, computed with TN contraction; dbias fused as a reduce.
    g = g_ref[...]
    if apply_relu:
        g = jnp.where(y_ref[...] > 0.0, g, 0.0)
    db_ref[...] = lax.dot_general(
        a_ref[...], g.astype(jnp.bfloat16), _TN,
        preferred_element_type=jnp.float32)
    dbias_ref[...] = jnp.sum(g, axis=0, keepdims=True)


def _fused_matmul_fwd_impl(a, b, bias, apply_relu):
    M, K = a.shape
    N = b.shape[1]
    a16 = a.astype(jnp.bfloat16)
    b16 = b.astype(jnp.bfloat16)
    bias2d = bias.reshape(1, N).astype(jnp.float32)
    tm = _choose_tm(M)
    out = pl.pallas_call(
        functools.partial(_fwd_kernel, apply_relu=apply_relu),
        out_shape=jax.ShapeDtypeStruct((M, N), jnp.float32),
        grid=(M // tm,),
        in_specs=[
            pl.BlockSpec((tm, K), lambda i: (i, 0)),
            pl.BlockSpec((K, N), lambda i: (0, 0)),
            pl.BlockSpec((1, N), lambda i: (0, 0)),
        ],
        out_specs=pl.BlockSpec((tm, N), lambda i: (i, 0)),
        compiler_params=pltpu.CompilerParams(
            dimension_semantics=("parallel",)),
        cost_estimate=pl.CostEstimate(
            flops=2 * M * K * N, transcendentals=0,
            bytes_accessed=2 * M * K + 2 * K * N + 4 * N + 4 * M * N),
    )(a16, b16, bias2d)
    return out, a16, b16


def _fused_matmul_bwd_impl(a16, b16, y, g, apply_relu):
    M, K = a16.shape
    N = b16.shape[1]
    g = g.astype(jnp.float32)
    tm = _choose_tm(M)

    da = pl.pallas_call(
        functools.partial(_bwd_da_kernel, apply_relu=apply_relu),
        out_shape=jax.ShapeDtypeStruct((M, K), jnp.float32),
        grid=(M // tm,),
        in_specs=[
            pl.BlockSpec((tm, N), lambda i: (i, 0)),
            pl.BlockSpec((tm, N), lambda i: (i, 0)),
            pl.BlockSpec((K, N), lambda i: (0, 0)),
        ],
        out_specs=pl.BlockSpec((tm, K), lambda i: (i, 0)),
        compiler_params=pltpu.CompilerParams(
            dimension_semantics=("parallel",)),
        cost_estimate=pl.CostEstimate(
            flops=2 * M * K * N, transcendentals=0,
            bytes_accessed=8 * M * N + 2 * K * N + 4 * M * K),
    )(g, y, b16)

    db, dbias = pl.pallas_call(
        functools.partial(_bwd_db_kernel, apply_relu=apply_relu),
        out_shape=(jax.ShapeDtypeStruct((K, N), jnp.float32),
                   jax.ShapeDtypeStruct((1, N), jnp.float32)),
        grid=(1,),
        in_specs=[
            pl.BlockSpec((M, K), lambda i: (0, 0)),
            pl.BlockSpec((M, N), lambda i: (0, 0)),
            pl.BlockSpec((M, N), lambda i: (0, 0)),
        ],
        out_specs=(pl.BlockSpec((K, N), lambda i: (0, 0)),
                   pl.BlockSpec((1, N), lambda i: (0, 0))),
        compiler_params=pltpu.CompilerParams(
            dimension_semantics=("arbitrary",)),
        cost_estimate=pl.CostEstimate(
            flops=2 * M * K * N, transcendentals=0,
            bytes_accessed=2 * M * K + 8 * M * N + 4 * K * N + 4 * N),
    )(a16, g, y)
    return da, db, dbias.reshape(N)


@functools.partial(jax.custom_vjp, nondiff_argnums=(3,))
def matmul_bias_act(a, b, bias, apply_relu):
    out, _, _ = _fused_matmul_fwd_impl(a, b, bias, apply_relu)
    return out


def _matmul_bias_act_fwd(a, b, bias, apply_relu):
    out, a16, b16 = _fused_matmul_fwd_impl(a, b, bias, apply_relu)
    return out, (a16, b16, out)


def _matmul_bias_act_bwd(apply_relu, res, g):
    a16, b16, y = res
    return _fused_matmul_bwd_impl(a16, b16, y, g, apply_relu)


matmul_bias_act.defvjp(_matmul_bias_act_fwd, _matmul_bias_act_bwd)


# ----------------------------------------------------------------------------
# ConvModel forward in NHWC (im2col / pooling glue stays in plain JAX)
# ----------------------------------------------------------------------------
def _im2col_3x3(x):
    # x: (N, H, W, C), 'same' padding=1, stride=1 -> (N*H*W, 9*C)
    N, H, W, C = x.shape
    xp = jnp.pad(x, ((0, 0), (1, 1), (1, 1), (0, 0)))
    cols = [xp[:, i:i + H, j:j + W, :] for i in range(3) for j in range(3)]
    patches = jnp.stack(cols, axis=3)            # (N, H, W, 9, C)
    return patches.reshape(N * H * W, 9 * C)


def _maxpool2(x):
    N, H, W, C = x.shape
    return x.reshape(N, H // 2, 2, W // 2, 2, C).max(axis=(2, 4))


def conv_model_apply(params, x):
    # x: (N, H, W, C) NHWC
    N, H, W, C = x.shape
    h = matmul_bias_act(_im2col_3x3(x),
                        params["conv1_w"].reshape(9 * C, -1),
                        params["conv1_b"], True)            # fused bias+ReLU
    h = _maxpool2(h.reshape(N, H, W, -1))
    N2, H2, W2, C2 = h.shape
    h = matmul_bias_act(_im2col_3x3(h),
                        params["conv2_w"].reshape(9 * C2, -1),
                        params["conv2_b"], True)
    h = _maxpool2(h.reshape(N2, H2, W2, -1))
    h = h.reshape(N, -1)   # NHWC flatten (ConvModel unspecified, ordering internal)
    return matmul_bias_act(h, params["fc_w"], params["fc_b"], False)


def cross_entropy(logits, labels):
    # F.cross_entropy with default mean reduction
    logp = jax.nn.log_softmax(logits, axis=1)
    return -jnp.take_along_axis(logp, labels[:, None], axis=1).mean()


# ----------------------------------------------------------------------------
# MetaLearner.forward
# ----------------------------------------------------------------------------
def meta_learner_forward(params, sx, sy, qx, qy, update_lr, n_update_test):
    # convert NCHW inputs to NHWC once (outside the unrolled inner loop)
    sx = jnp.transpose(sx, (0, 2, 3, 1))
    qx = jnp.transpose(qx, (0, 2, 3, 1))
    n_query = qx.shape[0]
    total_match = jnp.array(0, jnp.int32)
    total_loss = jnp.array(0.0, jnp.float32)

    def loss_fn(p, x, y):
        return cross_entropy(conv_model_apply(p, x), y)

    grad_fn = jax.grad(loss_fn)

    # initial adaptation step (mirrors the code before the loop in forward())
    grads = grad_fn(params, sx, sy)
    cur = jax.tree_util.tree_map(lambda p, g: p - update_lr * g, params, grads)

    for _ in range(n_update_test + 1):
        grads = grad_fn(cur, sx, sy)
        cur = jax.tree_util.tree_map(lambda p, g: p - update_lr * g, cur, grads)

        out_q = conv_model_apply(cur, qx)
        loss_q = cross_entropy(out_q, qy)
        total_loss = total_loss + loss_q

        prediction = jnp.argmax(jax.nn.softmax(out_q, axis=1), axis=1)
        total_match = total_match + jnp.sum(prediction == qy)

    # Matches the PyTorch code exactly: denominator is n_query * n_update_test
    # even though (n_update_test + 1) query evaluations are accumulated.
    accuracy = total_match / (n_query * n_update_test)
    return total_loss, accuracy


meta_learner_forward_jit = jax.jit(
    meta_learner_forward, static_argnames=("n_update_test",))


# ----------------------------------------------------------------------------
# Deterministic parameter init (PyTorch-default-style uniform bounds)
# ----------------------------------------------------------------------------
def init_params(key, in_channels, n_class, img_sz, hidden=16):
    ks = jax.random.split(key, 6)

    def unif(k, shape, fan_in):
        bound = 1.0 / jnp.sqrt(fan_in)
        return jax.random.uniform(k, shape, jnp.float32, -bound, bound)

    feat = hidden * (img_sz // 4) * (img_sz // 4)
    return {
        # conv weights stored HWIO so .reshape(9*Cin, Cout) is a free reshape
        "conv1_w": unif(ks[0], (3, 3, in_channels, hidden), in_channels * 9),
        "conv1_b": unif(ks[1], (hidden,), in_channels * 9),
        "conv2_w": unif(ks[2], (3, 3, hidden, hidden), hidden * 9),
        "conv2_b": unif(ks[3], (hidden,), hidden * 9),
        # fc weight stored (feat, n_class) so no transpose in the forward pass
        "fc_w":    unif(ks[4], (feat, n_class), feat),
        "fc_b":    unif(ks[5], (n_class,), feat),
    }


if __name__ == "__main__":
    # small, forward-consistent shapes
    in_channels = 4
    n_class = 4          # == n_way
    img_size = 16
    shot = 1
    query = 2
    update_lr = 0.1
    n_update_test = 2

    key = jax.random.PRNGKey(0)
    kp, ks, kq = jax.random.split(key, 3)

    params = init_params(kp, in_channels, n_class, img_size)

    n_support = shot * n_class          # 4
    n_query = query * n_class           # 8
    sx = jax.random.normal(ks, (n_support, in_channels, img_size, img_size), jnp.float32)
    qx = jax.random.normal(kq, (n_query, in_channels, img_size, img_size), jnp.float32)
    # support_y = arange(n_class).repeat(shot); query_y = arange(n_class).repeat(query)
    sy = jnp.tile(jnp.arange(n_class, dtype=jnp.int32), shot)
    qy = jnp.tile(jnp.arange(n_class, dtype=jnp.int32), query)

    total_loss, accuracy = meta_learner_forward_jit(
        params, sx, sy, qx, qy, update_lr, n_update_test=n_update_test)
    jax.block_until_ready((total_loss, accuracy))
    print("KERNEL_OK")
</pallas_src>

<mosaic_0001>
module attributes {stable_mosaic.version = 11 : i64} {
  func.func @_fwd_kernel(%arg0: i32, %arg1: memref<512x36xbf16, #tpu.memory_space<vmem>>, %arg2: memref<36x16xbf16, #tpu.memory_space<vmem>>, %arg3: memref<1x16xf32, #tpu.memory_space<vmem>>, %arg4: memref<512x16xf32, #tpu.memory_space<vmem>>) attributes {dimension_semantics = [#tpu.dimension_semantics<parallel>], iteration_bounds = array<i64: 2>, scalar_prefetch = 0 : i64, scratch_operands = 0 : i64, tpu.core_type = #tpu.core_type<tc>, window_params = [{transform_indices = @transform_0, window_bounds = array<i64: 512, 36>}, {pipeline_mode = #tpu.pipeline_mode<synchronous>, transform_indices = @transform_1, window_bounds = array<i64: 36, 16>}, {pipeline_mode = #tpu.pipeline_mode<synchronous>, transform_indices = @transform_2, window_bounds = array<i64: 1, 16>}, {transform_indices = @transform_3, window_bounds = array<i64: 512, 16>}]} {
    %c0 = arith.constant 0 : index
    %c0_0 = arith.constant 0 : index
    %0 = vector.load %arg1[%c0, %c0_0] : memref<512x36xbf16, #tpu.memory_space<vmem>>, vector<512x36xbf16>
    %c0_1 = arith.constant 0 : index
    %c0_2 = arith.constant 0 : index
    %1 = vector.load %arg2[%c0_1, %c0_2] : memref<36x16xbf16, #tpu.memory_space<vmem>>, vector<36x16xbf16>
    %cst = arith.constant dense<0.000000e+00> : vector<512x16xf32>
    %2 = tpu.matmul %0, %1, %cst {dimension_numbers = #tpu.dot_dimension_numbers<[1], [0], [0], [1], [0, 0, 1, 1], [], []>} : vector<512x36xbf16>, vector<36x16xbf16>, vector<512x16xf32> -> vector<512x16xf32>
    %c0_3 = arith.constant 0 : index
    %c0_4 = arith.constant 0 : index
    %3 = vector.load %arg3[%c0_3, %c0_4] : memref<1x16xf32, #tpu.memory_space<vmem>>, vector<1x16xf32>
    %4 = vector.broadcast %3 : vector<1x16xf32> to vector<512x16xf32>
    %5 = arith.addf %2, %4 : vector<512x16xf32>
    %cst_5 = arith.constant 0.000000e+00 : f32
    %6 = vector.broadcast %cst_5 : f32 to vector<512x16xf32>
    %7 = arith.maximumf %5, %6 : vector<512x16xf32>
    %c0_6 = arith.constant 0 : index
    %c0_7 = arith.constant 0 : index
    %8 = vector.load %arg4[%c0_6, %c0_7] : memref<512x16xf32, #tpu.memory_space<vmem>>, vector<512x16xf32>
    tpu.vector_store %arg4[%c0_6, %c0_7], %7 {strides = array<i32>} : memref<512x16xf32, #tpu.memory_space<vmem>>, vector<512x16xf32>,
    return
  }
  func.func @transform_0(%arg0: i32) -> (i32, i32) {
    %c0_i32 = arith.constant 0 : i32
    %c0_i32_0 = arith.constant 0 : i32
    return %arg0, %c0_i32 : i32, i32
  }
  func.func @transform_1(%arg0: i32) -> (i32, i32) {
    %c0_i32 = arith.constant 0 : i32
    %c0_i32_0 = arith.constant 0 : i32
    %c0_i32_1 = arith.constant 0 : i32
    return %c0_i32, %c0_i32_0 : i32, i32
  }
  func.func @transform_2(%arg0: i32) -> (i32, i32) {
    %c0_i32 = arith.constant 0 : i32
    %c0_i32_0 = arith.constant 0 : i32
    %c0_i32_1 = arith.constant 0 : i32
    return %c0_i32, %c0_i32_0 : i32, i32
  }
  func.func @transform_3(%arg0: i32) -> (i32, i32) {
    %c0_i32 = arith.constant 0 : i32
    %c0_i32_0 = arith.constant 0 : i32
    return %arg0, %c0_i32 : i32, i32
  }
}

module attributes {stable_mosaic.version = 11 : i64} {
  func.func @_fwd_kernel(%arg0: i32, %arg1: memref<256x144xbf16, #tpu.memory_space<vmem>>, %arg2: memref<144x16xbf16, #tpu.memory_space<vmem>>, %arg3: memref<1x16xf32, #tpu.memory_space<vmem>>, %arg4: memref<256x16xf32, #tpu.memory_space<vmem>>) attributes {dimension_semantics = [#tpu.dimension_semantics<parallel>], iteration_bounds = array<i64: 1>, scalar_prefetch = 0 : i64, scratch_operands = 0 : i64, tpu.core_type = #tpu.core_type<tc>, window_params = [{transform_indices = @transform_0, window_bounds = array<i64: 256, 144>}, {pipeline_mode = #tpu.pipeline_mode<synchronous>, transform_indices = @transform_1, window_bounds = array<i64: 144, 16>}, {pipeline_mode = #tpu.pipeline_mode<synchronous>, transform_indices = @transform_2, window_bounds = array<i64: 1, 16>}, {transform_indices = @transform_3, window_bounds = array<i64: 256, 16>}]} {
    %c0 = arith.constant 0 : index
    %c0_0 = arith.constant 0 : index
    %0 = vector.load %arg1[%c0, %c0_0] : memref<256x144xbf16, #tpu.memory_space<vmem>>, vector<256x144xbf16>
    %c0_1 = arith.constant 0 : index
    %c0_2 = arith.constant 0 : index
    %1 = vector.load %arg2[%c0_1, %c0_2] : memref<144x16xbf16, #tpu.memory_space<vmem>>, vector<144x16xbf16>
    %cst = arith.constant dense<0.000000e+00> : vector<256x16xf32>
    %2 = tpu.matmul %0, %1, %cst {dimension_numbers = #tpu.dot_dimension_numbers<[1], [0], [0], [1], [0, 0, 1, 1], [], []>} : vector<256x144xbf16>, vector<144x16xbf16>, vector<256x16xf32> -> vector<256x16xf32>
    %c0_3 = arith.constant 0 : index
    %c0_4 = arith.constant 0 : index
    %3 = vector.load %arg3[%c0_3, %c0_4] : memref<1x16xf32, #tpu.memory_space<vmem>>, vector<1x16xf32>
    %4 = vector.broadcast %3 : vector<1x16xf32> to vector<256x16xf32>
    %5 = arith.addf %2, %4 : vector<256x16xf32>
    %cst_5 = arith.constant 0.000000e+00 : f32
    %6 = vector.broadcast %cst_5 : f32 to vector<256x16xf32>
    %7 = arith.maximumf %5, %6 : vector<256x16xf32>
    %c0_6 = arith.constant 0 : index
    %c0_7 = arith.constant 0 : index
    %8 = vector.load %arg4[%c0_6, %c0_7] : memref<256x16xf32, #tpu.memory_space<vmem>>, vector<256x16xf32>
    tpu.vector_store %arg4[%c0_6, %c0_7], %7 {strides = array<i32>} : memref<256x16xf32, #tpu.memory_space<vmem>>, vector<256x16xf32>,
    return
  }
  func.func @transform_0(%arg0: i32) -> (i32, i32) {
    %c0_i32 = arith.constant 0 : i32
    %c0_i32_0 = arith.constant 0 : i32
    return %arg0, %c0_i32 : i32, i32
  }
  func.func @transform_1(%arg0: i32) -> (i32, i32) {
    %c0_i32 = arith.constant 0 : i32
    %c0_i32_0 = arith.constant 0 : i32
    %c0_i32_1 = arith.constant 0 : i32
    return %c0_i32, %c0_i32_0 : i32, i32
  }
  func.func @transform_2(%arg0: i32) -> (i32, i32) {
    %c0_i32 = arith.constant 0 : i32
    %c0_i32_0 = arith.constant 0 : i32
    %c0_i32_1 = arith.constant 0 : i32
    return %c0_i32, %c0_i32_0 : i32, i32
  }
  func.func @transform_3(%arg0: i32) -> (i32, i32) {
    %c0_i32 = arith.constant 0 : i32
    %c0_i32_0 = arith.constant 0 : i32
    return %arg0, %c0_i32 : i32, i32
  }
}

module attributes {stable_mosaic.version = 11 : i64} {
  func.func @_fwd_kernel(%arg0: i32, %arg1: memref<4x256xbf16, #tpu.memory_space<vmem>>, %arg2: memref<256x4xbf16, #tpu.memory_space<vmem>>, %arg3: memref<1x4xf32, #tpu.memory_space<vmem>>, %arg4: memref<4x4xf32, #tpu.memory_space<vmem>>) attributes {dimension_semantics = [#tpu.dimension_semantics<parallel>], iteration_bounds = array<i64: 1>, scalar_prefetch = 0 : i64, scratch_operands = 0 : i64, tpu.core_type = #tpu.core_type<tc>, window_params = [{transform_indices = @transform_0, window_bounds = array<i64: 4, 256>}, {pipeline_mode = #tpu.pipeline_mode<synchronous>, transform_indices = @transform_1, window_bounds = array<i64: 256, 4>}, {pipeline_mode = #tpu.pipeline_mode<synchronous>, transform_indices = @transform_2, window_bounds = array<i64: 1, 4>}, {transform_indices = @transform_3, window_bounds = array<i64: 4, 4>}]} {
    %c0 = arith.constant 0 : index
    %c0_0 = arith.constant 0 : index
    %0 = vector.load %arg1[%c0, %c0_0] : memref<4x256xbf16, #tpu.memory_space<vmem>>, vector<4x256xbf16>
    %c0_1 = arith.constant 0 : index
    %c0_2 = arith.constant 0 : index
    %1 = vector.load %arg2[%c0_1, %c0_2] : memref<256x4xbf16, #tpu.memory_space<vmem>>, vector<256x4xbf16>
    %cst = arith.constant dense<0.000000e+00> : vector<4x4xf32>
    %2 = tpu.matmul %0, %1, %cst {dimension_numbers = #tpu.dot_dimension_numbers<[1], [0], [0], [1], [0, 0, 1, 1], [], []>} : vector<4x256xbf16>, vector<256x4xbf16>, vector<4x4xf32> -> vector<4x4xf32>
    %c0_3 = arith.constant 0 : index
    %c0_4 = arith.constant 0 : index
    %3 = vector.load %arg3[%c0_3, %c0_4] : memref<1x4xf32, #tpu.memory_space<vmem>>, vector<1x4xf32>
    %4 = vector.broadcast %3 : vector<1x4xf32> to vector<4x4xf32>
    %5 = arith.addf %2, %4 : vector<4x4xf32>
    %c0_5 = arith.constant 0 : index
    %c0_6 = arith.constant 0 : index
    %6 = vector.load %arg4[%c0_5, %c0_6] : memref<4x4xf32, #tpu.memory_space<vmem>>, vector<4x4xf32>
    tpu.vector_store %arg4[%c0_5, %c0_6], %5 {strides = array<i32>} : memref<4x4xf32, #tpu.memory_space<vmem>>, vector<4x4xf32>,
    return
  }
  func.func @transform_0(%arg0: i32) -> (i32, i32) {
    %c0_i32 = arith.constant 0 : i32
    %c0_i32_0 = arith.constant 0 : i32
    return %arg0, %c0_i32 : i32, i32
  }
  func.func @transform_1(%arg0: i32) -> (i32, i32) {
    %c0_i32 = arith.constant 0 : i32
    %c0_i32_0 = arith.constant 0 : i32
    %c0_i32_1 = arith.constant 0 : i32
    return %c0_i32, %c0_i32_0 : i32, i32
  }
  func.func @transform_2(%arg0: i32) -> (i32, i32) {
    %c0_i32 = arith.constant 0 : i32
    %c0_i32_0 = arith.constant 0 : i32
    %c0_i32_1 = arith.constant 0 : i32
    return %c0_i32, %c0_i32_0 : i32, i32
  }
  func.func @transform_3(%arg0: i32) -> (i32, i32) {
    %c0_i32 = arith.constant 0 : i32
    %c0_i32_0 = arith.constant 0 : i32
    return %arg0, %c0_i32 : i32, i32
  }
}

module attributes {stable_mosaic.version = 11 : i64} {
  func.func @_bwd_da_kernel(%arg0: i32, %arg1: memref<4x4xf32, #tpu.memory_space<vmem>>, %arg2: memref<4x4xf32, #tpu.memory_space<vmem>>, %arg3: memref<256x4xbf16, #tpu.memory_space<vmem>>, %arg4: memref<4x256xf32, #tpu.memory_space<vmem>>) attributes {dimension_semantics = [#tpu.dimension_semantics<parallel>], iteration_bounds = array<i64: 1>, scalar_prefetch = 0 : i64, scratch_operands = 0 : i64, tpu.core_type = #tpu.core_type<tc>, window_params = [{transform_indices = @transform_0, window_bounds = array<i64: 4, 4>}, {transform_indices = @transform_1, window_bounds = array<i64: 4, 4>}, {pipeline_mode = #tpu.pipeline_mode<synchronous>, transform_indices = @transform_2, window_bounds = array<i64: 256, 4>}, {transform_indices = @transform_3, window_bounds = array<i64: 4, 256>}]} {
    %c0 = arith.constant 0 : index
    %c0_0 = arith.constant 0 : index
    %0 = vector.load %arg1[%c0, %c0_0] : memref<4x4xf32, #tpu.memory_space<vmem>>, vector<4x4xf32>
    %1 = arith.truncf %0 : vector<4x4xf32> to vector<4x4xbf16>
    %c0_1 = arith.constant 0 : index
    %c0_2 = arith.constant 0 : index
    %2 = vector.load %arg3[%c0_1, %c0_2] : memref<256x4xbf16, #tpu.memory_space<vmem>>, vector<256x4xbf16>
    %cst = arith.constant dense<0.000000e+00> : vector<4x256xf32>
    %3 = tpu.matmul %1, %2, %cst {dimension_numbers = #tpu.dot_dimension_numbers<[1], [1], [0], [0], [0, 0, 1, 0], [], []>} : vector<4x4xbf16>, vector<256x4xbf16>, vector<4x256xf32> -> vector<4x256xf32>
    %c0_3 = arith.constant 0 : index
    %c0_4 = arith.constant 0 : index
    %4 = vector.load %arg4[%c0_3, %c0_4] : memref<4x256xf32, #tpu.memory_space<vmem>>, vector<4x256xf32>
    tpu.vector_store %arg4[%c0_3, %c0_4], %3 {strides = array<i32>} : memref<4x256xf32, #tpu.memory_space<vmem>>, vector<4x256xf32>,
    return
  }
  func.func @transform_0(%arg0: i32) -> (i32, i32) {
    %c0_i32 = arith.constant 0 : i32
    %c0_i32_0 = arith.constant 0 : i32
    return %arg0, %c0_i32 : i32, i32
  }
  func.func @transform_1(%arg0: i32) -> (i32, i32) {
    %c0_i32 = arith.constant 0 : i32
    %c0_i32_0 = arith.constant 0 : i32
    return %arg0, %c0_i32 : i32, i32
  }
  func.func @transform_2(%arg0: i32) -> (i32, i32) {
    %c0_i32 = arith.constant 0 : i32
    %c0_i32_0 = arith.constant 0 : i32
    %c0_i32_1 = arith.constant 0 : i32
    return %c0_i32, %c0_i32_0 : i32, i32
  }
  func.func @transform_3(%arg0: i32) -> (i32, i32) {
    %c0_i32 = arith.constant 0 : i32
    %c0_i32_0 = arith.constant 0 : i32
    return %arg0, %c0_i32 : i32, i32
  }
}

module attributes {stable_mosaic.version = 11 : i64} {
  func.func @_bwd_db_kernel(%arg0: i32, %arg1: memref<256x144xbf16, #tpu.memory_space<vmem>>, %arg2: memref<256x16xf32, #tpu.memory_space<vmem>>, %arg3: memref<256x16xf32, #tpu.memory_space<vmem>>, %arg4: memref<144x16xf32, #tpu.memory_space<vmem>>, %arg5: memref<1x16xf32, #tpu.memory_space<vmem>>) attributes {dimension_semantics = [#tpu.dimension_semantics<arbitrary>], iteration_bounds = array<i64: 1>, scalar_prefetch = 0 : i64, scratch_operands = 0 : i64, tpu.core_type = #tpu.core_type<tc>, window_params = [{pipeline_mode = #tpu.pipeline_mode<synchronous>, transform_indices = @transform_0, window_bounds = array<i64: 256, 144>}, {pipeline_mode = #tpu.pipeline_mode<synchronous>, transform_indices = @transform_1, window_bounds = array<i64: 256, 16>}, {pipeline_mode = #tpu.pipeline_mode<synchronous>, transform_indices = @transform_2, window_bounds = array<i64: 256, 16>}, {pipeline_mode = #tpu.pipeline_mode<synchronous>, transform_indices = @transform_3, window_bounds = array<i64: 144, 16>}, {pipeline_mode = #tpu.pipeline_mode<synchronous>, transform_indices = @transform_4, window_bounds = array<i64: 1, 16>}]} {
    %c0 = arith.constant 0 : index
    %c0_0 = arith.constant 0 : index
    %0 = vector.load %arg2[%c0, %c0_0] : memref<256x16xf32, #tpu.memory_space<vmem>>, vector<256x16xf32>
    %c0_1 = arith.constant 0 : index
    %c0_2 = arith.constant 0 : index
    %1 = vector.load %arg3[%c0_1, %c0_2] : memref<256x16xf32, #tpu.memory_space<vmem>>, vector<256x16xf32>
    %cst = arith.constant 0.000000e+00 : f32
    %2 = vector.broadcast %cst : f32 to vector<256x16xf32>
    %3 = arith.cmpf ogt, %1, %2 : vector<256x16xf32>
    %cst_3 = arith.constant 0.000000e+00 : f32
    %4 = vector.broadcast %cst_3 : f32 to vector<256x16xf32>
    %5 = arith.select %3, %0, %4 : vector<256x16xi1>, vector<256x16xf32>
    %c0_4 = arith.constant 0 : index
    %c0_5 = arith.constant 0 : index
    %6 = vector.load %arg1[%c0_4, %c0_5] : memref<256x144xbf16, #tpu.memory_space<vmem>>, vector<256x144xbf16>
    %7 = arith.truncf %5 : vector<256x16xf32> to vector<256x16xbf16>
    %cst_6 = arith.constant dense<0.000000e+00> : vector<144x16xf32>
    %8 = tpu.matmul %6, %7, %cst_6 {dimension_numbers = #tpu.dot_dimension_numbers<[0], [0], [1], [1], [0, 1, 1, 1], [], []>} : vector<256x144xbf16>, vector<256x16xbf16>, vector<144x16xf32> -> vector<144x16xf32>
    %c0_7 = arith.constant 0 : index
    %c0_8 = arith.constant 0 : index
    %9 = vector.load %arg4[%c0_7, %c0_8] : memref<144x16xf32, #tpu.memory_space<vmem>>, vector<144x16xf32>
    tpu.vector_store %arg4[%c0_7, %c0_8], %8 {strides = array<i32>} : memref<144x16xf32, #tpu.memory_space<vmem>>, vector<144x16xf32>,
    %cst_9 = arith.constant dense<0.000000e+00> : vector<16xf32>
    %10 = vector.multi_reduction <add>, %5, %cst_9 [0] : vector<256x16xf32> to vector<16xf32>
    %11 = vector.shape_cast %10 : vector<16xf32> to vector<1x16xf32>
    %c0_10 = arith.constant 0 : index
    %c0_11 = arith.constant 0 : index
    %12 = vector.load %arg5[%c0_10, %c0_11] : memref<1x16xf32, #tpu.memory_space<vmem>>, vector<1x16xf32>
    tpu.vector_store %arg5[%c0_10, %c0_11], %11 {strides = array<i32>} : memref<1x16xf32, #tpu.memory_space<vmem>>, vector<1x16xf32>,
    return
  }
  func.func @transform_0(%arg0: i32) -> (i32, i32) {
    %c0_i32 = arith.constant 0 : i32
    %c0_i32_0 = arith.constant 0 : i32
    %c0_i32_1 = arith.constant 0 : i32
    return %c0_i32, %c0_i32_0 : i32, i32
  }
  func.func @transform_1(%arg0: i32) -> (i32, i32) {
    %c0_i32 = arith.constant 0 : i32
    %c0_i32_0 = arith.constant 0 : i32
    %c0_i32_1 = arith.constant 0 : i32
    return %c0_i32, %c0_i32_0 : i32, i32
  }
  func.func @transform_2(%arg0: i32) -> (i32, i32) {
    %c0_i32 = arith.constant 0 : i32
    %c0_i32_0 = arith.constant 0 : i32
    %c0_i32_1 = arith.constant 0 : i32
    return %c0_i32, %c0_i32_0 : i32, i32
  }
  func.func @transform_3(%arg0: i32) -> (i32, i32) {
    %c0_i32 = arith.constant 0 : i32
    %c0_i32_0 = arith.constant 0 : i32
    %c0_i32_1 = arith.constant 0 : i32
    return %c0_i32, %c0_i32_0 : i32, i32
  }
  func.func @transform_4(%arg0: i32) -> (i32, i32) {
    %c0_i32 = arith.constant 0 : i32
    %c0_i32_0 = arith.constant 0 : i32
    %c0_i32_1 = arith.constant 0 : i32
    return %c0_i32, %c0_i32_0 : i32, i32
  }
}

module attributes {stable_mosaic.version = 11 : i64} {
  func.func @_bwd_da_kernel(%arg0: i32, %arg1: memref<256x16xf32, #tpu.memory_space<vmem>>, %arg2: memref<256x16xf32, #tpu.memory_space<vmem>>, %arg3: memref<144x16xbf16, #tpu.memory_space<vmem>>, %arg4: memref<256x144xf32, #tpu.memory_space<vmem>>) attributes {dimension_semantics = [#tpu.dimension_semantics<parallel>], iteration_bounds = array<i64: 1>, scalar_prefetch = 0 : i64, scratch_operands = 0 : i64, tpu.core_type = #tpu.core_type<tc>, window_params = [{transform_indices = @transform_0, window_bounds = array<i64: 256, 16>}, {transform_indices = @transform_1, window_bounds = array<i64: 256, 16>}, {pipeline_mode = #tpu.pipeline_mode<synchronous>, transform_indices = @transform_2, window_bounds = array<i64: 144, 16>}, {transform_indices = @transform_3, window_bounds = array<i64: 256, 144>}]} {
    %c0 = arith.constant 0 : index
    %c0_0 = arith.constant 0 : index
    %0 = vector.load %arg1[%c0, %c0_0] : memref<256x16xf32, #tpu.memory_space<vmem>>, vector<256x16xf32>
    %c0_1 = arith.constant 0 : index
    %c0_2 = arith.constant 0 : index
    %1 = vector.load %arg2[%c0_1, %c0_2] : memref<256x16xf32, #tpu.memory_space<vmem>>, vector<256x16xf32>
    %cst = arith.constant 0.000000e+00 : f32
    %2 = vector.broadcast %cst : f32 to vector<256x16xf32>
    %3 = arith.cmpf ogt, %1, %2 : vector<256x16xf32>
    %cst_3 = arith.constant 0.000000e+00 : f32
    %4 = vector.broadcast %cst_3 : f32 to vector<256x16xf32>
    %5 = arith.select %3, %0, %4 : vector<256x16xi1>, vector<256x16xf32>
    %6 = arith.truncf %5 : vector<256x16xf32> to vector<256x16xbf16>
    %c0_4 = arith.constant 0 : index
    %c0_5 = arith.constant 0 : index
    %7 = vector.load %arg3[%c0_4, %c0_5] : memref<144x16xbf16, #tpu.memory_space<vmem>>, vector<144x16xbf16>
    %cst_6 = arith.constant dense<0.000000e+00> : vector<256x144xf32>
    %8 = tpu.matmul %6, %7, %cst_6 {dimension_numbers = #tpu.dot_dimension_numbers<[1], [1], [0], [0], [0, 0, 1, 0], [], []>} : vector<256x16xbf16>, vector<144x16xbf16>, vector<256x144xf32> -> vector<256x144xf32>
    %c0_7 = arith.constant 0 : index
    %c0_8 = arith.constant 0 : index
    %9 = vector.load %arg4[%c0_7, %c0_8] : memref<256x144xf32, #tpu.memory_space<vmem>>, vector<256x144xf32>
    tpu.vector_store %arg4[%c0_7, %c0_8], %8 {strides = array<i32>} : memref<256x144xf32, #tpu.memory_space<vmem>>, vector<256x144xf32>,
    return
  }
  func.func @transform_0(%arg0: i32) -> (i32, i32) {
    %c0_i32 = arith.constant 0 : i32
    %c0_i32_0 = arith.constant 0 : i32
    return %arg0, %c0_i32 : i32, i32
  }
  func.func @transform_1(%arg0: i32) -> (i32, i32) {
    %c0_i32 = arith.constant 0 : i32
    %c0_i32_0 = arith.constant 0 : i32
    return %arg0, %c0_i32 : i32, i32
  }
  func.func @transform_2(%arg0: i32) -> (i32, i32) {
    %c0_i32 = arith.constant 0 : i32
    %c0_i32_0 = arith.constant 0 : i32
    %c0_i32_1 = arith.constant 0 : i32
    return %c0_i32, %c0_i32_0 : i32, i32
  }
  func.func @transform_3(%arg0: i32) -> (i32, i32) {
    %c0_i32 = arith.constant 0 : i32
    %c0_i32_0 = arith.constant 0 : i32
    return %arg0, %c0_i32 : i32, i32
  }
}

module attributes {stable_mosaic.version = 11 : i64} {
  func.func @_bwd_db_kernel(%arg0: i32, %arg1: memref<1024x36xbf16, #tpu.memory_space<vmem>>, %arg2: memref<1024x16xf32, #tpu.memory_space<vmem>>, %arg3: memref<1024x16xf32, #tpu.memory_space<vmem>>, %arg4: memref<36x16xf32, #tpu.memory_space<vmem>>, %arg5: memref<1x16xf32, #tpu.memory_space<vmem>>) attributes {dimension_semantics = [#tpu.dimension_semantics<arbitrary>], iteration_bounds = array<i64: 1>, scalar_prefetch = 0 : i64, scratch_operands = 0 : i64, tpu.core_type = #tpu.core_type<tc>, window_params = [{pipeline_mode = #tpu.pipeline_mode<synchronous>, transform_indices = @transform_0, window_bounds = array<i64: 1024, 36>}, {pipeline_mode = #tpu.pipeline_mode<synchronous>, transform_indices = @transform_1, window_bounds = array<i64: 1024, 16>}, {pipeline_mode = #tpu.pipeline_mode<synchronous>, transform_indices = @transform_2, window_bounds = array<i64: 1024, 16>}, {pipeline_mode = #tpu.pipeline_mode<synchronous>, transform_indices = @transform_3, window_bounds = array<i64: 36, 16>}, {pipeline_mode = #tpu.pipeline_mode<synchronous>, transform_indices = @transform_4, window_bounds = array<i64: 1, 16>}]} {
    %c0 = arith.constant 0 : index
    %c0_0 = arith.constant 0 : index
    %0 = vector.load %arg2[%c0, %c0_0] : memref<1024x16xf32, #tpu.memory_space<vmem>>, vector<1024x16xf32>
    %c0_1 = arith.constant 0 : index
    %c0_2 = arith.constant 0 : index
    %1 = vector.load %arg3[%c0_1, %c0_2] : memref<1024x16xf32, #tpu.memory_space<vmem>>, vector<1024x16xf32>
    %cst = arith.constant 0.000000e+00 : f32
    %2 = vector.broadcast %cst : f32 to vector<1024x16xf32>
    %3 = arith.cmpf ogt, %1, %2 : vector<1024x16xf32>
    %cst_3 = arith.constant 0.000000e+00 : f32
    %4 = vector.broadcast %cst_3 : f32 to vector<1024x16xf32>
    %5 = arith.select %3, %0, %4 : vector<1024x16xi1>, vector<1024x16xf32>
    %c0_4 = arith.constant 0 : index
    %c0_5 = arith.constant 0 : index
    %6 = vector.load %arg1[%c0_4, %c0_5] : memref<1024x36xbf16, #tpu.memory_space<vmem>>, vector<1024x36xbf16>
    %7 = arith.truncf %5 : vector<1024x16xf32> to vector<1024x16xbf16>
    %cst_6 = arith.constant dense<0.000000e+00> : vector<36x16xf32>
    %8 = tpu.matmul %6, %7, %cst_6 {dimension_numbers = #tpu.dot_dimension_numbers<[0], [0], [1], [1], [0, 1, 1, 1], [], []>} : vector<1024x36xbf16>, vector<1024x16xbf16>, vector<36x16xf32> -> vector<36x16xf32>
    %c0_7 = arith.constant 0 : index
    %c0_8 = arith.constant 0 : index
    %9 = vector.load %arg4[%c0_7, %c0_8] : memref<36x16xf32, #tpu.memory_space<vmem>>, vector<36x16xf32>
    tpu.vector_store %arg4[%c0_7, %c0_8], %8 {strides = array<i32>} : memref<36x16xf32, #tpu.memory_space<vmem>>, vector<36x16xf32>,
    %cst_9 = arith.constant dense<0.000000e+00> : vector<16xf32>
    %10 = vector.multi_reduction <add>, %5, %cst_9 [0] : vector<1024x16xf32> to vector<16xf32>
    %11 = vector.shape_cast %10 : vector<16xf32> to vector<1x16xf32>
    %c0_10 = arith.constant 0 : index
    %c0_11 = arith.constant 0 : index
    %12 = vector.load %arg5[%c0_10, %c0_11] : memref<1x16xf32, #tpu.memory_space<vmem>>, vector<1x16xf32>
    tpu.vector_store %arg5[%c0_10, %c0_11], %11 {strides = array<i32>} : memref<1x16xf32, #tpu.memory_space<vmem>>, vector<1x16xf32>,
    return
  }
  func.func @transform_0(%arg0: i32) -> (i32, i32) {
    %c0_i32 = arith.constant 0 : i32
    %c0_i32_0 = arith.constant 0 : i32
    %c0_i32_1 = arith.constant 0 : i32
    return %c0_i32, %c0_i32_0 : i32, i32
  }
  func.func @transform_1(%arg0: i32) -> (i32, i32) {
    %c0_i32 = arith.constant 0 : i32
    %c0_i32_0 = arith.constant 0 : i32
    %c0_i32_1 = arith.constant 0 : i32
    return %c0_i32, %c0_i32_0 : i32, i32
  }
  func.func @transform_2(%arg0: i32) -> (i32, i32) {
    %c0_i32 = arith.constant 0 : i32
    %c0_i32_0 = arith.constant 0 : i32
    %c0_i32_1 = arith.constant 0 : i32
    return %c0_i32, %c0_i32_0 : i32, i32
  }
  func.func @transform_3(%arg0: i32) -> (i32, i32) {
    %c0_i32 = arith.constant 0 : i32
    %c0_i32_0 = arith.constant 0 : i32
    %c0_i32_1 = arith.constant 0 : i32
    return %c0_i32, %c0_i32_0 : i32, i32
  }
  func.func @transform_4(%arg0: i32) -> (i32, i32) {
    %c0_i32 = arith.constant 0 : i32
    %c0_i32_0 = arith.constant 0 : i32
    %c0_i32_1 = arith.constant 0 : i32
    return %c0_i32, %c0_i32_0 : i32, i32
  }
}

module attributes {stable_mosaic.version = 11 : i64} {
  func.func @_bwd_db_kernel(%arg0: i32, %arg1: memref<4x256xbf16, #tpu.memory_space<vmem>>, %arg2: memref<4x4xf32, #tpu.memory_space<vmem>>, %arg3: memref<4x4xf32, #tpu.memory_space<vmem>>, %arg4: memref<256x4xf32, #tpu.memory_space<vmem>>, %arg5: memref<1x4xf32, #tpu.memory_space<vmem>>) attributes {dimension_semantics = [#tpu.dimension_semantics<arbitrary>], iteration_bounds = array<i64: 1>, scalar_prefetch = 0 : i64, scratch_operands = 0 : i64, tpu.core_type = #tpu.core_type<tc>, window_params = [{pipeline_mode = #tpu.pipeline_mode<synchronous>, transform_indices = @transform_0, window_bounds = array<i64: 4, 256>}, {pipeline_mode = #tpu.pipeline_mode<synchronous>, transform_indices = @transform_1, window_bounds = array<i64: 4, 4>}, {pipeline_mode = #tpu.pipeline_mode<synchronous>, transform_indices = @transform_2, window_bounds = array<i64: 4, 4>}, {pipeline_mode = #tpu.pipeline_mode<synchronous>, transform_indices = @transform_3, window_bounds = array<i64: 256, 4>}, {pipeline_mode = #tpu.pipeline_mode<synchronous>, transform_indices = @transform_4, window_bounds = array<i64: 1, 4>}]} {
    %c0 = arith.constant 0 : index
    %c0_0 = arith.constant 0 : index
    %0 = vector.load %arg2[%c0, %c0_0] : memref<4x4xf32, #tpu.memory_space<vmem>>, vector<4x4xf32>
    %c0_1 = arith.constant 0 : index
    %c0_2 = arith.constant 0 : index
    %1 = vector.load %arg1[%c0_1, %c0_2] : memref<4x256xbf16, #tpu.memory_space<vmem>>, vector<4x256xbf16>
    %2 = arith.truncf %0 : vector<4x4xf32> to vector<4x4xbf16>
    %cst = arith.constant dense<0.000000e+00> : vector<256x4xf32>
    %3 = tpu.matmul %1, %2, %cst {dimension_numbers = #tpu.dot_dimension_numbers<[0], [0], [1], [1], [0, 1, 1, 1], [], []>} : vector<4x256xbf16>, vector<4x4xbf16>, vector<256x4xf32> -> vector<256x4xf32>
    %c0_3 = arith.constant 0 : index
    %c0_4 = arith.constant 0 : index
    %4 = vector.load %arg4[%c0_3, %c0_4] : memref<256x4xf32, #tpu.memory_space<vmem>>, vector<256x4xf32>
    tpu.vector_store %arg4[%c0_3, %c0_4], %3 {strides = array<i32>} : memref<256x4xf32, #tpu.memory_space<vmem>>, vector<256x4xf32>,
    %cst_5 = arith.constant dense<0.000000e+00> : vector<4xf32>
    %5 = vector.multi_reduction <add>, %0, %cst_5 [0] : vector<4x4xf32> to vector<4xf32>
    %6 = vector.shape_cast %5 : vector<4xf32> to vector<1x4xf32>
    %c0_6 = arith.constant 0 : index
    %c0_7 = arith.constant 0 : index
    %7 = vector.load %arg5[%c0_6, %c0_7] : memref<1x4xf32, #tpu.memory_space<vmem>>, vector<1x4xf32>
    tpu.vector_store %arg5[%c0_6, %c0_7], %6 {strides = array<i32>} : memref<1x4xf32, #tpu.memory_space<vmem>>, vector<1x4xf32>,
    return
  }
  func.func @transform_0(%arg0: i32) -> (i32, i32) {
    %c0_i32 = arith.constant 0 : i32
    %c0_i32_0 = arith.constant 0 : i32
    %c0_i32_1 = arith.constant 0 : i32
    return %c0_i32, %c0_i32_0 : i32, i32
  }
  func.func @transform_1(%arg0: i32) -> (i32, i32) {
    %c0_i32 = arith.constant 0 : i32
    %c0_i32_0 = arith.constant 0 : i32
    %c0_i32_1 = arith.constant 0 : i32
    return %c0_i32, %c0_i32_0 : i32, i32
  }
  func.func @transform_2(%arg0: i32) -> (i32, i32) {
    %c0_i32 = arith.constant 0 : i32
    %c0_i32_0 = arith.constant 0 : i32
    %c0_i32_1 = arith.constant 0 : i32
    return %c0_i32, %c0_i32_0 : i32, i32
  }
  func.func @transform_3(%arg0: i32) -> (i32, i32) {
    %c0_i32 = arith.constant 0 : i32
    %c0_i32_0 = arith.constant 0 : i32
    %c0_i32_1 = arith.constant 0 : i32
    return %c0_i32, %c0_i32_0 : i32, i32
  }
  func.func @transform_4(%arg0: i32) -> (i32, i32) {
    %c0_i32 = arith.constant 0 : i32
    %c0_i32_0 = arith.constant 0 : i32
    %c0_i32_1 = arith.constant 0 : i32
    return %c0_i32, %c0_i32_0 : i32, i32
  }
}

module attributes {stable_mosaic.version = 11 : i64} {
  func.func @_bwd_da_kernel(%arg0: i32, %arg1: memref<4x4xf32, #tpu.memory_space<vmem>>, %arg2: memref<4x4xf32, #tpu.memory_space<vmem>>, %arg3: memref<256x4xbf16, #tpu.memory_space<vmem>>, %arg4: memref<4x256xf32, #tpu.memory_space<vmem>>) attributes {dimension_semantics = [#tpu.dimension_semantics<parallel>], iteration_bounds = array<i64: 1>, scalar_prefetch = 0 : i64, scratch_operands = 0 : i64, tpu.core_type = #tpu.core_type<tc>, window_params = [{transform_indices = @transform_0, window_bounds = array<i64: 4, 4>}, {transform_indices = @transform_1, window_bounds = array<i64: 4, 4>}, {pipeline_mode = #tpu.pipeline_mode<synchronous>, transform_indices = @transform_2, window_bounds = array<i64: 256, 4>}, {transform_indices = @transform_3, window_bounds = array<i64: 4, 256>}]} {
    %c0 = arith.constant 0 : index
    %c0_0 = arith.constant 0 : index
    %0 = vector.load %arg1[%c0, %c0_0] : memref<4x4xf32, #tpu.memory_space<vmem>>, vector<4x4xf32>
    %1 = arith.truncf %0 : vector<4x4xf32> to vector<4x4xbf16>
    %c0_1 = arith.constant 0 : index
    %c0_2 = arith.constant 0 : index
    %2 = vector.load %arg3[%c0_1, %c0_2] : memref<256x4xbf16, #tpu.memory_space<vmem>>, vector<256x4xbf16>
    %cst = arith.constant dense<0.000000e+00> : vector<4x256xf32>
    %3 = tpu.matmul %1, %2, %cst {dimension_numbers = #tpu.dot_dimension_numbers<[1], [1], [0], [0], [0, 0, 1, 0], [], []>} : vector<4x4xbf16>, vector<256x4xbf16>, vector<4x256xf32> -> vector<4x256xf32>
    %c0_3 = arith.constant 0 : index
    %c0_4 = arith.constant 0 : index
    %4 = vector.load %arg4[%c0_3, %c0_4] : memref<4x256xf32, #tpu.memory_space<vmem>>, vector<4x256xf32>
    tpu.vector_store %arg4[%c0_3, %c0_4], %3 {strides = array<i32>} : memref<4x256xf32, #tpu.memory_space<vmem>>, vector<4x256xf32>,
    return
  }
  func.func @transform_0(%arg0: i32) -> (i32, i32) {
    %c0_i32 = arith.constant 0 : i32
    %c0_i32_0 = arith.constant 0 : i32
    return %arg0, %c0_i32 : i32, i32
  }
  func.func @transform_1(%arg0: i32) -> (i32, i32) {
    %c0_i32 = arith.constant 0 : i32
    %c0_i32_0 = arith.constant 0 : i32
    return %arg0, %c0_i32 : i32, i32
  }
  func.func @transform_2(%arg0: i32) -> (i32, i32) {
    %c0_i32 = arith.constant 0 : i32
    %c0_i32_0 = arith.constant 0 : i32
    %c0_i32_1 = arith.constant 0 : i32
    return %c0_i32, %c0_i32_0 : i32, i32
  }
  func.func @transform_3(%arg0: i32) -> (i32, i32) {
    %c0_i32 = arith.constant 0 : i32
    %c0_i32_0 = arith.constant 0 : i32
    return %arg0, %c0_i32 : i32, i32
  }
}

module attributes {stable_mosaic.version = 11 : i64} {
  func.func @_bwd_db_kernel(%arg0: i32, %arg1: memref<256x144xbf16, #tpu.memory_space<vmem>>, %arg2: memref<256x16xf32, #tpu.memory_space<vmem>>, %arg3: memref<256x16xf32, #tpu.memory_space<vmem>>, %arg4: memref<144x16xf32, #tpu.memory_space<vmem>>, %arg5: memref<1x16xf32, #tpu.memory_space<vmem>>) attributes {dimension_semantics = [#tpu.dimension_semantics<arbitrary>], iteration_bounds = array<i64: 1>, scalar_prefetch = 0 : i64, scratch_operands = 0 : i64, tpu.core_type = #tpu.core_type<tc>, window_params = [{pipeline_mode = #tpu.pipeline_mode<synchronous>, transform_indices = @transform_0, window_bounds = array<i64: 256, 144>}, {pipeline_mode = #tpu.pipeline_mode<synchronous>, transform_indices = @transform_1, window_bounds = array<i64: 256, 16>}, {pipeline_mode = #tpu.pipeline_mode<synchronous>, transform_indices = @transform_2, window_bounds = array<i64: 256, 16>}, {pipeline_mode = #tpu.pipeline_mode<synchronous>, transform_indices = @transform_3, window_bounds = array<i64: 144, 16>}, {pipeline_mode = #tpu.pipeline_mode<synchronous>, transform_indices = @transform_4, window_bounds = array<i64: 1, 16>}]} {
    %c0 = arith.constant 0 : index
    %c0_0 = arith.constant 0 : index
    %0 = vector.load %arg2[%c0, %c0_0] : memref<256x16xf32, #tpu.memory_space<vmem>>, vector<256x16xf32>
    %c0_1 = arith.constant 0 : index
    %c0_2 = arith.constant 0 : index
    %1 = vector.load %arg3[%c0_1, %c0_2] : memref<256x16xf32, #tpu.memory_space<vmem>>, vector<256x16xf32>
    %cst = arith.constant 0.000000e+00 : f32
    %2 = vector.broadcast %cst : f32 to vector<256x16xf32>
    %3 = arith.cmpf ogt, %1, %2 : vector<256x16xf32>
    %cst_3 = arith.constant 0.000000e+00 : f32
    %4 = vector.broadcast %cst_3 : f32 to vector<256x16xf32>
    %5 = arith.select %3, %0, %4 : vector<256x16xi1>, vector<256x16xf32>
    %c0_4 = arith.constant 0 : index
    %c0_5 = arith.constant 0 : index
    %6 = vector.load %arg1[%c0_4, %c0_5] : memref<256x144xbf16, #tpu.memory_space<vmem>>, vector<256x144xbf16>
    %7 = arith.truncf %5 : vector<256x16xf32> to vector<256x16xbf16>
    %cst_6 = arith.constant dense<0.000000e+00> : vector<144x16xf32>
    %8 = tpu.matmul %6, %7, %cst_6 {dimension_numbers = #tpu.dot_dimension_numbers<[0], [0], [1], [1], [0, 1, 1, 1], [], []>} : vector<256x144xbf16>, vector<256x16xbf16>, vector<144x16xf32> -> vector<144x16xf32>
    %c0_7 = arith.constant 0 : index
    %c0_8 = arith.constant 0 : index
    %9 = vector.load %arg4[%c0_7, %c0_8] : memref<144x16xf32, #tpu.memory_space<vmem>>, vector<144x16xf32>
    tpu.vector_store %arg4[%c0_7, %c0_8], %8 {strides = array<i32>} : memref<144x16xf32, #tpu.memory_space<vmem>>, vector<144x16xf32>,
    %cst_9 = arith.constant dense<0.000000e+00> : vector<16xf32>
    %10 = vector.multi_reduction <add>, %5, %cst_9 [0] : vector<256x16xf32> to vector<16xf32>
    %11 = vector.shape_cast %10 : vector<16xf32> to vector<1x16xf32>
    %c0_10 = arith.constant 0 : index
    %c0_11 = arith.constant 0 : index
    %12 = vector.load %arg5[%c0_10, %c0_11] : memref<1x16xf32, #tpu.memory_space<vmem>>, vector<1x16xf32>
    tpu.vector_store %arg5[%c0_10, %c0_11], %11 {strides = array<i32>} : memref<1x16xf32, #tpu.memory_space<vmem>>, vector<1x16xf32>,
    return
  }
  func.func @transform_0(%arg0: i32) -> (i32, i32) {
    %c0_i32 = arith.constant 0 : i32
    %c0_i32_0 = arith.constant 0 : i32
    %c0_i32_1 = arith.constant 0 : i32
    return %c0_i32, %c0_i32_0 : i32, i32
  }
  func.func @transform_1(%arg0: i32) -> (i32, i32) {
    %c0_i32 = arith.constant 0 : i32
    %c0_i32_0 = arith.constant 0 : i32
    %c0_i32_1 = arith.constant 0 : i32
    return %c0_i32, %c0_i32_0 : i32, i32
  }
  func.func @transform_2(%arg0: i32) -> (i32, i32) {
    %c0_i32 = arith.constant 0 : i32
    %c0_i32_0 = arith.constant 0 : i32
    %c0_i32_1 = arith.constant 0 : i32
    return %c0_i32, %c0_i32_0 : i32, i32
  }
  func.func @transform_3(%arg0: i32) -> (i32, i32) {
    %c0_i32 = arith.constant 0 : i32
    %c0_i32_0 = arith.constant 0 : i32
    %c0_i32_1 = arith.constant 0 : i32
    return %c0_i32, %c0_i32_0 : i32, i32
  }
  func.func @transform_4(%arg0: i32) -> (i32, i32) {
    %c0_i32 = arith.constant 0 : i32
    %c0_i32_0 = arith.constant 0 : i32
    %c0_i32_1 = arith.constant 0 : i32
    return %c0_i32, %c0_i32_0 : i32, i32
  }
}

module attributes {stable_mosaic.version = 11 : i64} {
  func.func @_bwd_da_kernel(%arg0: i32, %arg1: memref<256x16xf32, #tpu.memory_space<vmem>>, %arg2: memref<256x16xf32, #tpu.memory_space<vmem>>, %arg3: memref<144x16xbf16, #tpu.memory_space<vmem>>, %arg4: memref<256x144xf32, #tpu.memory_space<vmem>>) attributes {dimension_semantics = [#tpu.dimension_semantics<parallel>], iteration_bounds = array<i64: 1>, scalar_prefetch = 0 : i64, scratch_operands = 0 : i64, tpu.core_type = #tpu.core_type<tc>, window_params = [{transform_indices = @transform_0, window_bounds = array<i64: 256, 16>}, {transform_indices = @transform_1, window_bounds = array<i64: 256, 16>}, {pipeline_mode = #tpu.pipeline_mode<synchronous>, transform_indices = @transform_2, window_bounds = array<i64: 144, 16>}, {transform_indices = @transform_3, window_bounds = array<i64: 256, 144>}]} {
    %c0 = arith.constant 0 : index
    %c0_0 = arith.constant 0 : index
    %0 = vector.load %arg1[%c0, %c0_0] : memref<256x16xf32, #tpu.memory_space<vmem>>, vector<256x16xf32>
    %c0_1 = arith.constant 0 : index
    %c0_2 = arith.constant 0 : index
    %1 = vector.load %arg2[%c0_1, %c0_2] : memref<256x16xf32, #tpu.memory_space<vmem>>, vector<256x16xf32>
    %cst = arith.constant 0.000000e+00 : f32
    %2 = vector.broadcast %cst : f32 to vector<256x16xf32>
    %3 = arith.cmpf ogt, %1, %2 : vector<256x16xf32>
    %cst_3 = arith.constant 0.000000e+00 : f32
    %4 = vector.broadcast %cst_3 : f32 to vector<256x16xf32>
    %5 = arith.select %3, %0, %4 : vector<256x16xi1>, vector<256x16xf32>
    %6 = arith.truncf %5 : vector<256x16xf32> to vector<256x16xbf16>
    %c0_4 = arith.constant 0 : index
    %c0_5 = arith.constant 0 : index
    %7 = vector.load %arg3[%c0_4, %c0_5] : memref<144x16xbf16, #tpu.memory_space<vmem>>, vector<144x16xbf16>
    %cst_6 = arith.constant dense<0.000000e+00> : vector<256x144xf32>
    %8 = tpu.matmul %6, %7, %cst_6 {dimension_numbers = #tpu.dot_dimension_numbers<[1], [1], [0], [0], [0, 0, 1, 0], [], []>} : vector<256x16xbf16>, vector<144x16xbf16>, vector<256x144xf32> -> vector<256x144xf32>
    %c0_7 = arith.constant 0 : index
    %c0_8 = arith.constant 0 : index
    %9 = vector.load %arg4[%c0_7, %c0_8] : memref<256x144xf32, #tpu.memory_space<vmem>>, vector<256x144xf32>
    tpu.vector_store %arg4[%c0_7, %c0_8], %8 {strides = array<i32>} : memref<256x144xf32, #tpu.memory_space<vmem>>, vector<256x144xf32>,
    return
  }
  func.func @transform_0(%arg0: i32) -> (i32, i32) {
    %c0_i32 = arith.constant 0 : i32
    %c0_i32_0 = arith.constant 0 : i32
    return %arg0, %c0_i32 : i32, i32
  }
  func.func @transform_1(%arg0: i32) -> (i32, i32) {
    %c0_i32 = arith.constant 0 : i32
    %c0_i32_0 = arith.constant 0 : i32
    return %arg0, %c0_i32 : i32, i32
  }
  func.func @transform_2(%arg0: i32) -> (i32, i32) {
    %c0_i32 = arith.constant 0 : i32
    %c0_i32_0 = arith.constant 0 : i32
    %c0_i32_1 = arith.constant 0 : i32
    return %c0_i32, %c0_i32_0 : i32, i32
  }
  func.func @transform_3(%arg0: i32) -> (i32, i32) {
    %c0_i32 = arith.constant 0 : i32
    %c0_i32_0 = arith.constant 0 : i32
    return %arg0, %c0_i32 : i32, i32
  }
}

module attributes {stable_mosaic.version = 11 : i64} {
  func.func @_bwd_db_kernel(%arg0: i32, %arg1: memref<1024x36xbf16, #tpu.memory_space<vmem>>, %arg2: memref<1024x16xf32, #tpu.memory_space<vmem>>, %arg3: memref<1024x16xf32, #tpu.memory_space<vmem>>, %arg4: memref<36x16xf32, #tpu.memory_space<vmem>>, %arg5: memref<1x16xf32, #tpu.memory_space<vmem>>) attributes {dimension_semantics = [#tpu.dimension_semantics<arbitrary>], iteration_bounds = array<i64: 1>, scalar_prefetch = 0 : i64, scratch_operands = 0 : i64, tpu.core_type = #tpu.core_type<tc>, window_params = [{pipeline_mode = #tpu.pipeline_mode<synchronous>, transform_indices = @transform_0, window_bounds = array<i64: 1024, 36>}, {pipeline_mode = #tpu.pipeline_mode<synchronous>, transform_indices = @transform_1, window_bounds = array<i64: 1024, 16>}, {pipeline_mode = #tpu.pipeline_mode<synchronous>, transform_indices = @transform_2, window_bounds = array<i64: 1024, 16>}, {pipeline_mode = #tpu.pipeline_mode<synchronous>, transform_indices = @transform_3, window_bounds = array<i64: 36, 16>}, {pipeline_mode = #tpu.pipeline_mode<synchronous>, transform_indices = @transform_4, window_bounds = array<i64: 1, 16>}]} {
    %c0 = arith.constant 0 : index
    %c0_0 = arith.constant 0 : index
    %0 = vector.load %arg2[%c0, %c0_0] : memref<1024x16xf32, #tpu.memory_space<vmem>>, vector<1024x16xf32>
    %c0_1 = arith.constant 0 : index
    %c0_2 = arith.constant 0 : index
    %1 = vector.load %arg3[%c0_1, %c0_2] : memref<1024x16xf32, #tpu.memory_space<vmem>>, vector<1024x16xf32>
    %cst = arith.constant 0.000000e+00 : f32
    %2 = vector.broadcast %cst : f32 to vector<1024x16xf32>
    %3 = arith.cmpf ogt, %1, %2 : vector<1024x16xf32>
    %cst_3 = arith.constant 0.000000e+00 : f32
    %4 = vector.broadcast %cst_3 : f32 to vector<1024x16xf32>
    %5 = arith.select %3, %0, %4 : vector<1024x16xi1>, vector<1024x16xf32>
    %c0_4 = arith.constant 0 : index
    %c0_5 = arith.constant 0 : index
    %6 = vector.load %arg1[%c0_4, %c0_5] : memref<1024x36xbf16, #tpu.memory_space<vmem>>, vector<1024x36xbf16>
    %7 = arith.truncf %5 : vector<1024x16xf32> to vector<1024x16xbf16>
    %cst_6 = arith.constant dense<0.000000e+00> : vector<36x16xf32>
    %8 = tpu.matmul %6, %7, %cst_6 {dimension_numbers = #tpu.dot_dimension_numbers<[0], [0], [1], [1], [0, 1, 1, 1], [], []>} : vector<1024x36xbf16>, vector<1024x16xbf16>, vector<36x16xf32> -> vector<36x16xf32>
    %c0_7 = arith.constant 0 : index
    %c0_8 = arith.constant 0 : index
    %9 = vector.load %arg4[%c0_7, %c0_8] : memref<36x16xf32, #tpu.memory_space<vmem>>, vector<36x16xf32>
    tpu.vector_store %arg4[%c0_7, %c0_8], %8 {strides = array<i32>} : memref<36x16xf32, #tpu.memory_space<vmem>>, vector<36x16xf32>,
    %cst_9 = arith.constant dense<0.000000e+00> : vector<16xf32>
    %10 = vector.multi_reduction <add>, %5, %cst_9 [0] : vector<1024x16xf32> to vector<16xf32>
    %11 = vector.shape_cast %10 : vector<16xf32> to vector<1x16xf32>
    %c0_10 = arith.constant 0 : index
    %c0_11 = arith.constant 0 : index
    %12 = vector.load %arg5[%c0_10, %c0_11] : memref<1x16xf32, #tpu.memory_space<vmem>>, vector<1x16xf32>
    tpu.vector_store %arg5[%c0_10, %c0_11], %11 {strides = array<i32>} : memref<1x16xf32, #tpu.memory_space<vmem>>, vector<1x16xf32>,
    return
  }
  func.func @transform_0(%arg0: i32) -> (i32, i32) {
    %c0_i32 = arith.constant 0 : i32
    %c0_i32_0 = arith.constant 0 : i32
    %c0_i32_1 = arith.constant 0 : i32
    return %c0_i32, %c0_i32_0 : i32, i32
  }
  func.func @transform_1(%arg0: i32) -> (i32, i32) {
    %c0_i32 = arith.constant 0 : i32
    %c0_i32_0 = arith.constant 0 : i32
    %c0_i32_1 = arith.constant 0 : i32
    return %c0_i32, %c0_i32_0 : i32, i32
  }
  func.func @transform_2(%arg0: i32) -> (i32, i32) {
    %c0_i32 = arith.constant 0 : i32
    %c0_i32_0 = arith.constant 0 : i32
    %c0_i32_1 = arith.constant 0 : i32
    return %c0_i32, %c0_i32_0 : i32, i32
  }
  func.func @transform_3(%arg0: i32) -> (i32, i32) {
    %c0_i32 = arith.constant 0 : i32
    %c0_i32_0 = arith.constant 0 : i32
    %c0_i32_1 = arith.constant 0 : i32
    return %c0_i32, %c0_i32_0 : i32, i32
  }
  func.func @transform_4(%arg0: i32) -> (i32, i32) {
    %c0_i32 = arith.constant 0 : i32
    %c0_i32_0 = arith.constant 0 : i32
    %c0_i32_1 = arith.constant 0 : i32
    return %c0_i32, %c0_i32_0 : i32, i32
  }
}

module attributes {stable_mosaic.version = 11 : i64} {
  func.func @_bwd_db_kernel(%arg0: i32, %arg1: memref<4x256xbf16, #tpu.memory_space<vmem>>, %arg2: memref<4x4xf32, #tpu.memory_space<vmem>>, %arg3: memref<4x4xf32, #tpu.memory_space<vmem>>, %arg4: memref<256x4xf32, #tpu.memory_space<vmem>>, %arg5: memref<1x4xf32, #tpu.memory_space<vmem>>) attributes {dimension_semantics = [#tpu.dimension_semantics<arbitrary>], iteration_bounds = array<i64: 1>, scalar_prefetch = 0 : i64, scratch_operands = 0 : i64, tpu.core_type = #tpu.core_type<tc>, window_params = [{pipeline_mode = #tpu.pipeline_mode<synchronous>, transform_indices = @transform_0, window_bounds = array<i64: 4, 256>}, {pipeline_mode = #tpu.pipeline_mode<synchronous>, transform_indices = @transform_1, window_bounds = array<i64: 4, 4>}, {pipeline_mode = #tpu.pipeline_mode<synchronous>, transform_indices = @transform_2, window_bounds = array<i64: 4, 4>}, {pipeline_mode = #tpu.pipeline_mode<synchronous>, transform_indices = @transform_3, window_bounds = array<i64: 256, 4>}, {pipeline_mode = #tpu.pipeline_mode<synchronous>, transform_indices = @transform_4, window_bounds = array<i64: 1, 4>}]} {
    %c0 = arith.constant 0 : index
    %c0_0 = arith.constant 0 : index
    %0 = vector.load %arg2[%c0, %c0_0] : memref<4x4xf32, #tpu.memory_space<vmem>>, vector<4x4xf32>
    %c0_1 = arith.constant 0 : index
    %c0_2 = arith.constant 0 : index
    %1 = vector.load %arg1[%c0_1, %c0_2] : memref<4x256xbf16, #tpu.memory_space<vmem>>, vector<4x256xbf16>
    %2 = arith.truncf %0 : vector<4x4xf32> to vector<4x4xbf16>
    %cst = arith.constant dense<0.000000e+00> : vector<256x4xf32>
    %3 = tpu.matmul %1, %2, %cst {dimension_numbers = #tpu.dot_dimension_numbers<[0], [0], [1], [1], [0, 1, 1, 1], [], []>} : vector<4x256xbf16>, vector<4x4xbf16>, vector<256x4xf32> -> vector<256x4xf32>
    %c0_3 = arith.constant 0 : index
    %c0_4 = arith.constant 0 : index
    %4 = vector.load %arg4[%c0_3, %c0_4] : memref<256x4xf32, #tpu.memory_space<vmem>>, vector<256x4xf32>
    tpu.vector_store %arg4[%c0_3, %c0_4], %3 {strides = array<i32>} : memref<256x4xf32, #tpu.memory_space<vmem>>, vector<256x4xf32>,
    %cst_5 = arith.constant dense<0.000000e+00> : vector<4xf32>
    %5 = vector.multi_reduction <add>, %0, %cst_5 [0] : vector<4x4xf32> to vector<4xf32>
    %6 = vector.shape_cast %5 : vector<4xf32> to vector<1x4xf32>
    %c0_6 = arith.constant 0 : index
    %c0_7 = arith.constant 0 : index
    %7 = vector.load %arg5[%c0_6, %c0_7] : memref<1x4xf32, #tpu.memory_space<vmem>>, vector<1x4xf32>
    tpu.vector_store %arg5[%c0_6, %c0_7], %6 {strides = array<i32>} : memref<1x4xf32, #tpu.memory_space<vmem>>, vector<1x4xf32>,
    return
  }
  func.func @transform_0(%arg0: i32) -> (i32, i32) {
    %c0_i32 = arith.constant 0 : i32
    %c0_i32_0 = arith.constant 0 : i32
    %c0_i32_1 = arith.constant 0 : i32
    return %c0_i32, %c0_i32_0 : i32, i32
  }
  func.func @transform_1(%arg0: i32) -> (i32, i32) {
    %c0_i32 = arith.constant 0 : i32
    %c0_i32_0 = arith.constant 0 : i32
    %c0_i32_1 = arith.constant 0 : i32
    return %c0_i32, %c0_i32_0 : i32, i32
  }
  func.func @transform_2(%arg0: i32) -> (i32, i32) {
    %c0_i32 = arith.constant 0 : i32
    %c0_i32_0 = arith.constant 0 : i32
    %c0_i32_1 = arith.constant 0 : i32
    return %c0_i32, %c0_i32_0 : i32, i32
  }
  func.func @transform_3(%arg0: i32) -> (i32, i32) {
    %c0_i32 = arith.constant 0 : i32
    %c0_i32_0 = arith.constant 0 : i32
    %c0_i32_1 = arith.constant 0 : i32
    return %c0_i32, %c0_i32_0 : i32, i32
  }
  func.func @transform_4(%arg0: i32) -> (i32, i32) {
    %c0_i32 = arith.constant 0 : i32
    %c0_i32_0 = arith.constant 0 : i32
    %c0_i32_1 = arith.constant 0 : i32
    return %c0_i32, %c0_i32_0 : i32, i32
  }
}

module attributes {stable_mosaic.version = 11 : i64} {
  func.func @_fwd_kernel(%arg0: i32, %arg1: memref<512x36xbf16, #tpu.memory_space<vmem>>, %arg2: memref<36x16xbf16, #tpu.memory_space<vmem>>, %arg3: memref<1x16xf32, #tpu.memory_space<vmem>>, %arg4: memref<512x16xf32, #tpu.memory_space<vmem>>) attributes {dimension_semantics = [#tpu.dimension_semantics<parallel>], iteration_bounds = array<i64: 4>, scalar_prefetch = 0 : i64, scratch_operands = 0 : i64, tpu.core_type = #tpu.core_type<tc>, window_params = [{transform_indices = @transform_0, window_bounds = array<i64: 512, 36>}, {pipeline_mode = #tpu.pipeline_mode<synchronous>, transform_indices = @transform_1, window_bounds = array<i64: 36, 16>}, {pipeline_mode = #tpu.pipeline_mode<synchronous>, transform_indices = @transform_2, window_bounds = array<i64: 1, 16>}, {transform_indices = @transform_3, window_bounds = array<i64: 512, 16>}]} {
    %c0 = arith.constant 0 : index
    %c0_0 = arith.constant 0 : index
    %0 = vector.load %arg1[%c0, %c0_0] : memref<512x36xbf16, #tpu.memory_space<vmem>>, vector<512x36xbf16>
    %c0_1 = arith.constant 0 : index
    %c0_2 = arith.constant 0 : index
    %1 = vector.load %arg2[%c0_1, %c0_2] : memref<36x16xbf16, #tpu.memory_space<vmem>>, vector<36x16xbf16>
    %cst = arith.constant dense<0.000000e+00> : vector<512x16xf32>
    %2 = tpu.matmul %0, %1, %cst {dimension_numbers = #tpu.dot_dimension_numbers<[1], [0], [0], [1], [0, 0, 1, 1], [], []>} : vector<512x36xbf16>, vector<36x16xbf16>, vector<512x16xf32> -> vector<512x16xf32>
    %c0_3 = arith.constant 0 : index
    %c0_4 = arith.constant 0 : index
    %3 = vector.load %arg3[%c0_3, %c0_4] : memref<1x16xf32, #tpu.memory_space<vmem>>, vector<1x16xf32>
    %4 = vector.broadcast %3 : vector<1x16xf32> to vector<512x16xf32>
    %5 = arith.addf %2, %4 : vector<512x16xf32>
    %cst_5 = arith.constant 0.000000e+00 : f32
    %6 = vector.broadcast %cst_5 : f32 to vector<512x16xf32>
    %7 = arith.maximumf %5, %6 : vector<512x16xf32>
    %c0_6 = arith.constant 0 : index
    %c0_7 = arith.constant 0 : index
    %8 = vector.load %arg4[%c0_6, %c0_7] : memref<512x16xf32, #tpu.memory_space<vmem>>, vector<512x16xf32>
    tpu.vector_store %arg4[%c0_6, %c0_7], %7 {strides = array<i32>} : memref<512x16xf32, #tpu.memory_space<vmem>>, vector<512x16xf32>,
    return
  }
  func.func @transform_0(%arg0: i32) -> (i32, i32) {
    %c0_i32 = arith.constant 0 : i32
    %c0_i32_0 = arith.constant 0 : i32
    return %arg0, %c0_i32 : i32, i32
  }
  func.func @transform_1(%arg0: i32) -> (i32, i32) {
    %c0_i32 = arith.constant 0 : i32
    %c0_i32_0 = arith.constant 0 : i32
    %c0_i32_1 = arith.constant 0 : i32
    return %c0_i32, %c0_i32_0 : i32, i32
  }
  func.func @transform_2(%arg0: i32) -> (i32, i32) {
    %c0_i32 = arith.constant 0 : i32
    %c0_i32_0 = arith.constant 0 : i32
    %c0_i32_1 = arith.constant 0 : i32
    return %c0_i32, %c0_i32_0 : i32, i32
  }
  func.func @transform_3(%arg0: i32) -> (i32, i32) {
    %c0_i32 = arith.constant 0 : i32
    %c0_i32_0 = arith.constant 0 : i32
    return %arg0, %c0_i32 : i32, i32
  }
}

module attributes {stable_mosaic.version = 11 : i64} {
  func.func @_fwd_kernel(%arg0: i32, %arg1: memref<256x144xbf16, #tpu.memory_space<vmem>>, %arg2: memref<144x16xbf16, #tpu.memory_space<vmem>>, %arg3: memref<1x16xf32, #tpu.memory_space<vmem>>, %arg4: memref<256x16xf32, #tpu.memory_space<vmem>>) attributes {dimension_semantics = [#tpu.dimension_semantics<parallel>], iteration_bounds = array<i64: 2>, scalar_prefetch = 0 : i64, scratch_operands = 0 : i64, tpu.core_type = #tpu.core_type<tc>, window_params = [{transform_indices = @transform_0, window_bounds = array<i64: 256, 144>}, {pipeline_mode = #tpu.pipeline_mode<synchronous>, transform_indices = @transform_1, window_bounds = array<i64: 144, 16>}, {pipeline_mode = #tpu.pipeline_mode<synchronous>, transform_indices = @transform_2, window_bounds = array<i64: 1, 16>}, {transform_indices = @transform_3, window_bounds = array<i64: 256, 16>}]} {
    %c0 = arith.constant 0 : index
    %c0_0 = arith.constant 0 : index
    %0 = vector.load %arg1[%c0, %c0_0] : memref<256x144xbf16, #tpu.memory_space<vmem>>, vector<256x144xbf16>
    %c0_1 = arith.constant 0 : index
    %c0_2 = arith.constant 0 : index
    %1 = vector.load %arg2[%c0_1, %c0_2] : memref<144x16xbf16, #tpu.memory_space<vmem>>, vector<144x16xbf16>
    %cst = arith.constant dense<0.000000e+00> : vector<256x16xf32>
    %2 = tpu.matmul %0, %1, %cst {dimension_numbers = #tpu.dot_dimension_numbers<[1], [0], [0], [1], [0, 0, 1, 1], [], []>} : vector<256x144xbf16>, vector<144x16xbf16>, vector<256x16xf32> -> vector<256x16xf32>
    %c0_3 = arith.constant 0 : index
    %c0_4 = arith.constant 0 : index
    %3 = vector.load %arg3[%c0_3, %c0_4] : memref<1x16xf32, #tpu.memory_space<vmem>>, vector<1x16xf32>
    %4 = vector.broadcast %3 : vector<1x16xf32> to vector<256x16xf32>
    %5 = arith.addf %2, %4 : vector<256x16xf32>
    %cst_5 = arith.constant 0.000000e+00 : f32
    %6 = vector.broadcast %cst_5 : f32 to vector<256x16xf32>
    %7 = arith.maximumf %5, %6 : vector<256x16xf32>
    %c0_6 = arith.constant 0 : index
    %c0_7 = arith.constant 0 : index
    %8 = vector.load %arg4[%c0_6, %c0_7] : memref<256x16xf32, #tpu.memory_space<vmem>>, vector<256x16xf32>
    tpu.vector_store %arg4[%c0_6, %c0_7], %7 {strides = array<i32>} : memref<256x16xf32, #tpu.memory_space<vmem>>, vector<256x16xf32>,
    return
  }
  func.func @transform_0(%arg0: i32) -> (i32, i32) {
    %c0_i32 = arith.constant 0 : i32
    %c0_i32_0 = arith.constant 0 : i32
    return %arg0, %c0_i32 : i32, i32
  }
  func.func @transform_1(%arg0: i32) -> (i32, i32) {
    %c0_i32 = arith.constant 0 : i32
    %c0_i32_0 = arith.constant 0 : i32
    %c0_i32_1 = arith.constant 0 : i32
    return %c0_i32, %c0_i32_0 : i32, i32
  }
  func.func @transform_2(%arg0: i32) -> (i32, i32) {
    %c0_i32 = arith.constant 0 : i32
    %c0_i32_0 = arith.constant 0 : i32
    %c0_i32_1 = arith.constant 0 : i32
    return %c0_i32, %c0_i32_0 : i32, i32
  }
  func.func @transform_3(%arg0: i32) -> (i32, i32) {
    %c0_i32 = arith.constant 0 : i32
    %c0_i32_0 = arith.constant 0 : i32
    return %arg0, %c0_i32 : i32, i32
  }
}

module attributes {stable_mosaic.version = 11 : i64} {
  func.func @_fwd_kernel(%arg0: i32, %arg1: memref<8x256xbf16, #tpu.memory_space<vmem>>, %arg2: memref<256x4xbf16, #tpu.memory_space<vmem>>, %arg3: memref<1x4xf32, #tpu.memory_space<vmem>>, %arg4: memref<8x4xf32, #tpu.memory_space<vmem>>) attributes {dimension_semantics = [#tpu.dimension_semantics<parallel>], iteration_bounds = array<i64: 1>, scalar_prefetch = 0 : i64, scratch_operands = 0 : i64, tpu.core_type = #tpu.core_type<tc>, window_params = [{transform_indices = @transform_0, window_bounds = array<i64: 8, 256>}, {pipeline_mode = #tpu.pipeline_mode<synchronous>, transform_indices = @transform_1, window_bounds = array<i64: 256, 4>}, {pipeline_mode = #tpu.pipeline_mode<synchronous>, transform_indices = @transform_2, window_bounds = array<i64: 1, 4>}, {transform_indices = @transform_3, window_bounds = array<i64: 8, 4>}]} {
    %c0 = arith.constant 0 : index
    %c0_0 = arith.constant 0 : index
    %0 = vector.load %arg1[%c0, %c0_0] : memref<8x256xbf16, #tpu.memory_space<vmem>>, vector<8x256xbf16>
    %c0_1 = arith.constant 0 : index
    %c0_2 = arith.constant 0 : index
    %1 = vector.load %arg2[%c0_1, %c0_2] : memref<256x4xbf16, #tpu.memory_space<vmem>>, vector<256x4xbf16>
    %cst = arith.constant dense<0.000000e+00> : vector<8x4xf32>
    %2 = tpu.matmul %0, %1, %cst {dimension_numbers = #tpu.dot_dimension_numbers<[1], [0], [0], [1], [0, 0, 1, 1], [], []>} : vector<8x256xbf16>, vector<256x4xbf16>, vector<8x4xf32> -> vector<8x4xf32>
    %c0_3 = arith.constant 0 : index
    %c0_4 = arith.constant 0 : index
    %3 = vector.load %arg3[%c0_3, %c0_4] : memref<1x4xf32, #tpu.memory_space<vmem>>, vector<1x4xf32>
    %4 = vector.broadcast %3 : vector<1x4xf32> to vector<8x4xf32>
    %5 = arith.addf %2, %4 : vector<8x4xf32>
    %c0_5 = arith.constant 0 : index
    %c0_6 = arith.constant 0 : index
    %6 = vector.load %arg4[%c0_5, %c0_6] : memref<8x4xf32, #tpu.memory_space<vmem>>, vector<8x4xf32>
    tpu.vector_store %arg4[%c0_5, %c0_6], %5 {strides = array<i32>} : memref<8x4xf32, #tpu.memory_space<vmem>>, vector<8x4xf32>,
    return
  }
  func.func @transform_0(%arg0: i32) -> (i32, i32) {
    %c0_i32 = arith.constant 0 : i32
    %c0_i32_0 = arith.constant 0 : i32
    return %arg0, %c0_i32 : i32, i32
  }
  func.func @transform_1(%arg0: i32) -> (i32, i32) {
    %c0_i32 = arith.constant 0 : i32
    %c0_i32_0 = arith.constant 0 : i32
    %c0_i32_1 = arith.constant 0 : i32
    return %c0_i32, %c0_i32_0 : i32, i32
  }
  func.func @transform_2(%arg0: i32) -> (i32, i32) {
    %c0_i32 = arith.constant 0 : i32
    %c0_i32_0 = arith.constant 0 : i32
    %c0_i32_1 = arith.constant 0 : i32
    return %c0_i32, %c0_i32_0 : i32, i32
  }
  func.func @transform_3(%arg0: i32) -> (i32, i32) {
    %c0_i32 = arith.constant 0 : i32
    %c0_i32_0 = arith.constant 0 : i32
    return %arg0, %c0_i32 : i32, i32
  }
}

</mosaic_0001>

<llo_original>
// kernel: jvp__.12
$region0: #{jvp__.12}
  #allocation0 [shape = 'u32[]', space=smem, size = 0x4, offset = 0x4, fixed_abs, tag = 'smem constant byte address 0x4 - core index']
  #allocation1 [shape = 'u32[144,128]{1,0:T(1,128)}', space=vmem, size = 0x12000, scoped, tag = 'internal scratch']
  %s0 = inlined_call_operand.vmem [shape: bf16[1024,36], index: 0, kind: input, shape index: {}]
  %s1 = inlined_call_operand.vmem [shape: bf16[36,16], index: 1, kind: input, shape index: {}]
  %s2 = inlined_call_operand.vmem [shape: f32[1,16], index: 2, kind: input, shape index: {}]
  %s3 = inlined_call_operand.vmem [shape: f32[1024,16], index: 3, kind: output, shape index: {}]
  %s4 = sld [smem:[#allocation0]]
  $region45: #{jvp__.12} parent=0
    _
  %s6 = ssub.s32 1, %s4
  %s7 = scalar_select 0, %s6, %s4
  loop: start=0, step=1, limit=4
  $region2: #{jvp__.12} parent=0 // loop_pre_header
    _
  $region3: #{jvp__.12} parent=0 // loop_header
    %s9 = sphi 0, %s13
    %p10 = scmp.ge.s32.totalorder %s9, 4
    %s19 = sphi 0, %s21
    %s22 = sphi 0, %s19
    %s23 = sphi 0, %s22
    %s39 = sphi 0, %s23
    %s43 = sphi 0, %s43
    %s45 = sphi 0, %s43
    %s46 = sphi 0, %s45
    %s60 = sphi 0, %s46
    %s64 = sphi 0, %s64
    %s66 = sphi 0, %s64
    %s67 = sphi 0, %s66
    %s81 = sphi 0, %s67
    %s87 = sphi 0, %s89
    %s90 = sphi 0, %s87
    %s91 = sphi 0, %s90
    %s107 = sphi 0, %s91
  $region4: #{jvp__.12} parent=0 // loop_header_branch
    %12 = sbr.rel (%p10) target = $region8
  $region5: #{jvp__.12} parent=0 // loop_body
    %s14 = ssub.s32 %s9, 1
    %s15 = ssub.s32 %s9, 2
    %s16 = sadd.s32 %s9, 1
    %s17 = ssub.s32 %s9, %s16
    %p18 = scmp.eq.s32.totalorder %s17, 0
    %s20 = sadd.s32 %s19, 1
    %s21 = scalar_select %p18, %s19, %s20
    %p24 = pneg %p18
    %p25 = scmp.eq.s32.totalorder %s9, 1
    %p26 = por %p24, %p25
    %p27 = scmp.ne.s32.totalorder %s19, %s22
    %p28 = scmp.eq.s32.totalorder %s9, 0
    %p29 = por %p27, %p28
    %p30 = scmp.ne.s32.totalorder %s19, %s22
    %p31 = scmp.eq.s32.totalorder %s14, 1
    %p32 = por %p30, %p31
    %p33 = scmp.ne.s32.totalorder %s22, %s23
    %p34 = scmp.eq.s32.totalorder %s14, 0
    %p35 = por %p33, %p34
    %p36 = scmp.ne.s32.totalorder %s22, %s23
    %p37 = scmp.eq.s32.totalorder %s15, 1
    %p38 = por %p36, %p37
    %p40 = scmp.ne.s32.totalorder %s23, %s39
    %p41 = scmp.eq.s32.totalorder %s15, 0
    %p42 = por %p40, %p41
    %s44 = sadd.s32 %s43, 1
    %p47 = scmp.eq.s32.totalorder %s9, 1
    %p48 = scmp.ne.s32.totalorder %s43, %s45
    %p49 = scmp.eq.s32.totalorder %s9, 0
    %p50 = por %p48, %p49
    %p51 = scmp.ne.s32.totalorder %s43, %s45
    %p52 = scmp.eq.s32.totalorder %s14, 1
    %p53 = por %p51, %p52
    %p54 = scmp.ne.s32.totalorder %s45, %s46
    %p55 = scmp.eq.s32.totalorder %s14, 0
    %p56 = por %p54, %p55
    %p57 = scmp.ne.s32.totalorder %s45, %s46
    %p58 = scmp.eq.s32.totalorder %s15, 1
    %p59 = por %p57, %p58
    %p61 = scmp.ne.s32.totalorder %s46, %s60
    %p62 = scmp.eq.s32.totalorder %s15, 0
    %p63 = por %p61, %p62
    %s65 = sadd.s32 %s64, 1
    %p68 = scmp.eq.s32.totalorder %s9, 1
    %p69 = scmp.ne.s32.totalorder %s64, %s66
    %p70 = scmp.eq.s32.totalorder %s9, 0
    %p71 = por %p69, %p70
    %p72 = scmp.ne.s32.totalorder %s64, %s66
    %p73 = scmp.eq.s32.totalorder %s14, 1
    %p74 = por %p72, %p73
    %p75 = scmp.ne.s32.totalorder %s66, %s67
    %p76 = scmp.eq.s32.totalorder %s14, 0
    %p77 = por %p75, %p76
    %p78 = scmp.ne.s32.totalorder %s66, %s67
    %p79 = scmp.eq.s32.totalorder %s15, 1
    %p80 = por %p78, %p79
    %p82 = scmp.ne.s32.totalorder %s67, %s81
    %p83 = scmp.eq.s32.totalorder %s15, 0
    %p84 = por %p82, %p83
    %s85 = ssub.s32 %s9, %s16
    %p86 = scmp.eq.s32.totalorder %s85, 0
    %s88 = sadd.s32 %s87, 1
    %s89 = scalar_select %p86, %s87, %s88
    %p92 = pneg %p86
    %p93 = scmp.eq.s32.totalorder %s9, 1
    %p94 = por %p92, %p93
    %p95 = scmp.ne.s32.totalorder %s87, %s90
    %p96 = scmp.eq.s32.totalorder %s9, 0
    %p97 = por %p95, %p96
    %p98 = scmp.ne.s32.totalorder %s87, %s90
    %p99 = scmp.eq.s32.totalorder %s14, 1
    %p100 = por %p98, %p99
    %p101 = scmp.ne.s32.totalorder %s90, %s91
    %p102 = scmp.eq.s32.totalorder %s14, 0
    %p103 = por %p101, %p102
    %p104 = scmp.ne.s32.totalorder %s90, %s91
    %p105 = scmp.eq.s32.totalorder %s15, 1
    %p106 = por %p104, %p105
    %p108 = scmp.ne.s32.totalorder %s91, %s107
    %p109 = scmp.eq.s32.totalorder %s15, 0
    %p110 = por %p108, %p109
    %p111 = scmp.le.s32.totalorder 1, %s9
    %p112 = scmp.lt.s32.totalorder %s9, 3
    %p113 = pnand %p111, %p112
    %p114 = pneg %p113
    // Predicated region
    $region9: #{jvp__.12} parent=5 // pred_check
      _
    $region10: #{jvp__.12} parent=5 // pred_check_branch
      %116 = sbr.rel (%p113) target = $region12
    $region11: #{jvp__.12} parent=5 // pred_region
      %s117 = ssub.s32 %s9, 1
      // Predicated region
      $region13: #{jvp__.12} parent=11 // pred_check
        %p118 = pneg %p56
      $region14: #{jvp__.12} parent=11 // pred_check_branch
        %120 = sbr.rel (%p118) target = $region16
      $region15: #{jvp__.12} parent=11 // pred_region
        _
      $region16: #{jvp__.12} parent=11 // pred_fallthru
        _
      // Predicated region
      $region17: #{jvp__.12} parent=11 // pred_check
        %p121 = pneg %p77
      $region18: #{jvp__.12} parent=11 // pred_check_branch
        %123 = sbr.rel (%p121) target = $region20
      $region19: #{jvp__.12} parent=11 // pred_region
        _
      $region20: #{jvp__.12} parent=11 // pred_fallthru
        _
    $region12: #{jvp__.12} parent=5 // pred_fallthru
      _
    %p124 = scmp.lt.s32.totalorder %s9, 2
    // Predicated region
    $region21: #{jvp__.12} parent=5 // pred_check
      %p125 = pneg %p124
    $region22: #{jvp__.12} parent=5 // pred_check_branch
      %127 = sbr.rel (%p125) target = $region24
    $region23: #{jvp__.12} parent=5 // pred_region
      // Predicated region
      $region25: #{jvp__.12} parent=23 // pred_check
        %p128 = pneg %p29
      $region26: #{jvp__.12} parent=23 // pred_check_branch
        %130 = sbr.rel (%p128) target = $region28
      $region27: #{jvp__.12} parent=23 // pred_region
        %s131 = smul.u32 64, %s9
        %p132 = scmp.lt.s32.totalorder %s131, 127
        %s133 = scalar_select %p132, %s131, 127
        %s134 = smul.addr %s133, 4
        %s135 = scalar_lea.vmem %s0, %s134
        %s136 = smul.u32 64, %s9
      $region28: #{jvp__.12} parent=23 // pred_fallthru
        _
    $region24: #{jvp__.12} parent=5 // pred_fallthru
      _
    %p137 = scmp.le.s32.totalorder 1, %s9
    %p138 = scmp.lt.s32.totalorder %s9, 3
    %p139 = pnand %p137, %p138
    %p140 = pneg %p139
    // Predicated region
    $region29: #{jvp__.12} parent=5 // pred_check
      _
    $region30: #{jvp__.12} parent=5 // pred_check_branch
      %142 = sbr.rel (%p139) target = $region32
    $region31: #{jvp__.12} parent=5 // pred_region
      %s143 = ssub.s32 %s9, 1
      %s144 = smul.u32 64, %s14
      %p145 = scmp.lt.s32.totalorder %s144, 127
      %s146 = scalar_select %p145, %s144, 127
      %s147 = smul.addr %s146, 4
      %s148 = scalar_lea.vmem %s0, %s147
      %p149 = pneg %p35
      %p150 = pneg %p32
      %p151 = pneg %p56
      %p152 = pneg %p53
      %p153 = pneg %p77
      %p154 = pneg %p74
      %p155 = pneg %p103
      %p156 = pneg %p100
      %s157 = smul.u32 64, %s14
      %p158 = scmp.lt.s32.totalorder %s157, 127
      %s159 = scalar_select %p158, %s157, 127
      %s160 = smul.addr %s159, 8
      %s161 = scalar_lea.vmem %s3, %s160
      %s162 = smul.u32 64, %s14
      %p163 = scmp.lt.s32.totalorder %s162, 127
      %s164 = scalar_select %p163, %s162, 127
      %s165 = smul.addr %s164, 4
      %s166 = scalar_lea.vmem %s0, %s165
      %s167 = smul.u32 64, %s14
      %s168 = smul.u32 64, %s14
      %p169 = scmp.lt.s32.totalorder %s168, 127
      %s170 = scalar_select %p169, %s168, 127
      %s171 = smul.addr %s170, 8
      %s172 = scalar_lea.vmem %s3, %s171
      %s173 = smul.u32 64, %s14
      %v175 = vld [vmem:[%s166] sm:$0xf]
      %v176 = vld [vmem:[%s166 + $0x4] sm:$0xf]
      %v177 = vld [vmem:[%s166 + $0x8] sm:$0xf]
      %v178 = vld [vmem:[%s166 + $0xc] sm:$0xf]
      %v179 = vld [vmem:[%s166 + $0x10] sm:$0xf]
      %v180 = vld [vmem:[%s166 + $0x14] sm:$0xf]
      %v181 = vld [vmem:[%s166 + $0x18] sm:$0xf]
      %v182 = vld [vmem:[%s166 + $0x1c] sm:$0xf]
      %v183 = vld [vmem:[%s166 + $0x20] sm:$0xf]
      %v184 = vld [vmem:[%s166 + $0x24] sm:$0xf]
      %v185 = vld [vmem:[%s166 + $0x28] sm:$0xf]
      %v186 = vld [vmem:[%s166 + $0x2c] sm:$0xf]
      %v187 = vld [vmem:[%s166 + $0x30] sm:$0xf]
      %v188 = vld [vmem:[%s166 + $0x34] sm:$0xf]
      %v189 = vld [vmem:[%s166 + $0x38] sm:$0xf]
      %v190 = vld [vmem:[%s166 + $0x3c] sm:$0xf]
      %v191 = vld [vmem:[%s166 + $0x40] sm:$0xf]
      %v192 = vld [vmem:[%s166 + $0x44] sm:$0xf]
      %v193 = vld [vmem:[%s166 + $0x48] sm:$0xf]
      %v194 = vld [vmem:[%s166 + $0x4c] sm:$0xf]
      %v195 = vld [vmem:[%s166 + $0x50] sm:$0xf]
      %v196 = vld [vmem:[%s166 + $0x54] sm:$0xf]
      %v197 = vld [vmem:[%s166 + $0x58] sm:$0xf]
      %v198 = vld [vmem:[%s166 + $0x5c] sm:$0xf]
      %v199 = vld [vmem:[%s166 + $0x60] sm:$0xf]
      %v200 = vld [vmem:[%s166 + $0x64] sm:$0xf]
      %v201 = vld [vmem:[%s166 + $0x68] sm:$0xf]
      %v202 = vld [vmem:[%s166 + $0x6c] sm:$0xf]
      %v203 = vld [vmem:[%s166 + $0x70] sm:$0xf]
      %v204 = vld [vmem:[%s166 + $0x74] sm:$0xf]
      %v205 = vld [vmem:[%s166 + $0x78] sm:$0xf]
      %v206 = vld [vmem:[%s166 + $0x7c] sm:$0xf]
      %v207 = vld [vmem:[%s166 + $0x80] sm:$0xf]
      %v208 = vld [vmem:[%s166 + $0x84] sm:$0xf]
      %v209 = vld [vmem:[%s166 + $0x88] sm:$0xf]
      %v210 = vld [vmem:[%s166 + $0x8c] sm:$0xf]
      %v211 = vld [vmem:[%s166 + $0x90] sm:$0xf]
      %v212 = vld [vmem:[%s166 + $0x94] sm:$0xf]
      %v213 = vld [vmem:[%s166 + $0x98] sm:$0xf]
      %v214 = vld [vmem:[%s166 + $0x9c] sm:$0xf]
      %v215 = vld [vmem:[%s166 + $0xa0] sm:$0xf]
      %v216 = vld [vmem:[%s166 + $0xa4] sm:$0xf]
      %v217 = vld [vmem:[%s166 + $0xa8] sm:$0xf]
      %v218 = vld [vmem:[%s166 + $0xac] sm:$0xf]
      %v219 = vld [vmem:[%s166 + $0xb0] sm:$0xf]
      %v220 = vld [vmem:[%s166 + $0xb4] sm:$0xf]
      %v221 = vld [vmem:[%s166 + $0xb8] sm:$0xf]
      %v222 = vld [vmem:[%s166 + $0xbc] sm:$0xf]
      %v223 = vld [vmem:[%s166 + $0xc0] sm:$0xf]
      %v224 = vld [vmem:[%s166 + $0xc4] sm:$0xf]
      %v225 = vld [vmem:[%s166 + $0xc8] sm:$0xf]
      %v226 = vld [vmem:[%s166 + $0xcc] sm:$0xf]
      %v227 = vld [vmem:[%s166 + $0xd0] sm:$0xf]
      %v228 = vld [vmem:[%s166 + $0xd4] sm:$0xf]
      %v229 = vld [vmem:[%s166 + $0xd8] sm:$0xf]
      %v230 = vld [vmem:[%s166 + $0xdc] sm:$0xf]
      %v231 = vld [vmem:[%s166 + $0xe0] sm:$0xf]
      %v232 = vld [vmem:[%s166 + $0xe4] sm:$0xf]
      %v233 = vld [vmem:[%s166 + $0xe8] sm:$0xf]
      %v234 = vld [vmem:[%s166 + $0xec] sm:$0xf]
      %v235 = vld [vmem:[%s166 + $0xf0] sm:$0xf]
      %v236 = vld [vmem:[%s166 + $0xf4] sm:$0xf]
      %v237 = vld [vmem:[%s166 + $0xf8] sm:$0xf]
      %v238 = vld [vmem:[%s166 + $0xfc] sm:$0xf]
      %v239 = vld [vmem:[%s1] sm:$0xf]
      %v240 = vld [vmem:[%s1 + $0x4] sm:$0xf]
      %v241 = vld [vmem:[%s1 + $0x8] sm:$0xf]
      %v242 = vld [vmem:[%s1 + $0xc] sm:$0xf]
      %v243 = vld [vmem:[%s1 + $0x10] sm:$0x3]
      %v244 = vld [vmem:[%s2] sm:$0x1]
      %v246 = vlaneseq
      %v247 = vshrl.u32 %v246, 7
      %v248 = vsub.s32 0, %v247
      %v249 = vrot.slane %v244, %v248
      %v315 = vunpack.c.l.b16 %v175
      %v316 = vunpack.c.l.b16 %v176
      %v317 = vunpack.c.l.b16 %v177
      %v318 = vunpack.c.l.b16 %v178
      %v319 = vunpack.c.l.b16 %v179
      %v320 = vunpack.c.l.b16 %v180
      %v321 = vunpack.c.l.b16 %v181
      %v322 = vunpack.c.l.b16 %v182
      %v323 = vunpack.c.l.b16 %v183
      %v324 = vunpack.c.l.b16 %v184
      %v325 = vunpack.c.l.b16 %v185
      %v326 = vunpack.c.l.b16 %v186
      %v327 = vunpack.c.l.b16 %v187
      %v328 = vunpack.c.l.b16 %v188
      %v329 = vunpack.c.l.b16 %v189
      %v330 = vunpack.c.l.b16 %v190
      %v331 = vunpack.c.l.b16 %v191
      %v332 = vunpack.c.l.b16 %v192
      %v333 = vunpack.c.l.b16 %v193
      %v334 = vunpack.c.l.b16 %v194
      %v335 = vunpack.c.l.b16 %v195
      %v336 = vunpack.c.l.b16 %v196
      %v337 = vunpack.c.l.b16 %v197
      %v338 = vunpack.c.l.b16 %v198
      %v339 = vunpack.c.l.b16 %v199
      %v340 = vunpack.c.l.b16 %v200
      %v341 = vunpack.c.l.b16 %v201
      %v342 = vunpack.c.l.b16 %v202
      %v343 = vunpack.c.l.b16 %v203
      %v344 = vunpack.c.l.b16 %v204
      %v345 = vunpack.c.l.b16 %v205
      %v346 = vunpack.c.l.b16 %v206
      %v347 = vunpack.c.l.b16 %v207
      %v348 = vunpack.c.l.b16 %v208
      %v349 = vunpack.c.l.b16 %v209
      %v350 = vunpack.c.l.b16 %v210
      %v351 = vunpack.c.l.b16 %v211
      %v352 = vunpack.c.l.b16 %v212
      %v353 = vunpack.c.l.b16 %v213
      %v354 = vunpack.c.l.b16 %v214
      %v355 = vunpack.c.l.b16 %v215
      %v356 = vunpack.c.l.b16 %v216
      %v357 = vunpack.c.l.b16 %v217
      %v358 = vunpack.c.l.b16 %v218
      %v359 = vunpack.c.l.b16 %v219
      %v360 = vunpack.c.l.b16 %v220
      %v361 = vunpack.c.l.b16 %v221
      %v362 = vunpack.c.l.b16 %v222
      %v363 = vunpack.c.l.b16 %v223
      %v364 = vunpack.c.l.b16 %v224
      %v365 = vunpack.c.l.b16 %v225
      %v366 = vunpack.c.l.b16 %v226
      %v367 = vunpack.c.l.b16 %v227
      %v368 = vunpack.c.l.b16 %v228
      %v369 = vunpack.c.l.b16 %v229
      %v370 = vunpack.c.l.b16 %v230
      %v371 = vunpack.c.l.b16 %v231
      %v372 = vunpack.c.l.b16 %v232
      %v373 = vunpack.c.l.b16 %v233
      %v374 = vunpack.c.l.b16 %v234
      %v375 = vunpack.c.l.b16 %v235
      %v376 = vunpack.c.l.b16 %v236
      %v377 = vunpack.c.l.b16 %v237
      %v378 = vunpack.c.l.b16 %v238
      %v379 = vpack.c.b16 %v316, %v315
      %v380 = vpack.c.b16 %v318, %v317
      %v381 = vpack.c.b16 %v320, %v319
      %v382 = vpack.c.b16 %v322, %v321
      %v383 = vpack.c.b16 %v324, %v323
      %v384 = vpack.c.b16 %v326, %v325
      %v385 = vpack.c.b16 %v328, %v327
      %v386 = vpack.c.b16 %v330, %v329
      %v387 = vpack.c.b16 %v332, %v331
      %v388 = vpack.c.b16 %v334, %v333
      %v389 = vpack.c.b16 %v336, %v335
      %v390 = vpack.c.b16 %v338, %v337
      %v391 = vpack.c.b16 %v340, %v339
      %v392 = vpack.c.b16 %v342, %v341
      %v393 = vpack.c.b16 %v344, %v343
      %v394 = vpack.c.b16 %v346, %v345
      %v395 = vpack.c.b16 %v348, %v347
      %v396 = vpack.c.b16 %v350, %v349
      %v397 = vpack.c.b16 %v352, %v351
      %v398 = vpack.c.b16 %v354, %v353
      %v399 = vpack.c.b16 %v356, %v355
      %v400 = vpack.c.b16 %v358, %v357
      %v401 = vpack.c.b16 %v360, %v359
      %v402 = vpack.c.b16 %v362, %v361
      %v403 = vpack.c.b16 %v364, %v363
      %v404 = vpack.c.b16 %v366, %v365
      %v405 = vpack.c.b16 %v368, %v367
      %v406 = vpack.c.b16 %v370, %v369
      %v407 = vpack.c.b16 %v372, %v371
      %v408 = vpack.c.b16 %v374, %v373
      %v409 = vpack.c.b16 %v376, %v375
      %v410 = vpack.c.b16 %v378, %v377
      %v416 = vunpack.c.l.b16 %v239
      %v417 = vunpack.c.l.b16 %v240
      %v418 = vunpack.c.l.b16 %v241
      %v419 = vunpack.c.l.b16 %v242
      %v420 = vunpack.c.l.b16 %v243
      %v421 = vpack.c.b16 %v417, %v416
      %v422 = vpack.c.b16 %v419, %v418
      %v423 = vpack.c.b16 %v420, %v420
      %vm426 = vcmask 293888
      %v428 = vsel %vm426, %v379, 0
      %v431 = vsel %vm426, %v380, 0
      %v434 = vsel %vm426, %v381, 0
      %v437 = vsel %vm426, %v382, 0
      %v440 = vsel %vm426, %v383, 0
      %v443 = vsel %vm426, %v384, 0
      %v446 = vsel %vm426, %v385, 0
      %v449 = vsel %vm426, %v386, 0
      %v452 = vsel %vm426, %v387, 0
      %v455 = vsel %vm426, %v388, 0
      %v458 = vsel %vm426, %v389, 0
      %v461 = vsel %vm426, %v390, 0
      %v464 = vsel %vm426, %v391, 0
      %v467 = vsel %vm426, %v392, 0
      %v470 = vsel %vm426, %v393, 0
      %v473 = vsel %vm426, %v394, 0
      %v476 = vsel %vm426, %v395, 0
      %v479 = vsel %vm426, %v396, 0
      %v482 = vsel %vm426, %v397, 0
      %v485 = vsel %vm426, %v398, 0
      %v488 = vsel %vm426, %v399, 0
      %v491 = vsel %vm426, %v400, 0
      %v494 = vsel %vm426, %v401, 0
      %v497 = vsel %vm426, %v402, 0
      %v500 = vsel %vm426, %v403, 0
      %v503 = vsel %vm426, %v404, 0
      %v506 = vsel %vm426, %v405, 0
      %v509 = vsel %vm426, %v406, 0
      %v512 = vsel %vm426, %v407, 0
      %v515 = vsel %vm426, %v408, 0
      %v518 = vsel %vm426, %v409, 0
      %v521 = vsel %vm426, %v410, 0
      %vm523 = vcmask 1041408
      %v525 = vsel %vm523, %v423, 0
      %527 = vmatprep.subr.bf16.mxu0 0
      %528 = vmatpush1.bf16.msra.mxu0 %v421
      %529 = vmatprep.subr.bf16.mxu0 0
      %530 = vmatpush1.bf16.msra.mxu0 %v422
      %531 = vmatprep.subr.bf16.mxu0 0
      %532 = vmatpush1.bf16.msra.mxu0 %v525
      %533 = vmatprep.subr.bf16.mxu0 0
      %534 = vmatpush1.bf16.msra.mxu0 0
      %535 = vmatprep.subr.bf16.mxu0 0
      %536 = vmatpush1.bf16.msra.mxu0 0
      %537 = vmatprep.subr.bf16.mxu0 0
      %538 = vmatpush1.bf16.msra.mxu0 0
      %539 = vmatprep.subr.bf16.mxu0 0
      %540 = vmatpush1.bf16.msra.mxu0 0
      %541 = vmatprep.subr.bf16.mxu0 0
      %542 = vmatpush1.bf16.msra.mxu0 0
      %543 = vmatprep.subr.bf16.mxu0 0
      %544 = vmatpush1.bf16.msra.mxu0 0
      %545 = vmatprep.subr.bf16.mxu0 0
      %546 = vmatpush1.bf16.msra.mxu0 0
      %547 = vmatprep.subr.bf16.mxu0 0
      %548 = vmatpush1.bf16.msra.mxu0 0
      %549 = vmatprep.subr.bf16.mxu0 0
      %550 = vmatpush1.bf16.msra.mxu0 0
      %551 = vmatprep.subr.bf16.mxu0 0
      %552 = vmatpush1.bf16.msra.mxu0 0
      %553 = vmatprep.subr.bf16.mxu0 0
      %554 = vmatpush1.bf16.msra.mxu0 0
      %555 = vmatprep.subr.bf16.mxu0 0
      %556 = vmatpush1.bf16.msra.mxu0 0
      %557 = vmatprep.subr.bf16.mxu0 0
      %558 = vmatpush1.bf16.msra.mxu0 0
      %559 = vmatprep.mubr.bf16.mxu0 0
      %560 = vmatmul.mubr.bf16.gmra.mrb[0].mxu0 %v428
      %v561 = vpop.f32.mrb[0].mxu0
      %v562 = vadd.f32 %v249, %v561
      %v563 = vpop.f32.mrb[0].mxu0
      %v564 = vpop.f32.mrb[0].mxu0
      %v565 = vadd.f32 %v249, %v564
      %v566 = vpop.f32.mrb[0].mxu0
      %567 = vmatprep.mubr.bf16.mxu0 0
      %568 = vmatmul.mubr.bf16.gmra.mrb[0].mxu0 %v431
      %v569 = vpop.f32.mrb[0].mxu0
      %v570 = vadd.f32 %v249, %v569
      %v571 = vpop.f32.mrb[0].mxu0
      %v572 = vpop.f32.mrb[0].mxu0
      %v573 = vadd.f32 %v249, %v572
      %v574 = vpop.f32.mrb[0].mxu0
      %575 = vmatprep.mubr.bf16.mxu0 0
      %576 = vmatmul.mubr.bf16.gmra.mrb[0].mxu0 %v434
      %v577 = vpop.f32.mrb[0].mxu0
      %v578 = vadd.f32 %v249, %v577
      %v579 = vpop.f32.mrb[0].mxu0
      %v580 = vpop.f32.mrb[0].mxu0
      %v581 = vadd.f32 %v249, %v580
      %v582 = vpop.f32.mrb[0].mxu0
      %583 = vmatprep.mubr.bf16.mxu0 0
      %584 = vmatmul.mubr.bf16.gmra.mrb[0].mxu0 %v437
      %v585 = vpop.f32.mrb[0].mxu0
      %v586 = vadd.f32 %v249, %v585
      %v587 = vpop.f32.mrb[0].mxu0
      %v588 = vpop.f32.mrb[0].mxu0
      %v589 = vadd.f32 %v249, %v588
      %v590 = vpop.f32.mrb[0].mxu0
      %591 = vmatprep.mubr.bf16.mxu0 0
      %592 = vmatmul.mubr.bf16.gmra.mrb[0].mxu0 %v440
      %v593 = vpop.f32.mrb[0].mxu0
      %v594 = vadd.f32 %v249, %v593
      %v595 = vpop.f32.mrb[0].mxu0
      %v596 = vpop.f32.mrb[0].mxu0
      %v597 = vadd.f32 %v249, %v596
      %v598 = vpop.f32.mrb[0].mxu0
      %599 = vmatprep.mubr.bf16.mxu0 0
      %600 = vmatmul.mubr.bf16.gmra.mrb[0].mxu0 %v443
      %v601 = vpop.f32.mrb[0].mxu0
      %v602 = vadd.f32 %v249, %v601
      %v603 = vpop.f32.mrb[0].mxu0
      %v604 = vpop.f32.mrb[0].mxu0
      %v605 = vadd.f32 %v249, %v604
      %v606 = vpop.f32.mrb[0].mxu0
      %607 = vmatprep.mubr.bf16.mxu0 0
      %608 = vmatmul.mubr.bf16.gmra.mrb[0].mxu0 %v446
      %v609 = vpop.f32.mrb[0].mxu0
      %v610 = vadd.f32 %v249, %v609
      %v611 = vpop.f32.mrb[0].mxu0
      %v612 = vpop.f32.mrb[0].mxu0
      %v613 = vadd.f32 %v249, %v612
      %v614 = vpop.f32.mrb[0].mxu0
      %615 = vmatprep.mubr.bf16.mxu0 0
      %616 = vmatmul.mubr.bf16.gmra.mrb[0].mxu0 %v449
      %v617 = vpop.f32.mrb[0].mxu0
      %v618 = vadd.f32 %v249, %v617
      %v619 = vpop.f32.mrb[0].mxu0
      %v620 = vpop.f32.mrb[0].mxu0
      %v621 = vadd.f32 %v249, %v620
      %v622 = vpop.f32.mrb[0].mxu0
      %623 = vmatprep.mubr.bf16.mxu0 0
      %624 = vmatmul.mubr.bf16.gmra.mrb[0].mxu0 %v452
      %v625 = vpop.f32.mrb[0].mxu0
      %v626 = vadd.f32 %v249, %v625
      %v627 = vpop.f32.mrb[0].mxu0
      %v628 = vpop.f32.mrb[0].mxu0
      %v629 = vadd.f32 %v249, %v628
      %v630 = vpop.f32.mrb[0].mxu0
      %631 = vmatprep.mubr.bf16.mxu0 0
      %632 = vmatmul.mubr.bf16.gmra.mrb[0].mxu0 %v455
      %v633 = vpop.f32.mrb[0].mxu0
      %v634 = vadd.f32 %v249, %v633
      %v635 = vpop.f32.mrb[0].mxu0
      %v636 = vpop.f32.mrb[0].mxu0
      %v637 = vadd.f32 %v249, %v636
      %v638 = vpop.f32.mrb[0].mxu0
      %639 = vmatprep.mubr.bf16.mxu0 0
      %640 = vmatmul.mubr.bf16.gmra.mrb[0].mxu0 %v458
      %v641 = vpop.f32.mrb[0].mxu0
      %v642 = vadd.f32 %v249, %v641
      %v643 = vpop.f32.mrb[0].mxu0
      %v644 = vpop.f32.mrb[0].mxu0
      %v645 = vadd.f32 %v249, %v644
      %v646 = vpop.f32.mrb[0].mxu0
      %647 = vmatprep.mubr.bf16.mxu0 0
      %648 = vmatmul.mubr.bf16.gmra.mrb[0].mxu0 %v461
      %v649 = vpop.f32.mrb[0].mxu0
      %v650 = vadd.f32 %v249, %v649
      %v651 = vpop.f32.mrb[0].mxu0
      %v652 = vpop.f32.mrb[0].mxu0
      %v653 = vadd.f32 %v249, %v652
      %v654 = vpop.f32.mrb[0].mxu0
      %655 = vmatprep.mubr.bf16.mxu0 0
      %656 = vmatmul.mubr.bf16.gmra.mrb[0].mxu0 %v464
      %v657 = vpop.f32.mrb[0].mxu0
      %v658 = vadd.f32 %v249, %v657
      %v659 = vpop.f32.mrb[0].mxu0
      %v660 = vpop.f32.mrb[0].mxu0
      %v661 = vadd.f32 %v249, %v660
      %v662 = vpop.f32.mrb[0].mxu0
      %663 = vmatprep.mubr.bf16.mxu0 0
      %664 = vmatmul.mubr.bf16.gmra.mrb[0].mxu0 %v467
      %v665 = vpop.f32.mrb[0].mxu0
      %v666 = vadd.f32 %v249, %v665
      %v667 = vpop.f32.mrb[0].mxu0
      %v668 = vpop.f32.mrb[0].mxu0
      %v669 = vadd.f32 %v249, %v668
      %v670 = vpop.f32.mrb[0].mxu0
      %671 = vmatprep.mubr.bf16.mxu0 0
      %672 = vmatmul.mubr.bf16.gmra.mrb[0].mxu0 %v470
      %v673 = vpop.f32.mrb[0].mxu0
      %v674 = vadd.f32 %v249, %v673
      %v675 = vpop.f32.mrb[0].mxu0
      %v676 = vpop.f32.mrb[0].mxu0
      %v677 = vadd.f32 %v249, %v676
      %v678 = vpop.f32.mrb[0].mxu0
      %679 = vmatprep.mubr.bf16.mxu0 0
      %680 = vmatmul.mubr.bf16.gmra.mrb[0].mxu0 %v473
      %v681 = vpop.f32.mrb[0].mxu0
      %v682 = vadd.f32 %v249, %v681
      %v683 = vpop.f32.mrb[0].mxu0
      %v684 = vpop.f32.mrb[0].mxu0
      %v685 = vadd.f32 %v249, %v684
      %v686 = vpop.f32.mrb[0].mxu0
      %687 = vmatprep.mubr.bf16.mxu0 0
      %688 = vmatmul.mubr.bf16.gmra.mrb[0].mxu0 %v476
      %v689 = vpop.f32.mrb[0].mxu0
      %v690 = vadd.f32 %v249, %v689
      %v691 = vpop.f32.mrb[0].mxu0
      %v692 = vpop.f32.mrb[0].mxu0
      %v693 = vadd.f32 %v249, %v692
      %v694 = vpop.f32.mrb[0].mxu0
      %695 = vmatprep.mubr.bf16.mxu0 0
      %696 = vmatmul.mubr.bf16.gmra.mrb[0].mxu0 %v479
      %v697 = vpop.f32.mrb[0].mxu0
      %v698 = vadd.f32 %v249, %v697
      %v699 = vpop.f32.mrb[0].mxu0
      %v700 = vpop.f32.mrb[0].mxu0
      %v701 = vadd.f32 %v249, %v700
      %v702 = vpop.f32.mrb[0].mxu0
      %703 = vmatprep.mubr.bf16.mxu0 0
      %704 = vmatmul.mubr.bf16.gmra.mrb[0].mxu0 %v482
      %v705 = vpop.f32.mrb[0].mxu0
      %v706 = vadd.f32 %v249, %v705
      %v707 = vpop.f32.mrb[0].mxu0
      %v708 = vpop.f32.mrb[0].mxu0
      %v709 = vadd.f32 %v249, %v708
      %v710 = vpop.f32.mrb[0].mxu0
      %711 = vmatprep.mubr.bf16.mxu0 0
      %712 = vmatmul.mubr.bf16.gmra.mrb[0].mxu0 %v485
      %v713 = vpop.f32.mrb[0].mxu0
      %v714 = vadd.f32 %v249, %v713
      %v715 = vpop.f32.mrb[0].mxu0
      %v716 = vpop.f32.mrb[0].mxu0
      %v717 = vadd.f32 %v249, %v716
      %v718 = vpop.f32.mrb[0].mxu0
      %719 = vmatprep.mubr.bf16.mxu0 0
      %720 = vmatmul.mubr.bf16.gmra.mrb[0].mxu0 %v488
      %v721 = vpop.f32.mrb[0].mxu0
      %v722 = vadd.f32 %v249, %v721
      %v723 = vpop.f32.mrb[0].mxu0
      %v724 = vpop.f32.mrb[0].mxu0
      %v725 = vadd.f32 %v249, %v724
      %v726 = vpop.f32.mrb[0].mxu0
      %727 = vmatprep.mubr.bf16.mxu0 0
      %728 = vmatmul.mubr.bf16.gmra.mrb[0].mxu0 %v491
      %v729 = vpop.f32.mrb[0].mxu0
      %v730 = vadd.f32 %v249, %v729
      %v731 = vpop.f32.mrb[0].mxu0
      %v732 = vpop.f32.mrb[0].mxu0
      %v733 = vadd.f32 %v249, %v732
      %v734 = vpop.f32.mrb[0].mxu0
      %735 = vmatprep.mubr.bf16.mxu0 0
      %736 = vmatmul.mubr.bf16.gmra.mrb[0].mxu0 %v494
      %v737 = vpop.f32.mrb[0].mxu0
      %v738 = vadd.f32 %v249, %v737
      %v739 = vpop.f32.mrb[0].mxu0
      %v740 = vpop.f32.mrb[0].mxu0
      %v741 = vadd.f32 %v249, %v740
      %v742 = vpop.f32.mrb[0].mxu0
      %743 = vmatprep.mubr.bf16.mxu0 0
      %744 = vmatmul.mubr.bf16.gmra.mrb[0].mxu0 %v497
      %v745 = vpop.f32.mrb[0].mxu0
      %v746 = vadd.f32 %v249, %v745
      %v747 = vpop.f32.mrb[0].mxu0
      %v748 = vpop.f32.mrb[0].mxu0
      %v749 = vadd.f32 %v249, %v748
      %v750 = vpop.f32.mrb[0].mxu0
      %751 = vmatprep.mubr.bf16.mxu0 0
      %752 = vmatmul.mubr.bf16.gmra.mrb[0].mxu0 %v500
      %v753 = vpop.f32.mrb[0].mxu0
      %v754 = vadd.f32 %v249, %v753
      %v755 = vpop.f32.mrb[0].mxu0
      %v756 = vpop.f32.mrb[0].mxu0
      %v757 = vadd.f32 %v249, %v756
      %v758 = vpop.f32.mrb[0].mxu0
      %759 = vmatprep.mubr.bf16.mxu0 0
      %760 = vmatmul.mubr.bf16.gmra.mrb[0].mxu0 %v503
      %v761 = vpop.f32.mrb[0].mxu0
      %v762 = vadd.f32 %v249, %v761
      %v763 = vpop.f32.mrb[0].mxu0
      %v764 = vpop.f32.mrb[0].mxu0
      %v765 = vadd.f32 %v249, %v764
      %v766 = vpop.f32.mrb[0].mxu0
      %767 = vmatprep.mubr.bf16.mxu0 0
      %768 = vmatmul.mubr.bf16.gmra.mrb[0].mxu0 %v506
      %v769 = vpop.f32.mrb[0].mxu0
      %v770 = vadd.f32 %v249, %v769
      %v771 = vpop.f32.mrb[0].mxu0
      %v772 = vpop.f32.mrb[0].mxu0
      %v773 = vadd.f32 %v249, %v772
      %v774 = vpop.f32.mrb[0].mxu0
      %775 = vmatprep.mubr.bf16.mxu0 0
      %776 = vmatmul.mubr.bf16.gmra.mrb[0].mxu0 %v509
      %v777 = vpop.f32.mrb[0].mxu0
      %v778 = vadd.f32 %v249, %v777
      %v779 = vpop.f32.mrb[0].mxu0
      %v780 = vpop.f32.mrb[0].mxu0
      %v781 = vadd.f32 %v249, %v780
      %v782 = vpop.f32.mrb[0].mxu0
      %783 = vmatprep.mubr.bf16.mxu0 0
      %784 = vmatmul.mubr.bf16.gmra.mrb[0].mxu0 %v512
      %v785 = vpop.f32.mrb[0].mxu0
      %v786 = vadd.f32 %v249, %v785
      %v787 = vpop.f32.mrb[0].mxu0
      %v788 = vpop.f32.mrb[0].mxu0
      %v789 = vadd.f32 %v249, %v788
      %v790 = vpop.f32.mrb[0].mxu0
      %791 = vmatprep.mubr.bf16.mxu0 0
      %792 = vmatmul.mubr.bf16.gmra.mrb[0].mxu0 %v515
      %v793 = vpop.f32.mrb[0].mxu0
      %v794 = vadd.f32 %v249, %v793
      %v795 = vpop.f32.mrb[0].mxu0
      %v796 = vpop.f32.mrb[0].mxu0
      %v797 = vadd.f32 %v249, %v796
      %v798 = vpop.f32.mrb[0].mxu0
      %799 = vmatprep.mubr.bf16.mxu0 0
      %800 = vmatmul.mubr.bf16.gmra.mrb[0].mxu0 %v518
      %v801 = vpop.f32.mrb[0].mxu0
      %v802 = vadd.f32 %v249, %v801
      %v803 = vpop.f32.mrb[0].mxu0
      %v804 = vpop.f32.mrb[0].mxu0
      %v805 = vadd.f32 %v249, %v804
      %v806 = vpop.f32.mrb[0].mxu0
      %807 = vmatprep.mubr.bf16.mxu0 0
      %808 = vmatmul.mubr.bf16.gmra.mrb[0].mxu0 %v521
      %v809 = vpop.f32.mrb[0].mxu0
      %v810 = vadd.f32 %v249, %v809
      %v811 = vpop.f32.mrb[0].mxu0
      %v812 = vpop.f32.mrb[0].mxu0
      %v813 = vadd.f32 %v249, %v812
      %v814 = vpop.f32.mrb[0].mxu0
      %815 = vdwg.mxu0
      %v816 = vmax.f32 %v562, 0.0
      %v817 = vmax.f32 %v565, 0.0
      %v818 = vmax.f32 %v570, 0.0
      %v819 = vmax.f32 %v573, 0.0
      %v820 = vmax.f32 %v578, 0.0
      %v821 = vmax.f32 %v581, 0.0
      %v822 = vmax.f32 %v586, 0.0
      %v823 = vmax.f32 %v589, 0.0
      %v824 = vmax.f32 %v594, 0.0
      %v825 = vmax.f32 %v597, 0.0
      %v826 = vmax.f32 %v602, 0.0
      %v827 = vmax.f32 %v605, 0.0
      %v828 = vmax.f32 %v610, 0.0
      %v829 = vmax.f32 %v613, 0.0
      %v830 = vmax.f32 %v618, 0.0
      %v831 = vmax.f32 %v621, 0.0
      %v832 = vmax.f32 %v626, 0.0
      %v833 = vmax.f32 %v629, 0.0
      %v834 = vmax.f32 %v634, 0.0
      %v835 = vmax.f32 %v637, 0.0
      %v836 = vmax.f32 %v642, 0.0
      %v837 = vmax.f32 %v645, 0.0
      %v838 = vmax.f32 %v650, 0.0
      %v839 = vmax.f32 %v653, 0.0
      %v840 = vmax.f32 %v658, 0.0
      %v841 = vmax.f32 %v661, 0.0
      %v842 = vmax.f32 %v666, 0.0
      %v843 = vmax.f32 %v669, 0.0
      %v844 = vmax.f32 %v674, 0.0
      %v845 = vmax.f32 %v677, 0.0
      %v846 = vmax.f32 %v682, 0.0
      %v847 = vmax.f32 %v685, 0.0
      %v848 = vmax.f32 %v690, 0.0
      %v849 = vmax.f32 %v693, 0.0
      %v850 = vmax.f32 %v698, 0.0
      %v851 = vmax.f32 %v701, 0.0
      %v852 = vmax.f32 %v706, 0.0
      %v853 = vmax.f32 %v709, 0.0
      %v854 = vmax.f32 %v714, 0.0
      %v855 = vmax.f32 %v717, 0.0
      %v856 = vmax.f32 %v722, 0.0
      %v857 = vmax.f32 %v725, 0.0
      %v858 = vmax.f32 %v730, 0.0
      %v859 = vmax.f32 %v733, 0.0
      %v860 = vmax.f32 %v738, 0.0
      %v861 = vmax.f32 %v741, 0.0
      %v862 = vmax.f32 %v746, 0.0
      %v863 = vmax.f32 %v749, 0.0
      %v864 = vmax.f32 %v754, 0.0
      %v865 = vmax.f32 %v757, 0.0
      %v866 = vmax.f32 %v762, 0.0
      %v867 = vmax.f32 %v765, 0.0
      %v868 = vmax.f32 %v770, 0.0
      %v869 = vmax.f32 %v773, 0.0
      %v870 = vmax.f32 %v778, 0.0
      %v871 = vmax.f32 %v781, 0.0
      %v872 = vmax.f32 %v786, 0.0
      %v873 = vmax.f32 %v789, 0.0
      %v874 = vmax.f32 %v794, 0.0
      %v875 = vmax.f32 %v797, 0.0
      %v876 = vmax.f32 %v802, 0.0
      %v877 = vmax.f32 %v805, 0.0
      %v878 = vmax.f32 %v810, 0.0
      %v879 = vmax.f32 %v813, 0.0
      %vm880 = vcmask 130048
      %881 = vst.msk [vmem:[%s172] sm:$0xff] %vm880, %v816
      %882 = vst.msk [vmem:[%s172 + $0x8] sm:$0xff] %vm880, %v817
      %883 = vst.msk [vmem:[%s172 + $0x10] sm:$0xff] %vm880, %v818
      %884 = vst.msk [vmem:[%s172 + $0x18] sm:$0xff] %vm880, %v819
      %885 = vst.msk [vmem:[%s172 + $0x20] sm:$0xff] %vm880, %v820
      %886 = vst.msk [vmem:[%s172 + $0x28] sm:$0xff] %vm880, %v821
      %887 = vst.msk [vmem:[%s172 + $0x30] sm:$0xff] %vm880, %v822
      %888 = vst.msk [vmem:[%s172 + $0x38] sm:$0xff] %vm880, %v823
      %889 = vst.msk [vmem:[%s172 + $0x40] sm:$0xff] %vm880, %v824
      %890 = vst.msk [vmem:[%s172 + $0x48] sm:$0xff] %vm880, %v825
      %891 = vst.msk [vmem:[%s172 + $0x50] sm:$0xff] %vm880, %v826
      %892 = vst.msk [vmem:[%s172 + $0x58] sm:$0xff] %vm880, %v827
      %893 = vst.msk [vmem:[%s172 + $0x60] sm:$0xff] %vm880, %v828
      %894 = vst.msk [vmem:[%s172 + $0x68] sm:$0xff] %vm880, %v829
      %895 = vst.msk [vmem:[%s172 + $0x70] sm:$0xff] %vm880, %v830
      %896 = vst.msk [vmem:[%s172 + $0x78] sm:$0xff] %vm880, %v831
      %897 = vst.msk [vmem:[%s172 + $0x80] sm:$0xff] %vm880, %v832
      %898 = vst.msk [vmem:[%s172 + $0x88] sm:$0xff] %vm880, %v833
      %899 = vst.msk [vmem:[%s172 + $0x90] sm:$0xff] %vm880, %v834
      %900 = vst.msk [vmem:[%s172 + $0x98] sm:$0xff] %vm880, %v835
      %901 = vst.msk [vmem:[%s172 + $0xa0] sm:$0xff] %vm880, %v836
      %902 = vst.msk [vmem:[%s172 + $0xa8] sm:$0xff] %vm880, %v837
      %903 = vst.msk [vmem:[%s172 + $0xb0] sm:$0xff] %vm880, %v838
      %904 = vst.msk [vmem:[%s172 + $0xb8] sm:$0xff] %vm880, %v839
      %905 = vst.msk [vmem:[%s172 + $0xc0] sm:$0xff] %vm880, %v840
      %906 = vst.msk [vmem:[%s172 + $0xc8] sm:$0xff] %vm880, %v841
      %907 = vst.msk [vmem:[%s172 + $0xd0] sm:$0xff] %vm880, %v842
      %908 = vst.msk [vmem:[%s172 + $0xd8] sm:$0xff] %vm880, %v843
      %909 = vst.msk [vmem:[%s172 + $0xe0] sm:$0xff] %vm880, %v844
      %910 = vst.msk [vmem:[%s172 + $0xe8] sm:$0xff] %vm880, %v845
      %911 = vst.msk [vmem:[%s172 + $0xf0] sm:$0xff] %vm880, %v846
      %912 = vst.msk [vmem:[%s172 + $0xf8] sm:$0xff] %vm880, %v847
      %913 = vst.msk [vmem:[%s172 + $0x100] sm:$0xff] %vm880, %v848
      %914 = vst.msk [vmem:[%s172 + $0x108] sm:$0xff] %vm880, %v849
      %915 = vst.msk [vmem:[%s172 + $0x110] sm:$0xff] %vm880, %v850
      %916 = vst.msk [vmem:[%s172 + $0x118] sm:$0xff] %vm880, %v851
      %917 = vst.msk [vmem:[%s172 + $0x120] sm:$0xff] %vm880, %v852
      %918 = vst.msk [vmem:[%s172 + $0x128] sm:$0xff] %vm880, %v853
      %919 = vst.msk [vmem:[%s172 + $0x130] sm:$0xff] %vm880, %v854
      %920 = vst.msk [vmem:[%s172 + $0x138] sm:$0xff] %vm880, %v855
      %921 = vst.msk [vmem:[%s172 + $0x140] sm:$0xff] %vm880, %v856
      %922 = vst.msk [vmem:[%s172 + $0x148] sm:$0xff] %vm880, %v857
      %923 = vst.msk [vmem:[%s172 + $0x150] sm:$0xff] %vm880, %v858
      %924 = vst.msk [vmem:[%s172 + $0x158] sm:$0xff] %vm880, %v859
      %925 = vst.msk [vmem:[%s172 + $0x160] sm:$0xff] %vm880, %v860
      %926 = vst.msk [vmem:[%s172 + $0x168] sm:$0xff] %vm880, %v861
      %927 = vst.msk [vmem:[%s172 + $0x170] sm:$0xff] %vm880, %v862
      %928 = vst.msk [vmem:[%s172 + $0x178] sm:$0xff] %vm880, %v863
      %929 = vst.msk [vmem:[%s172 + $0x180] sm:$0xff] %vm880, %v864
      %930 = vst.msk [vmem:[%s172 + $0x188] sm:$0xff] %vm880, %v865
      %931 = vst.msk [vmem:[%s172 + $0x190] sm:$0xff] %vm880, %v866
      %932 = vst.msk [vmem:[%s172 + $0x198] sm:$0xff] %vm880, %v867
      %933 = vst.msk [vmem:[%s172 + $0x1a0] sm:$0xff] %vm880, %v868
      %934 = vst.msk [vmem:[%s172 + $0x1a8] sm:$0xff] %vm880, %v869
      %935 = vst.msk [vmem:[%s172 + $0x1b0] sm:$0xff] %vm880, %v870
      %936 = vst.msk [vmem:[%s172 + $0x1b8] sm:$0xff] %vm880, %v871
      %937 = vst.msk [vmem:[%s172 + $0x1c0] sm:$0xff] %vm880, %v872
      %938 = vst.msk [vmem:[%s172 + $0x1c8] sm:$0xff] %vm880, %v873
      %939 = vst.msk [vmem:[%s172 + $0x1d0] sm:$0xff] %vm880, %v874
      %940 = vst.msk [vmem:[%s172 + $0x1d8] sm:$0xff] %vm880, %v875
      %941 = vst.msk [vmem:[%s172 + $0x1e0] sm:$0xff] %vm880, %v876
      %942 = vst.msk [vmem:[%s172 + $0x1e8] sm:$0xff] %vm880, %v877
      %943 = vst.msk [vmem:[%s172 + $0x1f0] sm:$0xff] %vm880, %v878
      %944 = vst.msk [vmem:[%s172 + $0x1f8] sm:$0xff] %vm880, %v879
      %s945 = smul.u32 64, %s14
      %p946 = scmp.lt.s32.totalorder %s945, 127
      %s947 = scalar_select %p946, %s945, 127
      %s948 = smul.addr %s947, 8
      %s949 = scalar_lea.vmem %s3, %s948
      // Predicated region
      $region33: #{jvp__.12} parent=31 // pred_check
        %p950 = pneg %p100
      $region34: #{jvp__.12} parent=31 // pred_check_branch
        %952 = sbr.rel (%p950) target = $region36
      $region35: #{jvp__.12} parent=31 // pred_region
        %s953 = smul.u32 64, %s14
      $region36: #{jvp__.12} parent=31 // pred_fallthru
        _
    $region32: #{jvp__.12} parent=5 // pred_fallthru
      _
    %p954 = scmp.le.s32.totalorder 2, %s9
    // Predicated region
    $region37: #{jvp__.12} parent=5 // pred_check
      %p955 = pneg %p954
    $region38: #{jvp__.12} parent=5 // pred_check_branch
      %957 = sbr.rel (%p955) target = $region40
    $region39: #{jvp__.12} parent=5 // pred_region
      %s958 = ssub.s32 %s9, 2
      // Predicated region
      $region41: #{jvp__.12} parent=39 // pred_check
        %p959 = pneg %p106
      $region42: #{jvp__.12} parent=39 // pred_check_branch
        %961 = sbr.rel (%p959) target = $region44
      $region43: #{jvp__.12} parent=39 // pred_region
        %s962 = smul.u32 64, %s15
        %p963 = scmp.lt.s32.totalorder %s962, 127
        %s964 = scalar_select %p963, %s962, 127
        %s965 = smul.addr %s964, 8
        %s966 = scalar_lea.vmem %s3, %s965
      $region44: #{jvp__.12} parent=39 // pred_fallthru
        _
    $region40: #{jvp__.12} parent=5 // pred_fallthru
      _
  $region6: #{jvp__.12} parent=0 // loop_footer
    %s13 = sadd.s32 1, %s9
  $region7: #{jvp__.12} parent=0 // loop_footer_branch
    %8 = sbr.rel target = $region3
  $region8: #{jvp__.12} parent=0 // loop_exit
    _

// kernel: jvp__.13
$region0: #{jvp__.13}
  #allocation0 [shape = 'u32[]', space=smem, size = 0x4, offset = 0x4, fixed_abs, tag = 'smem constant byte address 0x4 - core index']
  #allocation1 [shape = 'u32[144,128]{1,0:T(1,128)}', space=vmem, size = 0x12000, scoped, tag = 'internal scratch']
  %s0 = inlined_call_operand.vmem [shape: bf16[256,144], index: 0, kind: input, shape index: {}]
  %s1 = inlined_call_operand.vmem [shape: bf16[144,16], index: 1, kind: input, shape index: {}]
  %s2 = inlined_call_operand.vmem [shape: f32[1,16], index: 2, kind: input, shape index: {}]
  %s3 = inlined_call_operand.vmem [shape: f32[256,16], index: 3, kind: output, shape index: {}]
  %s4 = sld [smem:[#allocation0]]
  $region22: #{jvp__.13} parent=0
    _
  %s6 = ssub.s32 1, %s4
  %s7 = scalar_select 0, %s6, %s4
  // Predicated region
  $region2: #{jvp__.13} parent=0 // pred_check
    _
  $region3: #{jvp__.13} parent=0 // pred_check_branch
    %9 = sbr.rel (0) target = $region5
  $region4: #{jvp__.13} parent=0 // pred_region
    _
  $region5: #{jvp__.13} parent=0 // pred_fallthru
    _
  // Predicated region
  $region6: #{jvp__.13} parent=0 // pred_check
    _
  $region7: #{jvp__.13} parent=0 // pred_check_branch
    %11 = sbr.rel (0) target = $region9
  $region8: #{jvp__.13} parent=0 // pred_region
    _
  $region9: #{jvp__.13} parent=0 // pred_fallthru
    _
  // Predicated region
  $region10: #{jvp__.13} parent=0 // pred_check
    _
  $region11: #{jvp__.13} parent=0 // pred_check_branch
    %13 = sbr.rel (0) target = $region13
  $region12: #{jvp__.13} parent=0 // pred_region
    _
  $region13: #{jvp__.13} parent=0 // pred_fallthru
    _
  %v15 = vld [vmem:[%s0] sm:$0xff]
  %v16 = vld [vmem:[%s0 + $0x8] sm:$0xff]
  %v17 = vld [vmem:[%s0 + $0x10] sm:$0xff]
  %v18 = vld [vmem:[%s0 + $0x18] sm:$0xff]
  %v19 = vld [vmem:[%s0 + $0x20] sm:$0xff]
  %v20 = vld [vmem:[%s0 + $0x28] sm:$0xff]
  %v21 = vld [vmem:[%s0 + $0x30] sm:$0xff]
  %v22 = vld [vmem:[%s0 + $0x38] sm:$0xff]
  %v23 = vld [vmem:[%s0 + $0x40] sm:$0xff]
  %v24 = vld [vmem:[%s0 + $0x48] sm:$0xff]
  %v25 = vld [vmem:[%s0 + $0x50] sm:$0xff]
  %v26 = vld [vmem:[%s0 + $0x58] sm:$0xff]
  %v27 = vld [vmem:[%s0 + $0x60] sm:$0xff]
  %v28 = vld [vmem:[%s0 + $0x68] sm:$0xff]
  %v29 = vld [vmem:[%s0 + $0x70] sm:$0xff]
  %v30 = vld [vmem:[%s0 + $0x78] sm:$0xff]
  %v31 = vld [vmem:[%s0 + $0x80] sm:$0xff]
  %v32 = vld [vmem:[%s0 + $0x88] sm:$0xff]
  %v33 = vld [vmem:[%s0 + $0x90] sm:$0xff]
  %v34 = vld [vmem:[%s0 + $0x98] sm:$0xff]
  %v35 = vld [vmem:[%s0 + $0xa0] sm:$0xff]
  %v36 = vld [vmem:[%s0 + $0xa8] sm:$0xff]
  %v37 = vld [vmem:[%s0 + $0xb0] sm:$0xff]
  %v38 = vld [vmem:[%s0 + $0xb8] sm:$0xff]
  %v39 = vld [vmem:[%s0 + $0xc0] sm:$0xff]
  %v40 = vld [vmem:[%s0 + $0xc8] sm:$0xff]
  %v41 = vld [vmem:[%s0 + $0xd0] sm:$0xff]
  %v42 = vld [vmem:[%s0 + $0xd8] sm:$0xff]
  %v43 = vld [vmem:[%s0 + $0xe0] sm:$0xff]
  %v44 = vld [vmem:[%s0 + $0xe8] sm:$0xff]
  %v45 = vld [vmem:[%s0 + $0xf0] sm:$0xff]
  %v46 = vld [vmem:[%s0 + $0xf8] sm:$0xff]
  %v47 = vld [vmem:[%s1] sm:$0xf]
  %v48 = vld [vmem:[%s1 + $0x4] sm:$0xf]
  %v49 = vld [vmem:[%s1 + $0x8] sm:$0xf]
  %v50 = vld [vmem:[%s1 + $0xc] sm:$0xf]
  %v51 = vld [vmem:[%s1 + $0x10] sm:$0xf]
  %v52 = vld [vmem:[%s1 + $0x14] sm:$0xf]
  %v53 = vld [vmem:[%s1 + $0x18] sm:$0xf]
  %v54 = vld [vmem:[%s1 + $0x1c] sm:$0xf]
  %v55 = vld [vmem:[%s1 + $0x20] sm:$0xf]
  %v56 = vld [vmem:[%s1 + $0x24] sm:$0xf]
  %v57 = vld [vmem:[%s1 + $0x28] sm:$0xf]
  %v58 = vld [vmem:[%s1 + $0x2c] sm:$0xf]
  %v59 = vld [vmem:[%s1 + $0x30] sm:$0xf]
  %v60 = vld [vmem:[%s1 + $0x34] sm:$0xf]
  %v61 = vld [vmem:[%s1 + $0x38] sm:$0xf]
  %v62 = vld [vmem:[%s1 + $0x3c] sm:$0xf]
  %v63 = vld [vmem:[%s1 + $0x40] sm:$0xf]
  %v64 = vld [vmem:[%s1 + $0x44] sm:$0xf]
  %v65 = vld [vmem:[%s2] sm:$0x1]
  %v67 = vlaneseq
  %v68 = vshrl.u32 %v67, 7
  %v69 = vsub.s32 0, %v68
  %v70 = vrot.slane %v65, %v69
  %v104 = vunpack.c.l.b16 %v15
  %v105 = vunpack.c.h.b16 %v15
  %v106 = vunpack.c.l.b16 %v16
  %v107 = vunpack.c.h.b16 %v16
  %v108 = vunpack.c.l.b16 %v17
  %v109 = vunpack.c.h.b16 %v17
  %v110 = vunpack.c.l.b16 %v18
  %v111 = vunpack.c.h.b16 %v18
  %v112 = vunpack.c.l.b16 %v19
  %v113 = vunpack.c.h.b16 %v19
  %v114 = vunpack.c.l.b16 %v20
  %v115 = vunpack.c.h.b16 %v20
  %v116 = vunpack.c.l.b16 %v21
  %v117 = vunpack.c.h.b16 %v21
  %v118 = vunpack.c.l.b16 %v22
  %v119 = vunpack.c.h.b16 %v22
  %v120 = vunpack.c.l.b16 %v23
  %v121 = vunpack.c.h.b16 %v23
  %v122 = vunpack.c.l.b16 %v24
  %v123 = vunpack.c.h.b16 %v24
  %v124 = vunpack.c.l.b16 %v25
  %v125 = vunpack.c.h.b16 %v25
  %v126 = vunpack.c.l.b16 %v26
  %v127 = vunpack.c.h.b16 %v26
  %v128 = vunpack.c.l.b16 %v27
  %v129 = vunpack.c.h.b16 %v27
  %v130 = vunpack.c.l.b16 %v28
  %v131 = vunpack.c.h.b16 %v28
  %v132 = vunpack.c.l.b16 %v29
  %v133 = vunpack.c.h.b16 %v29
  %v134 = vunpack.c.l.b16 %v30
  %v135 = vunpack.c.h.b16 %v30
  %v136 = vunpack.c.l.b16 %v31
  %v137 = vunpack.c.h.b16 %v31
  %v138 = vunpack.c.l.b16 %v32
  %v139 = vunpack.c.h.b16 %v32
  %v140 = vunpack.c.l.b16 %v33
  %v141 = vunpack.c.h.b16 %v33
  %v142 = vunpack.c.l.b16 %v34
  %v143 = vunpack.c.h.b16 %v34
  %v144 = vunpack.c.l.b16 %v35
  %v145 = vunpack.c.h.b16 %v35
  %v146 = vunpack.c.l.b16 %v36
  %v147 = vunpack.c.h.b16 %v36
  %v148 = vunpack.c.l.b16 %v37
  %v149 = vunpack.c.h.b16 %v37
  %v150 = vunpack.c.l.b16 %v38
  %v151 = vunpack.c.h.b16 %v38
  %v152 = vunpack.c.l.b16 %v39
  %v153 = vunpack.c.h.b16 %v39
  %v154 = vunpack.c.l.b16 %v40
  %v155 = vunpack.c.h.b16 %v40
  %v156 = vunpack.c.l.b16 %v41
  %v157 = vunpack.c.h.b16 %v41
  %v158 = vunpack.c.l.b16 %v42
  %v159 = vunpack.c.h.b16 %v42
  %v160 = vunpack.c.l.b16 %v43
  %v161 = vunpack.c.h.b16 %v43
  %v162 = vunpack.c.l.b16 %v44
  %v163 = vunpack.c.h.b16 %v44
  %v164 = vunpack.c.l.b16 %v45
  %v165 = vunpack.c.h.b16 %v45
  %v166 = vunpack.c.l.b16 %v46
  %v167 = vunpack.c.h.b16 %v46
  %v168 = vpack.c.b16 %v106, %v104
  %v169 = vpack.c.b16 %v107, %v105
  %v170 = vpack.c.b16 %v110, %v108
  %v171 = vpack.c.b16 %v111, %v109
  %v172 = vpack.c.b16 %v114, %v112
  %v173 = vpack.c.b16 %v115, %v113
  %v174 = vpack.c.b16 %v118, %v116
  %v175 = vpack.c.b16 %v119, %v117
  %v176 = vpack.c.b16 %v122, %v120
  %v177 = vpack.c.b16 %v123, %v121
  %v178 = vpack.c.b16 %v126, %v124
  %v179 = vpack.c.b16 %v127, %v125
  %v180 = vpack.c.b16 %v130, %v128
  %v181 = vpack.c.b16 %v131, %v129
  %v182 = vpack.c.b16 %v134, %v132
  %v183 = vpack.c.b16 %v135, %v133
  %v184 = vpack.c.b16 %v138, %v136
  %v185 = vpack.c.b16 %v139, %v137
  %v186 = vpack.c.b16 %v142, %v140
  %v187 = vpack.c.b16 %v143, %v141
  %v188 = vpack.c.b16 %v146, %v144
  %v189 = vpack.c.b16 %v147, %v145
  %v190 = vpack.c.b16 %v150, %v148
  %v191 = vpack.c.b16 %v151, %v149
  %v192 = vpack.c.b16 %v154, %v152
  %v193 = vpack.c.b16 %v155, %v153
  %v194 = vpack.c.b16 %v158, %v156
  %v195 = vpack.c.b16 %v159, %v157
  %v196 = vpack.c.b16 %v162, %v160
  %v197 = vpack.c.b16 %v163, %v161
  %v198 = vpack.c.b16 %v166, %v164
  %v199 = vpack.c.b16 %v167, %v165
  %v234 = vunpack.c.l.b16 %v47
  %v235 = vunpack.c.l.b16 %v48
  %v236 = vunpack.c.l.b16 %v49
  %v237 = vunpack.c.l.b16 %v50
  %v238 = vunpack.c.l.b16 %v51
  %v239 = vunpack.c.l.b16 %v52
  %v240 = vunpack.c.l.b16 %v53
  %v241 = vunpack.c.l.b16 %v54
  %v242 = vunpack.c.l.b16 %v55
  %v243 = vunpack.c.l.b16 %v56
  %v244 = vunpack.c.l.b16 %v57
  %v245 = vunpack.c.l.b16 %v58
  %v246 = vunpack.c.l.b16 %v59
  %v247 = vunpack.c.l.b16 %v60
  %v248 = vunpack.c.l.b16 %v61
  %v249 = vunpack.c.l.b16 %v62
  %v250 = vunpack.c.l.b16 %v63
  %v251 = vunpack.c.l.b16 %v64
  %v252 = vpack.c.b16 %v235, %v234
  %v253 = vpack.c.b16 %v237, %v236
  %v254 = vpack.c.b16 %v239, %v238
  %v255 = vpack.c.b16 %v241, %v240
  %v256 = vpack.c.b16 %v243, %v242
  %v257 = vpack.c.b16 %v245, %v244
  %v258 = vpack.c.b16 %v247, %v246
  %v259 = vpack.c.b16 %v249, %v248
  %v260 = vpack.c.b16 %v251, %v250
  %vm270 = vcmask 130048
  %v272 = vsel %vm270, %v169, 0
  %v275 = vsel %vm270, %v171, 0
  %v278 = vsel %vm270, %v173, 0
  %v281 = vsel %vm270, %v175, 0
  %v284 = vsel %vm270, %v177, 0
  %v287 = vsel %vm270, %v179, 0
  %v290 = vsel %vm270, %v181, 0
  %v293 = vsel %vm270, %v183, 0
  %v296 = vsel %vm270, %v185, 0
  %v299 = vsel %vm270, %v187, 0
  %v302 = vsel %vm270, %v189, 0
  %v305 = vsel %vm270, %v191, 0
  %v308 = vsel %vm270, %v193, 0
  %v311 = vsel %vm270, %v195, 0
  %v314 = vsel %vm270, %v197, 0
  %v317 = vsel %vm270, %v199, 0
  %319 = vmatprep.subr.bf16.mxu0 0
  %320 = vmatpush1.bf16.msra.mxu0 %v252
  %321 = vmatprep.subr.bf16.mxu0 0
  %322 = vmatpush1.bf16.msra.mxu0 %v253
  %323 = vmatprep.subr.bf16.mxu0 0
  %324 = vmatpush1.bf16.msra.mxu0 %v254
  %325 = vmatprep.subr.bf16.mxu0 0
  %326 = vmatpush1.bf16.msra.mxu0 %v255
  %327 = vmatprep.subr.bf16.mxu0 0
  %328 = vmatpush1.bf16.msra.mxu0 %v256
  %329 = vmatprep.subr.bf16.mxu0 0
  %330 = vmatpush1.bf16.msra.mxu0 %v257
  %331 = vmatprep.subr.bf16.mxu0 0
  %332 = vmatpush1.bf16.msra.mxu0 %v258
  %333 = vmatprep.subr.bf16.mxu0 0
  %334 = vmatpush1.bf16.msra.mxu0 %v259
  %335 = vmatprep.subr.bf16.mxu0 0
  %336 = vmatpush1.bf16.msra.mxu0 %v260
  %337 = vmatprep.subr.bf16.mxu0 0
  %338 = vmatpush1.bf16.msra.mxu0 0
  %339 = vmatprep.subr.bf16.mxu0 0
  %340 = vmatpush1.bf16.msra.mxu0 0
  %341 = vmatprep.subr.bf16.mxu0 0
  %342 = vmatpush1.bf16.msra.mxu0 0
  %343 = vmatprep.subr.bf16.mxu0 0
  %344 = vmatpush1.bf16.msra.mxu0 0
  %345 = vmatprep.subr.bf16.mxu0 0
  %346 = vmatpush1.bf16.msra.mxu0 0
  %347 = vmatprep.subr.bf16.mxu0 0
  %348 = vmatpush1.bf16.msra.mxu0 0
  %349 = vmatprep.subr.bf16.mxu0 0
  %350 = vmatpush1.bf16.msra.mxu0 0
  %351 = vmatprep.mubr.bf16.mxu0 %v272
  %352 = vmatmul.mubr.bf16.gmra.mrb[0].mxu0 %v168
  %v353 = vpop.f32.mrb[0].mxu0
  %v354 = vadd.f32 %v70, %v353
  %v355 = vpop.f32.mrb[0].mxu0
  %v356 = vpop.f32.mrb[0].mxu0
  %v357 = vadd.f32 %v70, %v356
  %v358 = vpop.f32.mrb[0].mxu0
  %359 = vmatprep.mubr.bf16.mxu0 %v275
  %360 = vmatmul.mubr.bf16.gmra.mrb[0].mxu0 %v170
  %v361 = vpop.f32.mrb[0].mxu0
  %v362 = vadd.f32 %v70, %v361
  %v363 = vpop.f32.mrb[0].mxu0
  %v364 = vpop.f32.mrb[0].mxu0
  %v365 = vadd.f32 %v70, %v364
  %v366 = vpop.f32.mrb[0].mxu0
  %367 = vmatprep.mubr.bf16.mxu0 %v278
  %368 = vmatmul.mubr.bf16.gmra.mrb[0].mxu0 %v172
  %v369 = vpop.f32.mrb[0].mxu0
  %v370 = vadd.f32 %v70, %v369
  %v371 = vpop.f32.mrb[0].mxu0
  %v372 = vpop.f32.mrb[0].mxu0
  %v373 = vadd.f32 %v70, %v372
  %v374 = vpop.f32.mrb[0].mxu0
  %375 = vmatprep.mubr.bf16.mxu0 %v281
  %376 = vmatmul.mubr.bf16.gmra.mrb[0].mxu0 %v174
  %v377 = vpop.f32.mrb[0].mxu0
  %v378 = vadd.f32 %v70, %v377
  %v379 = vpop.f32.mrb[0].mxu0
  %v380 = vpop.f32.mrb[0].mxu0
  %v381 = vadd.f32 %v70, %v380
  %v382 = vpop.f32.mrb[0].mxu0
  %383 = vmatprep.mubr.bf16.mxu0 %v284
  %384 = vmatmul.mubr.bf16.gmra.mrb[0].mxu0 %v176
  %v385 = vpop.f32.mrb[0].mxu0
  %v386 = vadd.f32 %v70, %v385
  %v387 = vpop.f32.mrb[0].mxu0
  %v388 = vpop.f32.mrb[0].mxu0
  %v389 = vadd.f32 %v70, %v388
  %v390 = vpop.f32.mrb[0].mxu0
  %391 = vmatprep.mubr.bf16.mxu0 %v287
  %392 = vmatmul.mubr.bf16.gmra.mrb[0].mxu0 %v178
  %v393 = vpop.f32.mrb[0].mxu0
  %v394 = vadd.f32 %v70, %v393
  %v395 = vpop.f32.mrb[0].mxu0
  %v396 = vpop.f32.mrb[0].mxu0
  %v397 = vadd.f32 %v70, %v396
  %v398 = vpop.f32.mrb[0].mxu0
  %399 = vmatprep.mubr.bf16.mxu0 %v290
  %400 = vmatmul.mubr.bf16.gmra.mrb[0].mxu0 %v180
  %v401 = vpop.f32.mrb[0].mxu0
  %v402 = vadd.f32 %v70, %v401
  %v403 = vpop.f32.mrb[0].mxu0
  %v404 = vpop.f32.mrb[0].mxu0
  %v405 = vadd.f32 %v70, %v404
  %v406 = vpop.f32.mrb[0].mxu0
  %407 = vmatprep.mubr.bf16.mxu0 %v293
  %408 = vmatmul.mubr.bf16.gmra.mrb[0].mxu0 %v182
  %v409 = vpop.f32.mrb[0].mxu0
  %v410 = vadd.f32 %v70, %v409
  %v411 = vpop.f32.mrb[0].mxu0
  %v412 = vpop.f32.mrb[0].mxu0
  %v413 = vadd.f32 %v70, %v412
  %v414 = vpop.f32.mrb[0].mxu0
  %415 = vmatprep.mubr.bf16.mxu0 %v296
  %416 = vmatmul.mubr.bf16.gmra.mrb[0].mxu0 %v184
  %v417 = vpop.f32.mrb[0].mxu0
  %v418 = vadd.f32 %v70, %v417
  %v419 = vpop.f32.mrb[0].mxu0
  %v420 = vpop.f32.mrb[0].mxu0
  %v421 = vadd.f32 %v70, %v420
  %v422 = vpop.f32.mrb[0].mxu0
  %423 = vmatprep.mubr.bf16.mxu0 %v299
  %424 = vmatmul.mubr.bf16.gmra.mrb[0].mxu0 %v186
  %v425 = vpop.f32.mrb[0].mxu0
  %v426 = vadd.f32 %v70, %v425
  %v427 = vpop.f32.mrb[0].mxu0
  %v428 = vpop.f32.mrb[0].mxu0
  %v429 = vadd.f32 %v70, %v428
  %v430 = vpop.f32.mrb[0].mxu0
  %431 = vmatprep.mubr.bf16.mxu0 %v302
  %432 = vmatmul.mubr.bf16.gmra.mrb[0].mxu0 %v188
  %v433 = vpop.f32.mrb[0].mxu0
  %v434 = vadd.f32 %v70, %v433
  %v435 = vpop.f32.mrb[0].mxu0
  %v436 = vpop.f32.mrb[0].mxu0
  %v437 = vadd.f32 %v70, %v436
  %v438 = vpop.f32.mrb[0].mxu0
  %439 = vmatprep.mubr.bf16.mxu0 %v305
  %440 = vmatmul.mubr.bf16.gmra.mrb[0].mxu0 %v190
  %v441 = vpop.f32.mrb[0].mxu0
  %v442 = vadd.f32 %v70, %v441
  %v443 = vpop.f32.mrb[0].mxu0
  %v444 = vpop.f32.mrb[0].mxu0
  %v445 = vadd.f32 %v70, %v444
  %v446 = vpop.f32.mrb[0].mxu0
  %447 = vmatprep.mubr.bf16.mxu0 %v308
  %448 = vmatmul.mubr.bf16.gmra.mrb[0].mxu0 %v192
  %v449 = vpop.f32.mrb[0].mxu0
  %v450 = vadd.f32 %v70, %v449
  %v451 = vpop.f32.mrb[0].mxu0
  %v452 = vpop.f32.mrb[0].mxu0
  %v453 = vadd.f32 %v70, %v452
  %v454 = vpop.f32.mrb[0].mxu0
  %455 = vmatprep.mubr.bf16.mxu0 %v311
  %456 = vmatmul.mubr.bf16.gmra.mrb[0].mxu0 %v194
  %v457 = vpop.f32.mrb[0].mxu0
  %v458 = vadd.f32 %v70, %v457
  %v459 = vpop.f32.mrb[0].mxu0
  %v460 = vpop.f32.mrb[0].mxu0
  %v461 = vadd.f32 %v70, %v460
  %v462 = vpop.f32.mrb[0].mxu0
  %463 = vmatprep.mubr.bf16.mxu0 %v314
  %464 = vmatmul.mubr.bf16.gmra.mrb[0].mxu0 %v196
  %v465 = vpop.f32.mrb[0].mxu0
  %v466 = vadd.f32 %v70, %v465
  %v467 = vpop.f32.mrb[0].mxu0
  %v468 = vpop.f32.mrb[0].mxu0
  %v469 = vadd.f32 %v70, %v468
  %v470 = vpop.f32.mrb[0].mxu0
  %471 = vmatprep.mubr.bf16.mxu0 %v317
  %472 = vmatmul.mubr.bf16.gmra.mrb[0].mxu0 %v198
  %v473 = vpop.f32.mrb[0].mxu0
  %v474 = vadd.f32 %v70, %v473
  %v475 = vpop.f32.mrb[0].mxu0
  %v476 = vpop.f32.mrb[0].mxu0
  %v477 = vadd.f32 %v70, %v476
  %v478 = vpop.f32.mrb[0].mxu0
  %479 = vdwg.mxu0
  %v480 = vmax.f32 %v354, 0.0
  %v481 = vmax.f32 %v357, 0.0
  %v482 = vmax.f32 %v362, 0.0
  %v483 = vmax.f32 %v365, 0.0
  %v484 = vmax.f32 %v370, 0.0
  %v485 = vmax.f32 %v373, 0.0
  %v486 = vmax.f32 %v378, 0.0
  %v487 = vmax.f32 %v381, 0.0
  %v488 = vmax.f32 %v386, 0.0
  %v489 = vmax.f32 %v389, 0.0
  %v490 = vmax.f32 %v394, 0.0
  %v491 = vmax.f32 %v397, 0.0
  %v492 = vmax.f32 %v402, 0.0
  %v493 = vmax.f32 %v405, 0.0
  %v494 = vmax.f32 %v410, 0.0
  %v495 = vmax.f32 %v413, 0.0
  %v496 = vmax.f32 %v418, 0.0
  %v497 = vmax.f32 %v421, 0.0
  %v498 = vmax.f32 %v426, 0.0
  %v499 = vmax.f32 %v429, 0.0
  %v500 = vmax.f32 %v434, 0.0
  %v501 = vmax.f32 %v437, 0.0
  %v502 = vmax.f32 %v442, 0.0
  %v503 = vmax.f32 %v445, 0.0
  %v504 = vmax.f32 %v450, 0.0
  %v505 = vmax.f32 %v453, 0.0
  %v506 = vmax.f32 %v458, 0.0
  %v507 = vmax.f32 %v461, 0.0
  %v508 = vmax.f32 %v466, 0.0
  %v509 = vmax.f32 %v469, 0.0
  %v510 = vmax.f32 %v474, 0.0
  %v511 = vmax.f32 %v477, 0.0
  %512 = vst.msk [vmem:[%s3] sm:$0xff] %vm270, %v480
  %513 = vst.msk [vmem:[%s3 + $0x8] sm:$0xff] %vm270, %v481
  %514 = vst.msk [vmem:[%s3 + $0x10] sm:$0xff] %vm270, %v482
  %515 = vst.msk [vmem:[%s3 + $0x18] sm:$0xff] %vm270, %v483
  %516 = vst.msk [vmem:[%s3 + $0x20] sm:$0xff] %vm270, %v484
  %517 = vst.msk [vmem:[%s3 + $0x28] sm:$0xff] %vm270, %v485
  %518 = vst.msk [vmem:[%s3 + $0x30] sm:$0xff] %vm270, %v486
  %519 = vst.msk [vmem:[%s3 + $0x38] sm:$0xff] %vm270, %v487
  %520 = vst.msk [vmem:[%s3 + $0x40] sm:$0xff] %vm270, %v488
  %521 = vst.msk [vmem:[%s3 + $0x48] sm:$0xff] %vm270, %v489
  %522 = vst.msk [vmem:[%s3 + $0x50] sm:$0xff] %vm270, %v490
  %523 = vst.msk [vmem:[%s3 + $0x58] sm:$0xff] %vm270, %v491
  %524 = vst.msk [vmem:[%s3 + $0x60] sm:$0xff] %vm270, %v492
  %525 = vst.msk [vmem:[%s3 + $0x68] sm:$0xff] %vm270, %v493
  %526 = vst.msk [vmem:[%s3 + $0x70] sm:$0xff] %vm270, %v494
  %527 = vst.msk [vmem:[%s3 + $0x78] sm:$0xff] %vm270, %v495
  %528 = vst.msk [vmem:[%s3 + $0x80] sm:$0xff] %vm270, %v496
  %529 = vst.msk [vmem:[%s3 + $0x88] sm:$0xff] %vm270, %v497
  %530 = vst.msk [vmem:[%s3 + $0x90] sm:$0xff] %vm270, %v498
  %531 = vst.msk [vmem:[%s3 + $0x98] sm:$0xff] %vm270, %v499
  %532 = vst.msk [vmem:[%s3 + $0xa0] sm:$0xff] %vm270, %v500
  %533 = vst.msk [vmem:[%s3 + $0xa8] sm:$0xff] %vm270, %v501
  %534 = vst.msk [vmem:[%s3 + $0xb0] sm:$0xff] %vm270, %v502
  %535 = vst.msk [vmem:[%s3 + $0xb8] sm:$0xff] %vm270, %v503
  %536 = vst.msk [vmem:[%s3 + $0xc0] sm:$0xff] %vm270, %v504
  %537 = vst.msk [vmem:[%s3 + $0xc8] sm:$0xff] %vm270, %v505
  %538 = vst.msk [vmem:[%s3 + $0xd0] sm:$0xff] %vm270, %v506
  %539 = vst.msk [vmem:[%s3 + $0xd8] sm:$0xff] %vm270, %v507
  %540 = vst.msk [vmem:[%s3 + $0xe0] sm:$0xff] %vm270, %v508
  %541 = vst.msk [vmem:[%s3 + $0xe8] sm:$0xff] %vm270, %v509
  %542 = vst.msk [vmem:[%s3 + $0xf0] sm:$0xff] %vm270, %v510
  %543 = vst.msk [vmem:[%s3 + $0xf8] sm:$0xff] %vm270, %v511
  // Predicated region
  $region14: #{jvp__.13} parent=0 // pred_check
    _
  $region15: #{jvp__.13} parent=0 // pred_check_branch
    %545 = sbr.rel (0) target = $region17
  $region16: #{jvp__.13} parent=0 // pred_region
    _
  $region17: #{jvp__.13} parent=0 // pred_fallthru
    _
  // Predicated region
  $region18: #{jvp__.13} parent=0 // pred_check
    _
  $region19: #{jvp__.13} parent=0 // pred_check_branch
    %547 = sbr.rel (0) target = $region21
  $region20: #{jvp__.13} parent=0 // pred_region
    _
  $region21: #{jvp__.13} parent=0 // pred_fallthru
    _

// kernel: jvp__.14
$region0: #{jvp__.14}
  #allocation0 [shape = 'u32[]', space=smem, size = 0x4, offset = 0x4, fixed_abs, tag = 'smem constant byte address 0x4 - core index']
  #allocation1 [shape = 'u32[144,128]{1,0:T(1,128)}', space=vmem, size = 0x12000, scoped, tag = 'internal scratch']
  %s0 = inlined_call_operand.vmem [shape: bf16[4,256], index: 0, kind: input, shape index: {}]
  %s1 = inlined_call_operand.vmem [shape: bf16[256,4], index: 1, kind: input, shape index: {}]
  %s2 = inlined_call_operand.vmem [shape: f32[1,4], index: 2, kind: input, shape index: {}]
  %s3 = inlined_call_operand.vmem [shape: f32[4,4], index: 3, kind: output, shape index: {}]
  %s4 = sld [smem:[#allocation0]]
  $region22: #{jvp__.14} parent=0
    _
  %s6 = ssub.s32 1, %s4
  %s7 = scalar_select 0, %s6, %s4
  // Predicated region
  $region2: #{jvp__.14} parent=0 // pred_check
    _
  $region3: #{jvp__.14} parent=0 // pred_check_branch
    %9 = sbr.rel (0) target = $region5
  $region4: #{jvp__.14} parent=0 // pred_region
    _
  $region5: #{jvp__.14} parent=0 // pred_fallthru
    _
  // Predicated region
  $region6: #{jvp__.14} parent=0 // pred_check
    _
  $region7: #{jvp__.14} parent=0 // pred_check_branch
    %11 = sbr.rel (0) target = $region9
  $region8: #{jvp__.14} parent=0 // pred_region
    _
  $region9: #{jvp__.14} parent=0 // pred_fallthru
    _
  // Predicated region
  $region10: #{jvp__.14} parent=0 // pred_check
    _
  $region11: #{jvp__.14} parent=0 // pred_check_branch
    %13 = sbr.rel (0) target = $region13
  $region12: #{jvp__.14} parent=0 // pred_region
    _
  $region13: #{jvp__.14} parent=0 // pred_fallthru
    _
  %v15 = vld [vmem:[%s0] sm:$0xf]
  %v16 = vld [vmem:[%s1] sm:$0xf]
  %v17 = vld [vmem:[%s1 + $0x4] sm:$0xf]
  %v18 = vld [vmem:[%s1 + $0x8] sm:$0xf]
  %v19 = vld [vmem:[%s1 + $0xc] sm:$0xf]
  %v20 = vld [vmem:[%s1 + $0x10] sm:$0xf]
  %v21 = vld [vmem:[%s1 + $0x14] sm:$0xf]
  %v22 = vld [vmem:[%s1 + $0x18] sm:$0xf]
  %v23 = vld [vmem:[%s1 + $0x1c] sm:$0xf]
  %v24 = vld [vmem:[%s1 + $0x20] sm:$0xf]
  %v25 = vld [vmem:[%s1 + $0x24] sm:$0xf]
  %v26 = vld [vmem:[%s1 + $0x28] sm:$0xf]
  %v27 = vld [vmem:[%s1 + $0x2c] sm:$0xf]
  %v28 = vld [vmem:[%s1 + $0x30] sm:$0xf]
  %v29 = vld [vmem:[%s1 + $0x34] sm:$0xf]
  %v30 = vld [vmem:[%s1 + $0x38] sm:$0xf]
  %v31 = vld [vmem:[%s1 + $0x3c] sm:$0xf]
  %v32 = vld [vmem:[%s1 + $0x40] sm:$0xf]
  %v33 = vld [vmem:[%s1 + $0x44] sm:$0xf]
  %v34 = vld [vmem:[%s1 + $0x48] sm:$0xf]
  %v35 = vld [vmem:[%s1 + $0x4c] sm:$0xf]
  %v36 = vld [vmem:[%s1 + $0x50] sm:$0xf]
  %v37 = vld [vmem:[%s1 + $0x54] sm:$0xf]
  %v38 = vld [vmem:[%s1 + $0x58] sm:$0xf]
  %v39 = vld [vmem:[%s1 + $0x5c] sm:$0xf]
  %v40 = vld [vmem:[%s1 + $0x60] sm:$0xf]
  %v41 = vld [vmem:[%s1 + $0x64] sm:$0xf]
  %v42 = vld [vmem:[%s1 + $0x68] sm:$0xf]
  %v43 = vld [vmem:[%s1 + $0x6c] sm:$0xf]
  %v44 = vld [vmem:[%s1 + $0x70] sm:$0xf]
  %v45 = vld [vmem:[%s1 + $0x74] sm:$0xf]
  %v46 = vld [vmem:[%s1 + $0x78] sm:$0xf]
  %v47 = vld [vmem:[%s1 + $0x7c] sm:$0xf]
  %v48 = vld [vmem:[%s2] sm:$0x1]
  %v50 = vlaneseq
  %v51 = vshrl.u32 %v50, 7
  %v52 = vsub.s32 0, %v51
  %v53 = vrot.slane %v48, %v52
  %v57 = vunpack.c.l.s4 1983009808
  %v58 = vunpack.c.0.s8 %v57
  %v59 = vlaneseq
  %v60 = vshrl.u32 %v59, 7
  %v61 = vsub.s32 %v58, %v60
  %v62 = vrot.slane %v15, %v61
  %v63 = vcombine.high %v62, %v62
  %v98 = vunpack.c.l.b16 %v16
  %v99 = vunpack.c.l.b16 %v17
  %v100 = vunpack.c.l.b16 %v18
  %v101 = vunpack.c.l.b16 %v19
  %v102 = vunpack.c.l.b16 %v20
  %v103 = vunpack.c.l.b16 %v21
  %v104 = vunpack.c.l.b16 %v22
  %v105 = vunpack.c.l.b16 %v23
  %v106 = vunpack.c.l.b16 %v24
  %v107 = vunpack.c.l.b16 %v25
  %v108 = vunpack.c.l.b16 %v26
  %v109 = vunpack.c.l.b16 %v27
  %v110 = vunpack.c.l.b16 %v28
  %v111 = vunpack.c.l.b16 %v29
  %v112 = vunpack.c.l.b16 %v30
  %v113 = vunpack.c.l.b16 %v31
  %v114 = vunpack.c.l.b16 %v32
  %v115 = vunpack.c.l.b16 %v33
  %v116 = vunpack.c.l.b16 %v34
  %v117 = vunpack.c.l.b16 %v35
  %v118 = vunpack.c.l.b16 %v36
  %v119 = vunpack.c.l.b16 %v37
  %v120 = vunpack.c.l.b16 %v38
  %v121 = vunpack.c.l.b16 %v39
  %v122 = vunpack.c.l.b16 %v40
  %v123 = vunpack.c.l.b16 %v41
  %v124 = vunpack.c.l.b16 %v42
  %v125 = vunpack.c.l.b16 %v43
  %v126 = vunpack.c.l.b16 %v44
  %v127 = vunpack.c.l.b16 %v45
  %v128 = vunpack.c.l.b16 %v46
  %v129 = vunpack.c.l.b16 %v47
  %v130 = vpack.c.b16 %v99, %v98
  %v131 = vpack.c.b16 %v101, %v100
  %v132 = vpack.c.b16 %v103, %v102
  %v133 = vpack.c.b16 %v105, %v104
  %v134 = vpack.c.b16 %v107, %v106
  %v135 = vpack.c.b16 %v109, %v108
  %v136 = vpack.c.b16 %v111, %v110
  %v137 = vpack.c.b16 %v113, %v112
  %v138 = vpack.c.b16 %v115, %v114
  %v139 = vpack.c.b16 %v117, %v116
  %v140 = vpack.c.b16 %v119, %v118
  %v141 = vpack.c.b16 %v121, %v120
  %v142 = vpack.c.b16 %v123, %v122
  %v143 = vpack.c.b16 %v125, %v124
  %v144 = vpack.c.b16 %v127, %v126
  %v145 = vpack.c.b16 %v129, %v128
  %162 = vmatprep.subr.bf16.mxu0 0
  %163 = vmatpush1.bf16.msra.mxu0 %v130
  %164 = vmatprep.subr.bf16.mxu0 0
  %165 = vmatpush1.bf16.msra.mxu0 %v131
  %166 = vmatprep.subr.bf16.mxu0 0
  %167 = vmatpush1.bf16.msra.mxu0 %v132
  %168 = vmatprep.subr.bf16.mxu0 0
  %169 = vmatpush1.bf16.msra.mxu0 %v133
  %170 = vmatprep.subr.bf16.mxu0 0
  %171 = vmatpush1.bf16.msra.mxu0 %v134
  %172 = vmatprep.subr.bf16.mxu0 0
  %173 = vmatpush1.bf16.msra.mxu0 %v135
  %174 = vmatprep.subr.bf16.mxu0 0
  %175 = vmatpush1.bf16.msra.mxu0 %v136
  %176 = vmatprep.subr.bf16.mxu0 0
  %177 = vmatpush1.bf16.msra.mxu0 %v137
  %178 = vmatprep.subr.bf16.mxu0 0
  %179 = vmatpush1.bf16.msra.mxu0 %v138
  %180 = vmatprep.subr.bf16.mxu0 0
  %181 = vmatpush1.bf16.msra.mxu0 %v139
  %182 = vmatprep.subr.bf16.mxu0 0
  %183 = vmatpush1.bf16.msra.mxu0 %v140
  %184 = vmatprep.subr.bf16.mxu0 0
  %185 = vmatpush1.bf16.msra.mxu0 %v141
  %186 = vmatprep.subr.bf16.mxu0 0
  %187 = vmatpush1.bf16.msra.mxu0 %v142
  %188 = vmatprep.subr.bf16.mxu0 0
  %189 = vmatpush1.bf16.msra.mxu0 %v143
  %190 = vmatprep.subr.bf16.mxu0 0
  %191 = vmatpush1.bf16.msra.mxu0 %v144
  %192 = vmatprep.subr.bf16.mxu0 0
  %193 = vmatpush1.bf16.msra.mxu0 %v145
  %194 = vmatprep.mubr.bf16.mxu0 %v63
  %195 = vmatmul.mubr.bf16.gmra.mrb[0].mxu0 %v62
  %v196 = vpop.f32.mrb[0].mxu0
  %v197 = vadd.f32 %v53, %v196
  %v198 = vpop.f32.mrb[0].mxu0
  %v199 = vpop.f32.mrb[0].mxu0
  %v200 = vpop.f32.mrb[0].mxu0
  %201 = vdwg.mxu0
  %vm202 = vcmask 27648
  %203 = vst.msk [vmem:[%s3] sm:$0xf] %vm202, %v197
  // Predicated region
  $region14: #{jvp__.14} parent=0 // pred_check
    _
  $region15: #{jvp__.14} parent=0 // pred_check_branch
    %205 = sbr.rel (0) target = $region17
  $region16: #{jvp__.14} parent=0 // pred_region
    _
  $region17: #{jvp__.14} parent=0 // pred_fallthru
    _
  // Predicated region
  $region18: #{jvp__.14} parent=0 // pred_check
    _
  $region19: #{jvp__.14} parent=0 // pred_check_branch
    %207 = sbr.rel (0) target = $region21
  $region20: #{jvp__.14} parent=0 // pred_region
    _
  $region21: #{jvp__.14} parent=0 // pred_fallthru
    _

// kernel: div.26
$region0: #{div.26}
  #allocation0 [shape = 's32[1]{0}', space=sflag, size = 0x4, scoped, tag = 'scoped memory for div.26']
  %s0 = inlined_call_operand.vmem [shape: f32[4,4,4,16], index: 0, kind: input, shape index: {}]
  %s1 = inlined_call_operand.vmem [shape: f32[4,4,4,16], index: 1, kind: input, shape index: {}]
  %s2 = inlined_call_operand.vmem [shape: f32[4,4,4,16], index: 2, kind: output, shape index: {}]
  %v3 = vld [vmem:[%s0] sm:$0xf]
  %v4 = vld [vmem:[%s1] sm:$0xf]
  %5 = xla_tuple %v3, %v4
  %6 = xla_tuple %5
  %v7 = vrcp.pop %v4
  %v8 = vmul.f32 %v3, %v7
  %9 = xla_tuple %v8
  %10 = vst [vmem:[%s2] sm:$0xf] %v8
  %s11 = scalar_lea.vmem %s0, 16
  %v12 = vld [vmem:[%s11] sm:$0xf]
  %s13 = scalar_lea.vmem %s1, 16
  %v14 = vld [vmem:[%s13] sm:$0xf]
  %15 = xla_tuple %v12, %v14
  %16 = xla_tuple %15
  %v17 = vrcp.pop %v14
  %v18 = vmul.f32 %v12, %v17
  %19 = xla_tuple %v18
  %s20 = scalar_lea.vmem %s2, 16
  %21 = vst [vmem:[%s20] sm:$0xf] %v18
  %s22 = scalar_lea.vmem %s0, 32
  %v23 = vld [vmem:[%s22] sm:$0xf]
  %s24 = scalar_lea.vmem %s1, 32
  %v25 = vld [vmem:[%s24] sm:$0xf]
  %26 = xla_tuple %v23, %v25
  %27 = xla_tuple %26
  %v28 = vrcp.pop %v25
  %v29 = vmul.f32 %v23, %v28
  %30 = xla_tuple %v29
  %s31 = scalar_lea.vmem %s2, 32
  %32 = vst [vmem:[%s31] sm:$0xf] %v29
  %s33 = scalar_lea.vmem %s0, 48
  %v34 = vld [vmem:[%s33] sm:$0xf]
  %s35 = scalar_lea.vmem %s1, 48
  %v36 = vld [vmem:[%s35] sm:$0xf]
  %37 = xla_tuple %v34, %v36
  %38 = xla_tuple %37
  %v39 = vrcp.pop %v36
  %v40 = vmul.f32 %v34, %v39
  %41 = xla_tuple %v40
  %s42 = scalar_lea.vmem %s2, 48
  %43 = vst [vmem:[%s42] sm:$0xf] %v40
  %s44 = scalar_lea.vmem %s0, 4
  %v45 = vld [vmem:[%s44] sm:$0xf]
  %s46 = scalar_lea.vmem %s1, 4
  %v47 = vld [vmem:[%s46] sm:$0xf]
  %48 = xla_tuple %v45, %v47
  %49 = xla_tuple %48
  %v50 = vrcp.pop %v47
  %v51 = vmul.f32 %v45, %v50
  %52 = xla_tuple %v51
  %s53 = scalar_lea.vmem %s2, 4
  %54 = vst [vmem:[%s53] sm:$0xf] %v51
  %s55 = scalar_lea.vmem %s0, 20
  %v56 = vld [vmem:[%s55] sm:$0xf]
  %s57 = scalar_lea.vmem %s1, 20
  %v58 = vld [vmem:[%s57] sm:$0xf]
  %59 = xla_tuple %v56, %v58
  %60 = xla_tuple %59
  %v61 = vrcp.pop %v58
  %v62 = vmul.f32 %v56, %v61
  %63 = xla_tuple %v62
  %s64 = scalar_lea.vmem %s2, 20
  %65 = vst [vmem:[%s64] sm:$0xf] %v62
  %s66 = scalar_lea.vmem %s0, 36
  %v67 = vld [vmem:[%s66] sm:$0xf]
  %s68 = scalar_lea.vmem %s1, 36
  %v69 = vld [vmem:[%s68] sm:$0xf]
  %70 = xla_tuple %v67, %v69
  %71 = xla_tuple %70
  %v72 = vrcp.pop %v69
  %v73 = vmul.f32 %v67, %v72
  %74 = xla_tuple %v73
  %s75 = scalar_lea.vmem %s2, 36
  %76 = vst [vmem:[%s75] sm:$0xf] %v73
  %s77 = scalar_lea.vmem %s0, 52
  %v78 = vld [vmem:[%s77] sm:$0xf]
  %s79 = scalar_lea.vmem %s1, 52
  %v80 = vld [vmem:[%s79] sm:$0xf]
  %81 = xla_tuple %v78, %v80
  %82 = xla_tuple %81
  %v83 = vrcp.pop %v80
  %v84 = vmul.f32 %v78, %v83
  %85 = xla_tuple %v84
  %s86 = scalar_lea.vmem %s2, 52
  %87 = vst [vmem:[%s86] sm:$0xf] %v84
  %s88 = scalar_lea.vmem %s0, 8
  %v89 = vld [vmem:[%s88] sm:$0xf]
  %s90 = scalar_lea.vmem %s1, 8
  %v91 = vld [vmem:[%s90] sm:$0xf]
  %92 = xla_tuple %v89, %v91
  %93 = xla_tuple %92
  %v94 = vrcp.pop %v91
  %v95 = vmul.f32 %v89, %v94
  %96 = xla_tuple %v95
  %s97 = scalar_lea.vmem %s2, 8
  %98 = vst [vmem:[%s97] sm:$0xf] %v95
  %s99 = scalar_lea.vmem %s0, 24
  %v100 = vld [vmem:[%s99] sm:$0xf]
  %s101 = scalar_lea.vmem %s1, 24
  %v102 = vld [vmem:[%s101] sm:$0xf]
  %103 = xla_tuple %v100, %v102
  %104 = xla_tuple %103
  %v105 = vrcp.pop %v102
  %v106 = vmul.f32 %v100, %v105
  %107 = xla_tuple %v106
  %s108 = scalar_lea.vmem %s2, 24
  %109 = vst [vmem:[%s108] sm:$0xf] %v106
  %s110 = scalar_lea.vmem %s0, 40
  %v111 = vld [vmem:[%s110] sm:$0xf]
  %s112 = scalar_lea.vmem %s1, 40
  %v113 = vld [vmem:[%s112] sm:$0xf]
  %114 = xla_tuple %v111, %v113
  %115 = xla_tuple %114
  %v116 = vrcp.pop %v113
  %v117 = vmul.f32 %v111, %v116
  %118 = xla_tuple %v117
  %s119 = scalar_lea.vmem %s2, 40
  %120 = vst [vmem:[%s119] sm:$0xf] %v117
  %s121 = scalar_lea.vmem %s0, 56
  %v122 = vld [vmem:[%s121] sm:$0xf]
  %s123 = scalar_lea.vmem %s1, 56
  %v124 = vld [vmem:[%s123] sm:$0xf]
  %125 = xla_tuple %v122, %v124
  %126 = xla_tuple %125
  %v127 = vrcp.pop %v124
  %v128 = vmul.f32 %v122, %v127
  %129 = xla_tuple %v128
  %s130 = scalar_lea.vmem %s2, 56
  %131 = vst [vmem:[%s130] sm:$0xf] %v128
  %s132 = scalar_lea.vmem %s0, 12
  %v133 = vld [vmem:[%s132] sm:$0xf]
  %s134 = scalar_lea.vmem %s1, 12
  %v135 = vld [vmem:[%s134] sm:$0xf]
  %136 = xla_tuple %v133, %v135
  %137 = xla_tuple %136
  %v138 = vrcp.pop %v135
  %v139 = vmul.f32 %v133, %v138
  %140 = xla_tuple %v139
  %s141 = scalar_lea.vmem %s2, 12
  %142 = vst [vmem:[%s141] sm:$0xf] %v139
  %s143 = scalar_lea.vmem %s0, 28
  %v144 = vld [vmem:[%s143] sm:$0xf]
  %s145 = scalar_lea.vmem %s1, 28
  %v146 = vld [vmem:[%s145] sm:$0xf]
  %147 = xla_tuple %v144, %v146
  %148 = xla_tuple %147
  %v149 = vrcp.pop %v146
  %v150 = vmul.f32 %v144, %v149
  %151 = xla_tuple %v150
  %s152 = scalar_lea.vmem %s2, 28
  %153 = vst [vmem:[%s152] sm:$0xf] %v150
  %s154 = scalar_lea.vmem %s0, 44
  %v155 = vld [vmem:[%s154] sm:$0xf]
  %s156 = scalar_lea.vmem %s1, 44
  %v157 = vld [vmem:[%s156] sm:$0xf]
  %158 = xla_tuple %v155, %v157
  %159 = xla_tuple %158
  %v160 = vrcp.pop %v157
  %v161 = vmul.f32 %v155, %v160
  %162 = xla_tuple %v161
  %s163 = scalar_lea.vmem %s2, 44
  %164 = vst [vmem:[%s163] sm:$0xf] %v161
  %s165 = scalar_lea.vmem %s0, 60
  %v166 = vld [vmem:[%s165] sm:$0xf]
  %s167 = scalar_lea.vmem %s1, 60
  %v168 = vld [vmem:[%s167] sm:$0xf]
  %169 = xla_tuple %v166, %v168
  %170 = xla_tuple %169
  %v171 = vrcp.pop %v168
  %v172 = vmul.f32 %v166, %v171
  %173 = xla_tuple %v172
  %s174 = scalar_lea.vmem %s2, 60
  %175 = vst [vmem:[%s174] sm:$0xf] %v172

// kernel: sub.65
$region0: #{sub.65}
  #allocation0 [shape = 's32[1]{0}', space=sflag, size = 0x4, scoped, tag = 'scoped memory for sub.65']
  %s0 = inlined_call_operand.vmem [shape: f32[256,4], index: 0, kind: input, shape index: {}]
  %s1 = inlined_call_operand.vmem [shape: f32[256,4], index: 1, kind: input, shape index: {}]
  %s2 = inlined_call_operand.vmem [shape: f32[256,4], index: 2, kind: output, shape index: {}]
  %v3 = vld [vmem:[%s0] sm:$0xf]
  %v4 = vld [vmem:[%s1] sm:$0xf]
  %5 = xla_tuple %v3, %v4
  %6 = xla_tuple %5
  %v7 = vsub.f32 %v3, %v4
  %8 = xla_tuple %v7
  %9 = vst [vmem:[%s2] sm:$0xf] %v7
  %s10 = scalar_lea.vmem %s0, 4
  %v11 = vld [vmem:[%s10] sm:$0xf]
  %s12 = scalar_lea.vmem %s1, 4
  %v13 = vld [vmem:[%s12] sm:$0xf]
  %14 = xla_tuple %v11, %v13
  %15 = xla_tuple %14
  %v16 = vsub.f32 %v11, %v13
  %17 = xla_tuple %v16
  %s18 = scalar_lea.vmem %s2, 4
  %19 = vst [vmem:[%s18] sm:$0xf] %v16

// kernel: meta_learner_forward.12
$region0: #{meta_learner_forward.12}
  #allocation0 [shape = 'u32[]', space=smem, size = 0x4, offset = 0x4, fixed_abs, tag = 'smem constant byte address 0x4 - core index']
  #allocation1 [shape = 'u32[144,128]{1,0:T(1,128)}', space=vmem, size = 0x12000, scoped, tag = 'internal scratch']
  %s0 = inlined_call_operand.vmem [shape: bf16[2048,36], index: 0, kind: input, shape index: {}]
  %s1 = inlined_call_operand.vmem [shape: bf16[36,16], index: 1, kind: input, shape index: {}]
  %s2 = inlined_call_operand.vmem [shape: f32[1,16], index: 2, kind: input, shape index: {}]
  %s3 = inlined_call_operand.vmem [shape: f32[2048,16], index: 3, kind: output, shape index: {}]
  %s4 = sld [smem:[#allocation0]]
  $region45: #{meta_learner_forward.12} parent=0
    _
  %s6 = ssub.s32 1, %s4
  %s7 = scalar_select 0, %s6, %s4
  loop: start=0, step=1, limit=6
  $region2: #{meta_learner_forward.12} parent=0 // loop_pre_header
    _
  $region3: #{meta_learner_forward.12} parent=0 // loop_header
    %s9 = sphi 0, %s13
    %p10 = scmp.ge.s32.totalorder %s9, 6
    %s19 = sphi 0, %s21
    %s22 = sphi 0, %s19
    %s23 = sphi 0, %s22
    %s39 = sphi 0, %s23
    %s43 = sphi 0, %s43
    %s45 = sphi 0, %s43
    %s46 = sphi 0, %s45
    %s60 = sphi 0, %s46
    %s64 = sphi 0, %s64
    %s66 = sphi 0, %s64
    %s67 = sphi 0, %s66
    %s81 = sphi 0, %s67
    %s87 = sphi 0, %s89
    %s90 = sphi 0, %s87
    %s91 = sphi 0, %s90
    %s107 = sphi 0, %s91
  $region4: #{meta_learner_forward.12} parent=0 // loop_header_branch
    %12 = sbr.rel (%p10) target = $region8
  $region5: #{meta_learner_forward.12} parent=0 // loop_body
    %s14 = ssub.s32 %s9, 1
    %s15 = ssub.s32 %s9, 2
    %s16 = sadd.s32 %s9, 1
    %s17 = ssub.s32 %s9, %s16
    %p18 = scmp.eq.s32.totalorder %s17, 0
    %s20 = sadd.s32 %s19, 1
    %s21 = scalar_select %p18, %s19, %s20
    %p24 = pneg %p18
    %p25 = scmp.eq.s32.totalorder %s9, 3
    %p26 = por %p24, %p25
    %p27 = scmp.ne.s32.totalorder %s19, %s22
    %p28 = scmp.eq.s32.totalorder %s9, 0
    %p29 = por %p27, %p28
    %p30 = scmp.ne.s32.totalorder %s19, %s22
    %p31 = scmp.eq.s32.totalorder %s14, 3
    %p32 = por %p30, %p31
    %p33 = scmp.ne.s32.totalorder %s22, %s23
    %p34 = scmp.eq.s32.totalorder %s14, 0
    %p35 = por %p33, %p34
    %p36 = scmp.ne.s32.totalorder %s22, %s23
    %p37 = scmp.eq.s32.totalorder %s15, 3
    %p38 = por %p36, %p37
    %p40 = scmp.ne.s32.totalorder %s23, %s39
    %p41 = scmp.eq.s32.totalorder %s15, 0
    %p42 = por %p40, %p41
    %s44 = sadd.s32 %s43, 1
    %p47 = scmp.eq.s32.totalorder %s9, 3
    %p48 = scmp.ne.s32.totalorder %s43, %s45
    %p49 = scmp.eq.s32.totalorder %s9, 0
    %p50 = por %p48, %p49
    %p51 = scmp.ne.s32.totalorder %s43, %s45
    %p52 = scmp.eq.s32.totalorder %s14, 3
    %p53 = por %p51, %p52
    %p54 = scmp.ne.s32.totalorder %s45, %s46
    %p55 = scmp.eq.s32.totalorder %s14, 0
    %p56 = por %p54, %p55
    %p57 = scmp.ne.s32.totalorder %s45, %s46
    %p58 = scmp.eq.s32.totalorder %s15, 3
    %p59 = por %p57, %p58
    %p61 = scmp.ne.s32.totalorder %s46, %s60
    %p62 = scmp.eq.s32.totalorder %s15, 0
    %p63 = por %p61, %p62
    %s65 = sadd.s32 %s64, 1
    %p68 = scmp.eq.s32.totalorder %s9, 3
    %p69 = scmp.ne.s32.totalorder %s64, %s66
    %p70 = scmp.eq.s32.totalorder %s9, 0
    %p71 = por %p69, %p70
    %p72 = scmp.ne.s32.totalorder %s64, %s66
    %p73 = scmp.eq.s32.totalorder %s14, 3
    %p74 = por %p72, %p73
    %p75 = scmp.ne.s32.totalorder %s66, %s67
    %p76 = scmp.eq.s32.totalorder %s14, 0
    %p77 = por %p75, %p76
    %p78 = scmp.ne.s32.totalorder %s66, %s67
    %p79 = scmp.eq.s32.totalorder %s15, 3
    %p80 = por %p78, %p79
    %p82 = scmp.ne.s32.totalorder %s67, %s81
    %p83 = scmp.eq.s32.totalorder %s15, 0
    %p84 = por %p82, %p83
    %s85 = ssub.s32 %s9, %s16
    %p86 = scmp.eq.s32.totalorder %s85, 0
    %s88 = sadd.s32 %s87, 1
    %s89 = scalar_select %p86, %s87, %s88
    %p92 = pneg %p86
    %p93 = scmp.eq.s32.totalorder %s9, 3
    %p94 = por %p92, %p93
    %p95 = scmp.ne.s32.totalorder %s87, %s90
    %p96 = scmp.eq.s32.totalorder %s9, 0
    %p97 = por %p95, %p96
    %p98 = scmp.ne.s32.totalorder %s87, %s90
    %p99 = scmp.eq.s32.totalorder %s14, 3
    %p100 = por %p98, %p99
    %p101 = scmp.ne.s32.totalorder %s90, %s91
    %p102 = scmp.eq.s32.totalorder %s14, 0
    %p103 = por %p101, %p102
    %p104 = scmp.ne.s32.totalorder %s90, %s91
    %p105 = scmp.eq.s32.totalorder %s15, 3
    %p106 = por %p104, %p105
    %p108 = scmp.ne.s32.totalorder %s91, %s107
    %p109 = scmp.eq.s32.totalorder %s15, 0
    %p110 = por %p108, %p109
    %p111 = scmp.le.s32.totalorder 1, %s9
    %p112 = scmp.lt.s32.totalorder %s9, 5
    %p113 = pnand %p111, %p112
    %p114 = pneg %p113
    // Predicated region
    $region9: #{meta_learner_forward.12} parent=5 // pred_check
      _
    $region10: #{meta_learner_forward.12} parent=5 // pred_check_branch
      %116 = sbr.rel (%p113) target = $region12
    $region11: #{meta_learner_forward.12} parent=5 // pred_region
      %s117 = ssub.s32 %s9, 1
      // Predicated region
      $region13: #{meta_learner_forward.12} parent=11 // pred_check
        %p118 = pneg %p56
      $region14: #{meta_learner_forward.12} parent=11 // pred_check_branch
        %120 = sbr.rel (%p118) target = $region16
      $region15: #{meta_learner_forward.12} parent=11 // pred_region
        _
      $region16: #{meta_learner_forward.12} parent=11 // pred_fallthru
        _
      // Predicated region
      $region17: #{meta_learner_forward.12} parent=11 // pred_check
        %p121 = pneg %p77
      $region18: #{meta_learner_forward.12} parent=11 // pred_check_branch
        %123 = sbr.rel (%p121) target = $region20
      $region19: #{meta_learner_forward.12} parent=11 // pred_region
        _
      $region20: #{meta_learner_forward.12} parent=11 // pred_fallthru
        _
    $region12: #{meta_learner_forward.12} parent=5 // pred_fallthru
      _
    %p124 = scmp.lt.s32.totalorder %s9, 4
    // Predicated region
    $region21: #{meta_learner_forward.12} parent=5 // pred_check
      %p125 = pneg %p124
    $region22: #{meta_learner_forward.12} parent=5 // pred_check_branch
      %127 = sbr.rel (%p125) target = $region24
    $region23: #{meta_learner_forward.12} parent=5 // pred_region
      // Predicated region
      $region25: #{meta_learner_forward.12} parent=23 // pred_check
        %p128 = pneg %p29
      $region26: #{meta_learner_forward.12} parent=23 // pred_check_branch
        %130 = sbr.rel (%p128) target = $region28
      $region27: #{meta_learner_forward.12} parent=23 // pred_region
        %s131 = smul.u32 64, %s9
        %p132 = scmp.lt.s32.totalorder %s131, 255
        %s133 = scalar_select %p132, %s131, 255
        %s134 = smul.addr %s133, 4
        %s135 = scalar_lea.vmem %s0, %s134
        %s136 = smul.u32 64, %s9
      $region28: #{meta_learner_forward.12} parent=23 // pred_fallthru
        _
    $region24: #{meta_learner_forward.12} parent=5 // pred_fallthru
      _
    %p137 = scmp.le.s32.totalorder 1, %s9
    %p138 = scmp.lt.s32.totalorder %s9, 5
    %p139 = pnand %p137, %p138
    %p140 = pneg %p139
    // Predicated region
    $region29: #{meta_learner_forward.12} parent=5 // pred_check
      _
    $region30: #{meta_learner_forward.12} parent=5 // pred_check_branch
      %142 = sbr.rel (%p139) target = $region32
    $region31: #{meta_learner_forward.12} parent=5 // pred_region
      %s143 = ssub.s32 %s9, 1
      %s144 = smul.u32 64, %s14
      %p145 = scmp.lt.s32.totalorder %s144, 255
      %s146 = scalar_select %p145, %s144, 255
      %s147 = smul.addr %s146, 4
      %s148 = scalar_lea.vmem %s0, %s147
      %p149 = pneg %p35
      %p150 = pneg %p32
      %p151 = pneg %p56
      %p152 = pneg %p53
      %p153 = pneg %p77
      %p154 = pneg %p74
      %p155 = pneg %p103
      %p156 = pneg %p100
      %s157 = smul.u32 64, %s14
      %p158 = scmp.lt.s32.totalorder %s157, 255
      %s159 = scalar_select %p158, %s157, 255
      %s160 = smul.addr %s159, 8
      %s161 = scalar_lea.vmem %s3, %s160
      %s162 = smul.u32 64, %s14
      %p163 = scmp.lt.s32.totalorder %s162, 255
      %s164 = scalar_select %p163, %s162, 255
      %s165 = smul.addr %s164, 4
      %s166 = scalar_lea.vmem %s0, %s165
      %s167 = smul.u32 64, %s14
      %s168 = smul.u32 64, %s14
      %p169 = scmp.lt.s32.totalorder %s168, 255
      %s170 = scalar_select %p169, %s168, 255
      %s171 = smul.addr %s170, 8
      %s172 = scalar_lea.vmem %s3, %s171
      %s173 = smul.u32 64, %s14
      %v175 = vld [vmem:[%s166] sm:$0xf]
      %v176 = vld [vmem:[%s166 + $0x4] sm:$0xf]
      %v177 = vld [vmem:[%s166 + $0x8] sm:$0xf]
      %v178 = vld [vmem:[%s166 + $0xc] sm:$0xf]
      %v179 = vld [vmem:[%s166 + $0x10] sm:$0xf]
      %v180 = vld [vmem:[%s166 + $0x14] sm:$0xf]
      %v181 = vld [vmem:[%s166 + $0x18] sm:$0xf]
      %v182 = vld [vmem:[%s166 + $0x1c] sm:$0xf]
      %v183 = vld [vmem:[%s166 + $0x20] sm:$0xf]
      %v184 = vld [vmem:[%s166 + $0x24] sm:$0xf]
      %v185 = vld [vmem:[%s166 + $0x28] sm:$0xf]
      %v186 = vld [vmem:[%s166 + $0x2c] sm:$0xf]
      %v187 = vld [vmem:[%s166 + $0x30] sm:$0xf]
      %v188 = vld [vmem:[%s166 + $0x34] sm:$0xf]
      %v189 = vld [vmem:[%s166 + $0x38] sm:$0xf]
      %v190 = vld [vmem:[%s166 + $0x3c] sm:$0xf]
      %v191 = vld [vmem:[%s166 + $0x40] sm:$0xf]
      %v192 = vld [vmem:[%s166 + $0x44] sm:$0xf]
      %v193 = vld [vmem:[%s166 + $0x48] sm:$0xf]
      %v194 = vld [vmem:[%s166 + $0x4c] sm:$0xf]
      %v195 = vld [vmem:[%s166 + $0x50] sm:$0xf]
      %v196 = vld [vmem:[%s166 + $0x54] sm:$0xf]
      %v197 = vld [vmem:[%s166 + $0x58] sm:$0xf]
      %v198 = vld [vmem:[%s166 + $0x5c] sm:$0xf]
      %v199 = vld [vmem:[%s166 + $0x60] sm:$0xf]
      %v200 = vld [vmem:[%s166 + $0x64] sm:$0xf]
      %v201 = vld [vmem:[%s166 + $0x68] sm:$0xf]
      %v202 = vld [vmem:[%s166 + $0x6c] sm:$0xf]
      %v203 = vld [vmem:[%s166 + $0x70] sm:$0xf]
      %v204 = vld [vmem:[%s166 + $0x74] sm:$0xf]
      %v205 = vld [vmem:[%s166 + $0x78] sm:$0xf]
      %v206 = vld [vmem:[%s166 + $0x7c] sm:$0xf]
      %v207 = vld [vmem:[%s166 + $0x80] sm:$0xf]
      %v208 = vld [vmem:[%s166 + $0x84] sm:$0xf]
      %v209 = vld [vmem:[%s166 + $0x88] sm:$0xf]
      %v210 = vld [vmem:[%s166 + $0x8c] sm:$0xf]
      %v211 = vld [vmem:[%s166 + $0x90] sm:$0xf]
      %v212 = vld [vmem:[%s166 + $0x94] sm:$0xf]
      %v213 = vld [vmem:[%s166 + $0x98] sm:$0xf]
      %v214 = vld [vmem:[%s166 + $0x9c] sm:$0xf]
      %v215 = vld [vmem:[%s166 + $0xa0] sm:$0xf]
      %v216 = vld [vmem:[%s166 + $0xa4] sm:$0xf]
      %v217 = vld [vmem:[%s166 + $0xa8] sm:$0xf]
      %v218 = vld [vmem:[%s166 + $0xac] sm:$0xf]
      %v219 = vld [vmem:[%s166 + $0xb0] sm:$0xf]
      %v220 = vld [vmem:[%s166 + $0xb4] sm:$0xf]
      %v221 = vld [vmem:[%s166 + $0xb8] sm:$0xf]
      %v222 = vld [vmem:[%s166 + $0xbc] sm:$0xf]
      %v223 = vld [vmem:[%s166 + $0xc0] sm:$0xf]
      %v224 = vld [vmem:[%s166 + $0xc4] sm:$0xf]
      %v225 = vld [vmem:[%s166 + $0xc8] sm:$0xf]
      %v226 = vld [vmem:[%s166 + $0xcc] sm:$0xf]
      %v227 = vld [vmem:[%s166 + $0xd0] sm:$0xf]
      %v228 = vld [vmem:[%s166 + $0xd4] sm:$0xf]
      %v229 = vld [vmem:[%s166 + $0xd8] sm:$0xf]
      %v230 = vld [vmem:[%s166 + $0xdc] sm:$0xf]
      %v231 = vld [vmem:[%s166 + $0xe0] sm:$0xf]
      %v232 = vld [vmem:[%s166 + $0xe4] sm:$0xf]
      %v233 = vld [vmem:[%s166 + $0xe8] sm:$0xf]
      %v234 = vld [vmem:[%s166 + $0xec] sm:$0xf]
      %v235 = vld [vmem:[%s166 + $0xf0] sm:$0xf]
      %v236 = vld [vmem:[%s166 + $0xf4] sm:$0xf]
      %v237 = vld [vmem:[%s166 + $0xf8] sm:$0xf]
      %v238 = vld [vmem:[%s166 + $0xfc] sm:$0xf]
      %v239 = vld [vmem:[%s1] sm:$0xf]
      %v240 = vld [vmem:[%s1 + $0x4] sm:$0xf]
      %v241 = vld [vmem:[%s1 + $0x8] sm:$0xf]
      %v242 = vld [vmem:[%s1 + $0xc] sm:$0xf]
      %v243 = vld [vmem:[%s1 + $0x10] sm:$0x3]
      %v244 = vld [vmem:[%s2] sm:$0x1]
      %v246 = vlaneseq
      %v247 = vshrl.u32 %v246, 7
      %v248 = vsub.s32 0, %v247
      %v249 = vrot.slane %v244, %v248
      %v315 = vunpack.c.l.b16 %v175
      %v316 = vunpack.c.l.b16 %v176
      %v317 = vunpack.c.l.b16 %v177
      %v318 = vunpack.c.l.b16 %v178
      %v319 = vunpack.c.l.b16 %v179
      %v320 = vunpack.c.l.b16 %v180
      %v321 = vunpack.c.l.b16 %v181
      %v322 = vunpack.c.l.b16 %v182
      %v323 = vunpack.c.l.b16 %v183
      %v324 = vunpack.c.l.b16 %v184
      %v325 = vunpack.c.l.b16 %v185
      %v326 = vunpack.c.l.b16 %v186
      %v327 = vunpack.c.l.b16 %v187
      %v328 = vunpack.c.l.b16 %v188
      %v329 = vunpack.c.l.b16 %v189
      %v330 = vunpack.c.l.b16 %v190
      %v331 = vunpack.c.l.b16 %v191
      %v332 = vunpack.c.l.b16 %v192
      %v333 = vunpack.c.l.b16 %v193
      %v334 = vunpack.c.l.b16 %v194
      %v335 = vunpack.c.l.b16 %v195
      %v336 = vunpack.c.l.b16 %v196
      %v337 = vunpack.c.l.b16 %v197
      %v338 = vunpack.c.l.b16 %v198
      %v339 = vunpack.c.l.b16 %v199
      %v340 = vunpack.c.l.b16 %v200
      %v341 = vunpack.c.l.b16 %v201
      %v342 = vunpack.c.l.b16 %v202
      %v343 = vunpack.c.l.b16 %v203
      %v344 = vunpack.c.l.b16 %v204
      %v345 = vunpack.c.l.b16 %v205
      %v346 = vunpack.c.l.b16 %v206
      %v347 = vunpack.c.l.b16 %v207
      %v348 = vunpack.c.l.b16 %v208
      %v349 = vunpack.c.l.b16 %v209
      %v350 = vunpack.c.l.b16 %v210
      %v351 = vunpack.c.l.b16 %v211
      %v352 = vunpack.c.l.b16 %v212
      %v353 = vunpack.c.l.b16 %v213
      %v354 = vunpack.c.l.b16 %v214
      %v355 = vunpack.c.l.b16 %v215
      %v356 = vunpack.c.l.b16 %v216
      %v357 = vunpack.c.l.b16 %v217
      %v358 = vunpack.c.l.b16 %v218
      %v359 = vunpack.c.l.b16 %v219
      %v360 = vunpack.c.l.b16 %v220
      %v361 = vunpack.c.l.b16 %v221
      %v362 = vunpack.c.l.b16 %v222
      %v363 = vunpack.c.l.b16 %v223
      %v364 = vunpack.c.l.b16 %v224
      %v365 = vunpack.c.l.b16 %v225
      %v366 = vunpack.c.l.b16 %v226
      %v367 = vunpack.c.l.b16 %v227
      %v368 = vunpack.c.l.b16 %v228
      %v369 = vunpack.c.l.b16 %v229
      %v370 = vunpack.c.l.b16 %v230
      %v371 = vunpack.c.l.b16 %v231
      %v372 = vunpack.c.l.b16 %v232
      %v373 = vunpack.c.l.b16 %v233
      %v374 = vunpack.c.l.b16 %v234
      %v375 = vunpack.c.l.b16 %v235
      %v376 = vunpack.c.l.b16 %v236
      %v377 = vunpack.c.l.b16 %v237
      %v378 = vunpack.c.l.b16 %v238
      %v379 = vpack.c.b16 %v316, %v315
      %v380 = vpack.c.b16 %v318, %v317
      %v381 = vpack.c.b16 %v320, %v319
      %v382 = vpack.c.b16 %v322, %v321
      %v383 = vpack.c.b16 %v324, %v323
      %v384 = vpack.c.b16 %v326, %v325
      %v385 = vpack.c.b16 %v328, %v327
      %v386 = vpack.c.b16 %v330, %v329
      %v387 = vpack.c.b16 %v332, %v331
      %v388 = vpack.c.b16 %v334, %v333
      %v389 = vpack.c.b16 %v336, %v335
      %v390 = vpack.c.b16 %v338, %v337
      %v391 = vpack.c.b16 %v340, %v339
      %v392 = vpack.c.b16 %v342, %v341
      %v393 = vpack.c.b16 %v344, %v343
      %v394 = vpack.c.b16 %v346, %v345
      %v395 = vpack.c.b16 %v348, %v347
      %v396 = vpack.c.b16 %v350, %v349
      %v397 = vpack.c.b16 %v352, %v351
      %v398 = vpack.c.b16 %v354, %v353
      %v399 = vpack.c.b16 %v356, %v355
      %v400 = vpack.c.b16 %v358, %v357
      %v401 = vpack.c.b16 %v360, %v359
      %v402 = vpack.c.b16 %v362, %v361
      %v403 = vpack.c.b16 %v364, %v363
      %v404 = vpack.c.b16 %v366, %v365
      %v405 = vpack.c.b16 %v368, %v367
      %v406 = vpack.c.b16 %v370, %v369
      %v407 = vpack.c.b16 %v372, %v371
      %v408 = vpack.c.b16 %v374, %v373
      %v409 = vpack.c.b16 %v376, %v375
      %v410 = vpack.c.b16 %v378, %v377
      %v416 = vunpack.c.l.b16 %v239
      %v417 = vunpack.c.l.b16 %v240
      %v418 = vunpack.c.l.b16 %v241
      %v419 = vunpack.c.l.b16 %v242
      %v420 = vunpack.c.l.b16 %v243
      %v421 = vpack.c.b16 %v417, %v416
      %v422 = vpack.c.b16 %v419, %v418
      %v423 = vpack.c.b16 %v420, %v420
      %vm426 = vcmask 293888
      %v428 = vsel %vm426, %v379, 0
      %v431 = vsel %vm426, %v380, 0
      %v434 = vsel %vm426, %v381, 0
      %v437 = vsel %vm426, %v382, 0
      %v440 = vsel %vm426, %v383, 0
      %v443 = vsel %vm426, %v384, 0
      %v446 = vsel %vm426, %v385, 0
      %v449 = vsel %vm426, %v386, 0
      %v452 = vsel %vm426, %v387, 0
      %v455 = vsel %vm426, %v388, 0
      %v458 = vsel %vm426, %v389, 0
      %v461 = vsel %vm426, %v390, 0
      %v464 = vsel %vm426, %v391, 0
      %v467 = vsel %vm426, %v392, 0
      %v470 = vsel %vm426, %v393, 0
      %v473 = vsel %vm426, %v394, 0
      %v476 = vsel %vm426, %v395, 0
      %v479 = vsel %vm426, %v396, 0
      %v482 = vsel %vm426, %v397, 0
      %v485 = vsel %vm426, %v398, 0
      %v488 = vsel %vm426, %v399, 0
      %v491 = vsel %vm426, %v400, 0
      %v494 = vsel %vm426, %v401, 0
      %v497 = vsel %vm426, %v402, 0
      %v500 = vsel %vm426, %v403, 0
      %v503 = vsel %vm426, %v404, 0
      %v506 = vsel %vm426, %v405, 0
      %v509 = vsel %vm426, %v406, 0
      %v512 = vsel %vm426, %v407, 0
      %v515 = vsel %vm426, %v408, 0
      %v518 = vsel %vm426, %v409, 0
      %v521 = vsel %vm426, %v410, 0
      %vm523 = vcmask 1041408
      %v525 = vsel %vm523, %v423, 0
      %527 = vmatprep.subr.bf16.mxu0 0
      %528 = vmatpush1.bf16.msra.mxu0 %v421
      %529 = vmatprep.subr.bf16.mxu0 0
      %530 = vmatpush1.bf16.msra.mxu0 %v422
      %531 = vmatprep.subr.bf16.mxu0 0
      %532 = vmatpush1.bf16.msra.mxu0 %v525
      %533 = vmatprep.subr.bf16.mxu0 0
      %534 = vmatpush1.bf16.msra.mxu0 0
      %535 = vmatprep.subr.bf16.mxu0 0
      %536 = vmatpush1.bf16.msra.mxu0 0
      %537 = vmatprep.subr.bf16.mxu0 0
      %538 = vmatpush1.bf16.msra.mxu0 0
      %539 = vmatprep.subr.bf16.mxu0 0
      %540 = vmatpush1.bf16.msra.mxu0 0
      %541 = vmatprep.subr.bf16.mxu0 0
      %542 = vmatpush1.bf16.msra.mxu0 0
      %543 = vmatprep.subr.bf16.mxu0 0
      %544 = vmatpush1.bf16.msra.mxu0 0
      %545 = vmatprep.subr.bf16.mxu0 0
      %546 = vmatpush1.bf16.msra.mxu0 0
      %547 = vmatprep.subr.bf16.mxu0 0
      %548 = vmatpush1.bf16.msra.mxu0 0
      %549 = vmatprep.subr.bf16.mxu0 0
      %550 = vmatpush1.bf16.msra.mxu0 0
      %551 = vmatprep.subr.bf16.mxu0 0
      %552 = vmatpush1.bf16.msra.mxu0 0
      %553 = vmatprep.subr.bf16.mxu0 0
      %554 = vmatpush1.bf16.msra.mxu0 0
      %555 = vmatprep.subr.bf16.mxu0 0
      %556 = vmatpush1.bf16.msra.mxu0 0
      %557 = vmatprep.subr.bf16.mxu0 0
      %558 = vmatpush1.bf16.msra.mxu0 0
      %559 = vmatprep.mubr.bf16.mxu0 0
      %560 = vmatmul.mubr.bf16.gmra.mrb[0].mxu0 %v428
      %v561 = vpop.f32.mrb[0].mxu0
      %v562 = vadd.f32 %v249, %v561
      %v563 = vpop.f32.mrb[0].mxu0
      %v564 = vpop.f32.mrb[0].mxu0
      %v565 = vadd.f32 %v249, %v564
      %v566 = vpop.f32.mrb[0].mxu0
      %567 = vmatprep.mubr.bf16.mxu0 0
      %568 = vmatmul.mubr.bf16.gmra.mrb[0].mxu0 %v431
      %v569 = vpop.f32.mrb[0].mxu0
      %v570 = vadd.f32 %v249, %v569
      %v571 = vpop.f32.mrb[0].mxu0
      %v572 = vpop.f32.mrb[0].mxu0
      %v573 = vadd.f32 %v249, %v572
      %v574 = vpop.f32.mrb[0].mxu0
      %575 = vmatprep.mubr.bf16.mxu0 0
      %576 = vmatmul.mubr.bf16.gmra.mrb[0].mxu0 %v434
      %v577 = vpop.f32.mrb[0].mxu0
      %v578 = vadd.f32 %v249, %v577
      %v579 = vpop.f32.mrb[0].mxu0
      %v580 = vpop.f32.mrb[0].mxu0
      %v581 = vadd.f32 %v249, %v580
      %v582 = vpop.f32.mrb[0].mxu0
      %583 = vmatprep.mubr.bf16.mxu0 0
      %584 = vmatmul.mubr.bf16.gmra.mrb[0].mxu0 %v437
      %v585 = vpop.f32.mrb[0].mxu0
      %v586 = vadd.f32 %v249, %v585
      %v587 = vpop.f32.mrb[0].mxu0
      %v588 = vpop.f32.mrb[0].mxu0
      %v589 = vadd.f32 %v249, %v588
      %v590 = vpop.f32.mrb[0].mxu0
      %591 = vmatprep.mubr.bf16.mxu0 0
      %592 = vmatmul.mubr.bf16.gmra.mrb[0].mxu0 %v440
      %v593 = vpop.f32.mrb[0].mxu0
      %v594 = vadd.f32 %v249, %v593
      %v595 = vpop.f32.mrb[0].mxu0
      %v596 = vpop.f32.mrb[0].mxu0
      %v597 = vadd.f32 %v249, %v596
      %v598 = vpop.f32.mrb[0].mxu0
      %599 = vmatprep.mubr.bf16.mxu0 0
      %600 = vmatmul.mubr.bf16.gmra.mrb[0].mxu0 %v443
      %v601 = vpop.f32.mrb[0].mxu0
      %v602 = vadd.f32 %v249, %v601
      %v603 = vpop.f32.mrb[0].mxu0
      %v604 = vpop.f32.mrb[0].mxu0
      %v605 = vadd.f32 %v249, %v604
      %v606 = vpop.f32.mrb[0].mxu0
      %607 = vmatprep.mubr.bf16.mxu0 0
      %608 = vmatmul.mubr.bf16.gmra.mrb[0].mxu0 %v446
      %v609 = vpop.f32.mrb[0].mxu0
      %v610 = vadd.f32 %v249, %v609
      %v611 = vpop.f32.mrb[0].mxu0
      %v612 = vpop.f32.mrb[0].mxu0
      %v613 = vadd.f32 %v249, %v612
      %v614 = vpop.f32.mrb[0].mxu0
      %615 = vmatprep.mubr.bf16.mxu0 0
      %616 = vmatmul.mubr.bf16.gmra.mrb[0].mxu0 %v449
      %v617 = vpop.f32.mrb[0].mxu0
      %v618 = vadd.f32 %v249, %v617
      %v619 = vpop.f32.mrb[0].mxu0
      %v620 = vpop.f32.mrb[0].mxu0
      %v621 = vadd.f32 %v249, %v620
      %v622 = vpop.f32.mrb[0].mxu0
      %623 = vmatprep.mubr.bf16.mxu0 0
      %624 = vmatmul.mubr.bf16.gmra.mrb[0].mxu0 %v452
      %v625 = vpop.f32.mrb[0].mxu0
      %v626 = vadd.f32 %v249, %v625
      %v627 = vpop.f32.mrb[0].mxu0
      %v628 = vpop.f32.mrb[0].mxu0
      %v629 = vadd.f32 %v249, %v628
      %v630 = vpop.f32.mrb[0].mxu0
      %631 = vmatprep.mubr.bf16.mxu0 0
      %632 = vmatmul.mubr.bf16.gmra.mrb[0].mxu0 %v455
      %v633 = vpop.f32.mrb[0].mxu0
      %v634 = vadd.f32 %v249, %v633
      %v635 = vpop.f32.mrb[0].mxu0
      %v636 = vpop.f32.mrb[0].mxu0
      %v637 = vadd.f32 %v249, %v636
      %v638 = vpop.f32.mrb[0].mxu0
      %639 = vmatprep.mubr.bf16.mxu0 0
      %640 = vmatmul.mubr.bf16.gmra.mrb[0].mxu0 %v458
      %v641 = vpop.f32.mrb[0].mxu0
      %v642 = vadd.f32 %v249, %v641
      %v643 = vpop.f32.mrb[0].mxu0
      %v644 = vpop.f32.mrb[0].mxu0
      %v645 = vadd.f32 %v249, %v644
      %v646 = vpop.f32.mrb[0].mxu0
      %647 = vmatprep.mubr.bf16.mxu0 0
      %648 = vmatmul.mubr.bf16.gmra.mrb[0].mxu0 %v461
      %v649 = vpop.f32.mrb[0].mxu0
      %v650 = vadd.f32 %v249, %v649
      %v651 = vpop.f32.mrb[0].mxu0
      %v652 = vpop.f32.mrb[0].mxu0
      %v653 = vadd.f32 %v249, %v652
      %v654 = vpop.f32.mrb[0].mxu0
      %655 = vmatprep.mubr.bf16.mxu0 0
      %656 = vmatmul.mubr.bf16.gmra.mrb[0].mxu0 %v464
      %v657 = vpop.f32.mrb[0].mxu0
      %v658 = vadd.f32 %v249, %v657
      %v659 = vpop.f32.mrb[0].mxu0
      %v660 = vpop.f32.mrb[0].mxu0
      %v661 = vadd.f32 %v249, %v660
      %v662 = vpop.f32.mrb[0].mxu0
      %663 = vmatprep.mubr.bf16.mxu0 0
      %664 = vmatmul.mubr.bf16.gmra.mrb[0].mxu0 %v467
      %v665 = vpop.f32.mrb[0].mxu0
      %v666 = vadd.f32 %v249, %v665
      %v667 = vpop.f32.mrb[0].mxu0
      %v668 = vpop.f32.mrb[0].mxu0
      %v669 = vadd.f32 %v249, %v668
      %v670 = vpop.f32.mrb[0].mxu0
      %671 = vmatprep.mubr.bf16.mxu0 0
      %672 = vmatmul.mubr.bf16.gmra.mrb[0].mxu0 %v470
      %v673 = vpop.f32.mrb[0].mxu0
      %v674 = vadd.f32 %v249, %v673
      %v675 = vpop.f32.mrb[0].mxu0
      %v676 = vpop.f32.mrb[0].mxu0
      %v677 = vadd.f32 %v249, %v676
      %v678 = vpop.f32.mrb[0].mxu0
      %679 = vmatprep.mubr.bf16.mxu0 0
      %680 = vmatmul.mubr.bf16.gmra.mrb[0].mxu0 %v473
      %v681 = vpop.f32.mrb[0].mxu0
      %v682 = vadd.f32 %v249, %v681
      %v683 = vpop.f32.mrb[0].mxu0
      %v684 = vpop.f32.mrb[0].mxu0
      %v685 = vadd.f32 %v249, %v684
      %v686 = vpop.f32.mrb[0].mxu0
      %687 = vmatprep.mubr.bf16.mxu0 0
      %688 = vmatmul.mubr.bf16.gmra.mrb[0].mxu0 %v476
      %v689 = vpop.f32.mrb[0].mxu0
      %v690 = vadd.f32 %v249, %v689
      %v691 = vpop.f32.mrb[0].mxu0
      %v692 = vpop.f32.mrb[0].mxu0
      %v693 = vadd.f32 %v249, %v692
      %v694 = vpop.f32.mrb[0].mxu0
      %695 = vmatprep.mubr.bf16.mxu0 0
      %696 = vmatmul.mubr.bf16.gmra.mrb[0].mxu0 %v479
      %v697 = vpop.f32.mrb[0].mxu0
      %v698 = vadd.f32 %v249, %v697
      %v699 = vpop.f32.mrb[0].mxu0
      %v700 = vpop.f32.mrb[0].mxu0
      %v701 = vadd.f32 %v249, %v700
      %v702 = vpop.f32.mrb[0].mxu0
      %703 = vmatprep.mubr.bf16.mxu0 0
      %704 = vmatmul.mubr.bf16.gmra.mrb[0].mxu0 %v482
      %v705 = vpop.f32.mrb[0].mxu0
      %v706 = vadd.f32 %v249, %v705
      %v707 = vpop.f32.mrb[0].mxu0
      %v708 = vpop.f32.mrb[0].mxu0
      %v709 = vadd.f32 %v249, %v708
      %v710 = vpop.f32.mrb[0].mxu0
      %711 = vmatprep.mubr.bf16.mxu0 0
      %712 = vmatmul.mubr.bf16.gmra.mrb[0].mxu0 %v485
      %v713 = vpop.f32.mrb[0].mxu0
      %v714 = vadd.f32 %v249, %v713
      %v715 = vpop.f32.mrb[0].mxu0
      %v716 = vpop.f32.mrb[0].mxu0
      %v717 = vadd.f32 %v249, %v716
      %v718 = vpop.f32.mrb[0].mxu0
      %719 = vmatprep.mubr.bf16.mxu0 0
      %720 = vmatmul.mubr.bf16.gmra.mrb[0].mxu0 %v488
      %v721 = vpop.f32.mrb[0].mxu0
      %v722 = vadd.f32 %v249, %v721
      %v723 = vpop.f32.mrb[0].mxu0
      %v724 = vpop.f32.mrb[0].mxu0
      %v725 = vadd.f32 %v249, %v724
      %v726 = vpop.f32.mrb[0].mxu0
      %727 = vmatprep.mubr.bf16.mxu0 0
      %728 = vmatmul.mubr.bf16.gmra.mrb[0].mxu0 %v491
      %v729 = vpop.f32.mrb[0].mxu0
      %v730 = vadd.f32 %v249, %v729
      %v731 = vpop.f32.mrb[0].mxu0
      %v732 = vpop.f32.mrb[0].mxu0
      %v733 = vadd.f32 %v249, %v732
      %v734 = vpop.f32.mrb[0].mxu0
      %735 = vmatprep.mubr.bf16.mxu0 0
      %736 = vmatmul.mubr.bf16.gmra.mrb[0].mxu0 %v494
      %v737 = vpop.f32.mrb[0].mxu0
      %v738 = vadd.f32 %v249, %v737
      %v739 = vpop.f32.mrb[0].mxu0
      %v740 = vpop.f32.mrb[0].mxu0
      %v741 = vadd.f32 %v249, %v740
      %v742 = vpop.f32.mrb[0].mxu0
      %743 = vmatprep.mubr.bf16.mxu0 0
      %744 = vmatmul.mubr.bf16.gmra.mrb[0].mxu0 %v497
      %v745 = vpop.f32.mrb[0].mxu0
      %v746 = vadd.f32 %v249, %v745
      %v747 = vpop.f32.mrb[0].mxu0
      %v748 = vpop.f32.mrb[0].mxu0
      %v749 = vadd.f32 %v249, %v748
      %v750 = vpop.f32.mrb[0].mxu0
      %751 = vmatprep.mubr.bf16.mxu0 0
      %752 = vmatmul.mubr.bf16.gmra.mrb[0].mxu0 %v500
      %v753 = vpop.f32.mrb[0].mxu0
      %v754 = vadd.f32 %v249, %v753
      %v755 = vpop.f32.mrb[0].mxu0
      %v756 = vpop.f32.mrb[0].mxu0
      %v757 = vadd.f32 %v249, %v756
      %v758 = vpop.f32.mrb[0].mxu0
      %759 = vmatprep.mubr.bf16.mxu0 0
      %760 = vmatmul.mubr.bf16.gmra.mrb[0].mxu0 %v503
      %v761 = vpop.f32.mrb[0].mxu0
      %v762 = vadd.f32 %v249, %v761
      %v763 = vpop.f32.mrb[0].mxu0
      %v764 = vpop.f32.mrb[0].mxu0
      %v765 = vadd.f32 %v249, %v764
      %v766 = vpop.f32.mrb[0].mxu0
      %767 = vmatprep.mubr.bf16.mxu0 0
      %768 = vmatmul.mubr.bf16.gmra.mrb[0].mxu0 %v506
      %v769 = vpop.f32.mrb[0].mxu0
      %v770 = vadd.f32 %v249, %v769
      %v771 = vpop.f32.mrb[0].mxu0
      %v772 = vpop.f32.mrb[0].mxu0
      %v773 = vadd.f32 %v249, %v772
      %v774 = vpop.f32.mrb[0].mxu0
      %775 = vmatprep.mubr.bf16.mxu0 0
      %776 = vmatmul.mubr.bf16.gmra.mrb[0].mxu0 %v509
      %v777 = vpop.f32.mrb[0].mxu0
      %v778 = vadd.f32 %v249, %v777
      %v779 = vpop.f32.mrb[0].mxu0
      %v780 = vpop.f32.mrb[0].mxu0
      %v781 = vadd.f32 %v249, %v780
      %v782 = vpop.f32.mrb[0].mxu0
      %783 = vmatprep.mubr.bf16.mxu0 0
      %784 = vmatmul.mubr.bf16.gmra.mrb[0].mxu0 %v512
      %v785 = vpop.f32.mrb[0].mxu0
      %v786 = vadd.f32 %v249, %v785
      %v787 = vpop.f32.mrb[0].mxu0
      %v788 = vpop.f32.mrb[0].mxu0
      %v789 = vadd.f32 %v249, %v788
      %v790 = vpop.f32.mrb[0].mxu0
      %791 = vmatprep.mubr.bf16.mxu0 0
      %792 = vmatmul.mubr.bf16.gmra.mrb[0].mxu0 %v515
      %v793 = vpop.f32.mrb[0].mxu0
      %v794 = vadd.f32 %v249, %v793
      %v795 = vpop.f32.mrb[0].mxu0
      %v796 = vpop.f32.mrb[0].mxu0
      %v797 = vadd.f32 %v249, %v796
      %v798 = vpop.f32.mrb[0].mxu0
      %799 = vmatprep.mubr.bf16.mxu0 0
      %800 = vmatmul.mubr.bf16.gmra.mrb[0].mxu0 %v518
      %v801 = vpop.f32.mrb[0].mxu0
      %v802 = vadd.f32 %v249, %v801
      %v803 = vpop.f32.mrb[0].mxu0
      %v804 = vpop.f32.mrb[0].mxu0
      %v805 = vadd.f32 %v249, %v804
      %v806 = vpop.f32.mrb[0].mxu0
      %807 = vmatprep.mubr.bf16.mxu0 0
      %808 = vmatmul.mubr.bf16.gmra.mrb[0].mxu0 %v521
      %v809 = vpop.f32.mrb[0].mxu0
      %v810 = vadd.f32 %v249, %v809
      %v811 = vpop.f32.mrb[0].mxu0
      %v812 = vpop.f32.mrb[0].mxu0
      %v813 = vadd.f32 %v249, %v812
      %v814 = vpop.f32.mrb[0].mxu0
      %815 = vdwg.mxu0
      %v816 = vmax.f32 %v562, 0.0
      %v817 = vmax.f32 %v565, 0.0
      %v818 = vmax.f32 %v570, 0.0
      %v819 = vmax.f32 %v573, 0.0
      %v820 = vmax.f32 %v578, 0.0
      %v821 = vmax.f32 %v581, 0.0
      %v822 = vmax.f32 %v586, 0.0
      %v823 = vmax.f32 %v589, 0.0
      %v824 = vmax.f32 %v594, 0.0
      %v825 = vmax.f32 %v597, 0.0
      %v826 = vmax.f32 %v602, 0.0
      %v827 = vmax.f32 %v605, 0.0
      %v828 = vmax.f32 %v610, 0.0
      %v829 = vmax.f32 %v613, 0.0
      %v830 = vmax.f32 %v618, 0.0
      %v831 = vmax.f32 %v621, 0.0
      %v832 = vmax.f32 %v626, 0.0
      %v833 = vmax.f32 %v629, 0.0
      %v834 = vmax.f32 %v634, 0.0
      %v835 = vmax.f32 %v637, 0.0
      %v836 = vmax.f32 %v642, 0.0
      %v837 = vmax.f32 %v645, 0.0
      %v838 = vmax.f32 %v650, 0.0
      %v839 = vmax.f32 %v653, 0.0
      %v840 = vmax.f32 %v658, 0.0
      %v841 = vmax.f32 %v661, 0.0
      %v842 = vmax.f32 %v666, 0.0
      %v843 = vmax.f32 %v669, 0.0
      %v844 = vmax.f32 %v674, 0.0
      %v845 = vmax.f32 %v677, 0.0
      %v846 = vmax.f32 %v682, 0.0
      %v847 = vmax.f32 %v685, 0.0
      %v848 = vmax.f32 %v690, 0.0
      %v849 = vmax.f32 %v693, 0.0
      %v850 = vmax.f32 %v698, 0.0
      %v851 = vmax.f32 %v701, 0.0
      %v852 = vmax.f32 %v706, 0.0
      %v853 = vmax.f32 %v709, 0.0
      %v854 = vmax.f32 %v714, 0.0
      %v855 = vmax.f32 %v717, 0.0
      %v856 = vmax.f32 %v722, 0.0
      %v857 = vmax.f32 %v725, 0.0
      %v858 = vmax.f32 %v730, 0.0
      %v859 = vmax.f32 %v733, 0.0
      %v860 = vmax.f32 %v738, 0.0
      %v861 = vmax.f32 %v741, 0.0
      %v862 = vmax.f32 %v746, 0.0
      %v863 = vmax.f32 %v749, 0.0
      %v864 = vmax.f32 %v754, 0.0
      %v865 = vmax.f32 %v757, 0.0
      %v866 = vmax.f32 %v762, 0.0
      %v867 = vmax.f32 %v765, 0.0
      %v868 = vmax.f32 %v770, 0.0
      %v869 = vmax.f32 %v773, 0.0
      %v870 = vmax.f32 %v778, 0.0
      %v871 = vmax.f32 %v781, 0.0
      %v872 = vmax.f32 %v786, 0.0
      %v873 = vmax.f32 %v789, 0.0
      %v874 = vmax.f32 %v794, 0.0
      %v875 = vmax.f32 %v797, 0.0
      %v876 = vmax.f32 %v802, 0.0
      %v877 = vmax.f32 %v805, 0.0
      %v878 = vmax.f32 %v810, 0.0
      %v879 = vmax.f32 %v813, 0.0
      %vm880 = vcmask 130048
      %881 = vst.msk [vmem:[%s172] sm:$0xff] %vm880, %v816
      %882 = vst.msk [vmem:[%s172 + $0x8] sm:$0xff] %vm880, %v817
      %883 = vst.msk [vmem:[%s172 + $0x10] sm:$0xff] %vm880, %v818
      %884 = vst.msk [vmem:[%s172 + $0x18] sm:$0xff] %vm880, %v819
      %885 = vst.msk [vmem:[%s172 + $0x20] sm:$0xff] %vm880, %v820
      %886 = vst.msk [vmem:[%s172 + $0x28] sm:$0xff] %vm880, %v821
      %887 = vst.msk [vmem:[%s172 + $0x30] sm:$0xff] %vm880, %v822
      %888 = vst.msk [vmem:[%s172 + $0x38] sm:$0xff] %vm880, %v823
      %889 = vst.msk [vmem:[%s172 + $0x40] sm:$0xff] %vm880, %v824
      %890 = vst.msk [vmem:[%s172 + $0x48] sm:$0xff] %vm880, %v825
      %891 = vst.msk [vmem:[%s172 + $0x50] sm:$0xff] %vm880, %v826
      %892 = vst.msk [vmem:[%s172 + $0x58] sm:$0xff] %vm880, %v827
      %893 = vst.msk [vmem:[%s172 + $0x60] sm:$0xff] %vm880, %v828
      %894 = vst.msk [vmem:[%s172 + $0x68] sm:$0xff] %vm880, %v829
      %895 = vst.msk [vmem:[%s172 + $0x70] sm:$0xff] %vm880, %v830
      %896 = vst.msk [vmem:[%s172 + $0x78] sm:$0xff] %vm880, %v831
      %897 = vst.msk [vmem:[%s172 + $0x80] sm:$0xff] %vm880, %v832
      %898 = vst.msk [vmem:[%s172 + $0x88] sm:$0xff] %vm880, %v833
      %899 = vst.msk [vmem:[%s172 + $0x90] sm:$0xff] %vm880, %v834
      %900 = vst.msk [vmem:[%s172 + $0x98] sm:$0xff] %vm880, %v835
      %901 = vst.msk [vmem:[%s172 + $0xa0] sm:$0xff] %vm880, %v836
      %902 = vst.msk [vmem:[%s172 + $0xa8] sm:$0xff] %vm880, %v837
      %903 = vst.msk [vmem:[%s172 + $0xb0] sm:$0xff] %vm880, %v838
      %904 = vst.msk [vmem:[%s172 + $0xb8] sm:$0xff] %vm880, %v839
      %905 = vst.msk [vmem:[%s172 + $0xc0] sm:$0xff] %vm880, %v840
      %906 = vst.msk [vmem:[%s172 + $0xc8] sm:$0xff] %vm880, %v841
      %907 = vst.msk [vmem:[%s172 + $0xd0] sm:$0xff] %vm880, %v842
      %908 = vst.msk [vmem:[%s172 + $0xd8] sm:$0xff] %vm880, %v843
      %909 = vst.msk [vmem:[%s172 + $0xe0] sm:$0xff] %vm880, %v844
      %910 = vst.msk [vmem:[%s172 + $0xe8] sm:$0xff] %vm880, %v845
      %911 = vst.msk [vmem:[%s172 + $0xf0] sm:$0xff] %vm880, %v846
      %912 = vst.msk [vmem:[%s172 + $0xf8] sm:$0xff] %vm880, %v847
      %913 = vst.msk [vmem:[%s172 + $0x100] sm:$0xff] %vm880, %v848
      %914 = vst.msk [vmem:[%s172 + $0x108] sm:$0xff] %vm880, %v849
      %915 = vst.msk [vmem:[%s172 + $0x110] sm:$0xff] %vm880, %v850
      %916 = vst.msk [vmem:[%s172 + $0x118] sm:$0xff] %vm880, %v851
      %917 = vst.msk [vmem:[%s172 + $0x120] sm:$0xff] %vm880, %v852
      %918 = vst.msk [vmem:[%s172 + $0x128] sm:$0xff] %vm880, %v853
      %919 = vst.msk [vmem:[%s172 + $0x130] sm:$0xff] %vm880, %v854
      %920 = vst.msk [vmem:[%s172 + $0x138] sm:$0xff] %vm880, %v855
      %921 = vst.msk [vmem:[%s172 + $0x140] sm:$0xff] %vm880, %v856
      %922 = vst.msk [vmem:[%s172 + $0x148] sm:$0xff] %vm880, %v857
      %923 = vst.msk [vmem:[%s172 + $0x150] sm:$0xff] %vm880, %v858
      %924 = vst.msk [vmem:[%s172 + $0x158] sm:$0xff] %vm880, %v859
      %925 = vst.msk [vmem:[%s172 + $0x160] sm:$0xff] %vm880, %v860
      %926 = vst.msk [vmem:[%s172 + $0x168] sm:$0xff] %vm880, %v861
      %927 = vst.msk [vmem:[%s172 + $0x170] sm:$0xff] %vm880, %v862
      %928 = vst.msk [vmem:[%s172 + $0x178] sm:$0xff] %vm880, %v863
      %929 = vst.msk [vmem:[%s172 + $0x180] sm:$0xff] %vm880, %v864
      %930 = vst.msk [vmem:[%s172 + $0x188] sm:$0xff] %vm880, %v865
      %931 = vst.msk [vmem:[%s172 + $0x190] sm:$0xff] %vm880, %v866
      %932 = vst.msk [vmem:[%s172 + $0x198] sm:$0xff] %vm880, %v867
      %933 = vst.msk [vmem:[%s172 + $0x1a0] sm:$0xff] %vm880, %v868
      %934 = vst.msk [vmem:[%s172 + $0x1a8] sm:$0xff] %vm880, %v869
      %935 = vst.msk [vmem:[%s172 + $0x1b0] sm:$0xff] %vm880, %v870
      %936 = vst.msk [vmem:[%s172 + $0x1b8] sm:$0xff] %vm880, %v871
      %937 = vst.msk [vmem:[%s172 + $0x1c0] sm:$0xff] %vm880, %v872
      %938 = vst.msk [vmem:[%s172 + $0x1c8] sm:$0xff] %vm880, %v873
      %939 = vst.msk [vmem:[%s172 + $0x1d0] sm:$0xff] %vm880, %v874
      %940 = vst.msk [vmem:[%s172 + $0x1d8] sm:$0xff] %vm880, %v875
      %941 = vst.msk [vmem:[%s172 + $0x1e0] sm:$0xff] %vm880, %v876
      %942 = vst.msk [vmem:[%s172 + $0x1e8] sm:$0xff] %vm880, %v877
      %943 = vst.msk [vmem:[%s172 + $0x1f0] sm:$0xff] %vm880, %v878
      %944 = vst.msk [vmem:[%s172 + $0x1f8] sm:$0xff] %vm880, %v879
      %s945 = smul.u32 64, %s14
      %p946 = scmp.lt.s32.totalorder %s945, 255
      %s947 = scalar_select %p946, %s945, 255
      %s948 = smul.addr %s947, 8
      %s949 = scalar_lea.vmem %s3, %s948
      // Predicated region
      $region33: #{meta_learner_forward.12} parent=31 // pred_check
        %p950 = pneg %p100
      $region34: #{meta_learner_forward.12} parent=31 // pred_check_branch
        %952 = sbr.rel (%p950) target = $region36
      $region35: #{meta_learner_forward.12} parent=31 // pred_region
        %s953 = smul.u32 64, %s14
      $region36: #{meta_learner_forward.12} parent=31 // pred_fallthru
        _
    $region32: #{meta_learner_forward.12} parent=5 // pred_fallthru
      _
    %p954 = scmp.le.s32.totalorder 2, %s9
    // Predicated region
    $region37: #{meta_learner_forward.12} parent=5 // pred_check
      %p955 = pneg %p954
    $region38: #{meta_learner_forward.12} parent=5 // pred_check_branch
      %957 = sbr.rel (%p955) target = $region40
    $region39: #{meta_learner_forward.12} parent=5 // pred_region
      %s958 = ssub.s32 %s9, 2
      // Predicated region
      $region41: #{meta_learner_forward.12} parent=39 // pred_check
        %p959 = pneg %p106
      $region42: #{meta_learner_forward.12} parent=39 // pred_check_branch
        %961 = sbr.rel (%p959) target = $region44
      $region43: #{meta_learner_forward.12} parent=39 // pred_region
        %s962 = smul.u32 64, %s15
        %p963 = scmp.lt.s32.totalorder %s962, 255
        %s964 = scalar_select %p963, %s962, 255
        %s965 = smul.addr %s964, 8
        %s966 = scalar_lea.vmem %s3, %s965
      $region44: #{meta_learner_forward.12} parent=39 // pred_fallthru
        _
    $region40: #{meta_learner_forward.12} parent=5 // pred_fallthru
      _
  $region6: #{meta_learner_forward.12} parent=0 // loop_footer
    %s13 = sadd.s32 1, %s9
  $region7: #{meta_learner_forward.12} parent=0 // loop_footer_branch
    %8 = sbr.rel target = $region3
  $region8: #{meta_learner_forward.12} parent=0 // loop_exit
    _

// kernel: meta_learner_forward.13
$region0: #{meta_learner_forward.13}
  #allocation0 [shape = 'u32[]', space=smem, size = 0x4, offset = 0x4, fixed_abs, tag = 'smem constant byte address 0x4 - core index']
  #allocation1 [shape = 'u32[144,128]{1,0:T(1,128)}', space=vmem, size = 0x12000, scoped, tag = 'internal scratch']
  %s0 = inlined_call_operand.vmem [shape: bf16[512,144], index: 0, kind: input, shape index: {}]
  %s1 = inlined_call_operand.vmem [shape: bf16[144,16], index: 1, kind: input, shape index: {}]
  %s2 = inlined_call_operand.vmem [shape: f32[1,16], index: 2, kind: input, shape index: {}]
  %s3 = inlined_call_operand.vmem [shape: f32[512,16], index: 3, kind: output, shape index: {}]
  %s4 = sld [smem:[#allocation0]]
  $region45: #{meta_learner_forward.13} parent=0
    _
  %s6 = ssub.s32 1, %s4
  %s7 = scalar_select 0, %s6, %s4
  loop: start=0, step=1, limit=4
  $region2: #{meta_learner_forward.13} parent=0 // loop_pre_header
    _
  $region3: #{meta_learner_forward.13} parent=0 // loop_header
    %s9 = sphi 0, %s13
    %p10 = scmp.ge.s32.totalorder %s9, 4
    %s19 = sphi 0, %s21
    %s22 = sphi 0, %s19
    %s23 = sphi 0, %s22
    %s39 = sphi 0, %s23
    %s43 = sphi 0, %s43
    %s45 = sphi 0, %s43
    %s46 = sphi 0, %s45
    %s60 = sphi 0, %s46
    %s64 = sphi 0, %s64
    %s66 = sphi 0, %s64
    %s67 = sphi 0, %s66
    %s81 = sphi 0, %s67
    %s87 = sphi 0, %s89
    %s90 = sphi 0, %s87
    %s91 = sphi 0, %s90
    %s107 = sphi 0, %s91
  $region4: #{meta_learner_forward.13} parent=0 // loop_header_branch
    %12 = sbr.rel (%p10) target = $region8
  $region5: #{meta_learner_forward.13} parent=0 // loop_body
    %s14 = ssub.s32 %s9, 1
    %s15 = ssub.s32 %s9, 2
    %s16 = sadd.s32 %s9, 1
    %s17 = ssub.s32 %s9, %s16
    %p18 = scmp.eq.s32.totalorder %s17, 0
    %s20 = sadd.s32 %s19, 1
    %s21 = scalar_select %p18, %s19, %s20
    %p24 = pneg %p18
    %p25 = scmp.eq.s32.totalorder %s9, 1
    %p26 = por %p24, %p25
    %p27 = scmp.ne.s32.totalorder %s19, %s22
    %p28 = scmp.eq.s32.totalorder %s9, 0
    %p29 = por %p27, %p28
    %p30 = scmp.ne.s32.totalorder %s19, %s22
    %p31 = scmp.eq.s32.totalorder %s14, 1
    %p32 = por %p30, %p31
    %p33 = scmp.ne.s32.totalorder %s22, %s23
    %p34 = scmp.eq.s32.totalorder %s14, 0
    %p35 = por %p33, %p34
    %p36 = scmp.ne.s32.totalorder %s22, %s23
    %p37 = scmp.eq.s32.totalorder %s15, 1
    %p38 = por %p36, %p37
    %p40 = scmp.ne.s32.totalorder %s23, %s39
    %p41 = scmp.eq.s32.totalorder %s15, 0
    %p42 = por %p40, %p41
    %s44 = sadd.s32 %s43, 1
    %p47 = scmp.eq.s32.totalorder %s9, 1
    %p48 = scmp.ne.s32.totalorder %s43, %s45
    %p49 = scmp.eq.s32.totalorder %s9, 0
    %p50 = por %p48, %p49
    %p51 = scmp.ne.s32.totalorder %s43, %s45
    %p52 = scmp.eq.s32.totalorder %s14, 1
    %p53 = por %p51, %p52
    %p54 = scmp.ne.s32.totalorder %s45, %s46
    %p55 = scmp.eq.s32.totalorder %s14, 0
    %p56 = por %p54, %p55
    %p57 = scmp.ne.s32.totalorder %s45, %s46
    %p58 = scmp.eq.s32.totalorder %s15, 1
    %p59 = por %p57, %p58
    %p61 = scmp.ne.s32.totalorder %s46, %s60
    %p62 = scmp.eq.s32.totalorder %s15, 0
    %p63 = por %p61, %p62
    %s65 = sadd.s32 %s64, 1
    %p68 = scmp.eq.s32.totalorder %s9, 1
    %p69 = scmp.ne.s32.totalorder %s64, %s66
    %p70 = scmp.eq.s32.totalorder %s9, 0
    %p71 = por %p69, %p70
    %p72 = scmp.ne.s32.totalorder %s64, %s66
    %p73 = scmp.eq.s32.totalorder %s14, 1
    %p74 = por %p72, %p73
    %p75 = scmp.ne.s32.totalorder %s66, %s67
    %p76 = scmp.eq.s32.totalorder %s14, 0
    %p77 = por %p75, %p76
    %p78 = scmp.ne.s32.totalorder %s66, %s67
    %p79 = scmp.eq.s32.totalorder %s15, 1
    %p80 = por %p78, %p79
    %p82 = scmp.ne.s32.totalorder %s67, %s81
    %p83 = scmp.eq.s32.totalorder %s15, 0
    %p84 = por %p82, %p83
    %s85 = ssub.s32 %s9, %s16
    %p86 = scmp.eq.s32.totalorder %s85, 0
    %s88 = sadd.s32 %s87, 1
    %s89 = scalar_select %p86, %s87, %s88
    %p92 = pneg %p86
    %p93 = scmp.eq.s32.totalorder %s9, 1
    %p94 = por %p92, %p93
    %p95 = scmp.ne.s32.totalorder %s87, %s90
    %p96 = scmp.eq.s32.totalorder %s9, 0
    %p97 = por %p95, %p96
    %p98 = scmp.ne.s32.totalorder %s87, %s90
    %p99 = scmp.eq.s32.totalorder %s14, 1
    %p100 = por %p98, %p99
    %p101 = scmp.ne.s32.totalorder %s90, %s91
    %p102 = scmp.eq.s32.totalorder %s14, 0
    %p103 = por %p101, %p102
    %p104 = scmp.ne.s32.totalorder %s90, %s91
    %p105 = scmp.eq.s32.totalorder %s15, 1
    %p106 = por %p104, %p105
    %p108 = scmp.ne.s32.totalorder %s91, %s107
    %p109 = scmp.eq.s32.totalorder %s15, 0
    %p110 = por %p108, %p109
    %p111 = scmp.le.s32.totalorder 1, %s9
    %p112 = scmp.lt.s32.totalorder %s9, 3
    %p113 = pnand %p111, %p112
    %p114 = pneg %p113
    // Predicated region
    $region9: #{meta_learner_forward.13} parent=5 // pred_check
      _
    $region10: #{meta_learner_forward.13} parent=5 // pred_check_branch
      %116 = sbr.rel (%p113) target = $region12
    $region11: #{meta_learner_forward.13} parent=5 // pred_region
      %s117 = ssub.s32 %s9, 1
      // Predicated region
      $region13: #{meta_learner_forward.13} parent=11 // pred_check
        %p118 = pneg %p56
      $region14: #{meta_learner_forward.13} parent=11 // pred_check_branch
        %120 = sbr.rel (%p118) target = $region16
      $region15: #{meta_learner_forward.13} parent=11 // pred_region
        _
      $region16: #{meta_learner_forward.13} parent=11 // pred_fallthru
        _
      // Predicated region
      $region17: #{meta_learner_forward.13} parent=11 // pred_check
        %p121 = pneg %p77
      $region18: #{meta_learner_forward.13} parent=11 // pred_check_branch
        %123 = sbr.rel (%p121) target = $region20
      $region19: #{meta_learner_forward.13} parent=11 // pred_region
        _
      $region20: #{meta_learner_forward.13} parent=11 // pred_fallthru
        _
    $region12: #{meta_learner_forward.13} parent=5 // pred_fallthru
      _
    %p124 = scmp.lt.s32.totalorder %s9, 2
    // Predicated region
    $region21: #{meta_learner_forward.13} parent=5 // pred_check
      %p125 = pneg %p124
    $region22: #{meta_learner_forward.13} parent=5 // pred_check_branch
      %127 = sbr.rel (%p125) target = $region24
    $region23: #{meta_learner_forward.13} parent=5 // pred_region
      // Predicated region
      $region25: #{meta_learner_forward.13} parent=23 // pred_check
        %p128 = pneg %p29
      $region26: #{meta_learner_forward.13} parent=23 // pred_check_branch
        %130 = sbr.rel (%p128) target = $region28
      $region27: #{meta_learner_forward.13} parent=23 // pred_region
        %s131 = smul.u32 32, %s9
        %p132 = scmp.lt.s32.totalorder %s131, 63
        %s133 = scalar_select %p132, %s131, 63
        %s134 = smul.addr %s133, 2
        %s135 = smul.addr %s134, 4
        %s136 = scalar_lea.vmem %s0, %s135
        %s137 = smul.u32 32, %s9
      $region28: #{meta_learner_forward.13} parent=23 // pred_fallthru
        _
    $region24: #{meta_learner_forward.13} parent=5 // pred_fallthru
      _
    %p138 = scmp.le.s32.totalorder 1, %s9
    %p139 = scmp.lt.s32.totalorder %s9, 3
    %p140 = pnand %p138, %p139
    %p141 = pneg %p140
    // Predicated region
    $region29: #{meta_learner_forward.13} parent=5 // pred_check
      _
    $region30: #{meta_learner_forward.13} parent=5 // pred_check_branch
      %143 = sbr.rel (%p140) target = $region32
    $region31: #{meta_learner_forward.13} parent=5 // pred_region
      %s144 = ssub.s32 %s9, 1
      %s145 = smul.u32 32, %s14
      %p146 = scmp.lt.s32.totalorder %s145, 63
      %s147 = scalar_select %p146, %s145, 63
      %s148 = smul.addr %s147, 2
      %s149 = smul.addr %s148, 4
      %s150 = scalar_lea.vmem %s0, %s149
      %p151 = pneg %p35
      %p152 = pneg %p32
      %p153 = pneg %p56
      %p154 = pneg %p53
      %p155 = pneg %p77
      %p156 = pneg %p74
      %p157 = pneg %p103
      %p158 = pneg %p100
      %s159 = smul.u32 32, %s14
      %p160 = scmp.lt.s32.totalorder %s159, 63
      %s161 = scalar_select %p160, %s159, 63
      %s162 = smul.addr %s161, 8
      %s163 = scalar_lea.vmem %s3, %s162
      %s164 = smul.u32 32, %s14
      %p165 = scmp.lt.s32.totalorder %s164, 63
      %s166 = scalar_select %p165, %s164, 63
      %s167 = smul.addr %s166, 2
      %s168 = smul.addr %s167, 4
      %s169 = scalar_lea.vmem %s0, %s168
      %s170 = smul.u32 32, %s14
      %s171 = smul.u32 32, %s14
      %p172 = scmp.lt.s32.totalorder %s171, 63
      %s173 = scalar_select %p172, %s171, 63
      %s174 = smul.addr %s173, 8
      %s175 = scalar_lea.vmem %s3, %s174
      %s176 = smul.u32 32, %s14
      %v178 = vld [vmem:[%s169] sm:$0xff]
      %v179 = vld [vmem:[%s169 + $0x8] sm:$0xff]
      %v180 = vld [vmem:[%s169 + $0x10] sm:$0xff]
      %v181 = vld [vmem:[%s169 + $0x18] sm:$0xff]
      %v182 = vld [vmem:[%s169 + $0x20] sm:$0xff]
      %v183 = vld [vmem:[%s169 + $0x28] sm:$0xff]
      %v184 = vld [vmem:[%s169 + $0x30] sm:$0xff]
      %v185 = vld [vmem:[%s169 + $0x38] sm:$0xff]
      %v186 = vld [vmem:[%s169 + $0x40] sm:$0xff]
      %v187 = vld [vmem:[%s169 + $0x48] sm:$0xff]
      %v188 = vld [vmem:[%s169 + $0x50] sm:$0xff]
      %v189 = vld [vmem:[%s169 + $0x58] sm:$0xff]
      %v190 = vld [vmem:[%s169 + $0x60] sm:$0xff]
      %v191 = vld [vmem:[%s169 + $0x68] sm:$0xff]
      %v192 = vld [vmem:[%s169 + $0x70] sm:$0xff]
      %v193 = vld [vmem:[%s169 + $0x78] sm:$0xff]
      %v194 = vld [vmem:[%s169 + $0x80] sm:$0xff]
      %v195 = vld [vmem:[%s169 + $0x88] sm:$0xff]
      %v196 = vld [vmem:[%s169 + $0x90] sm:$0xff]
      %v197 = vld [vmem:[%s169 + $0x98] sm:$0xff]
      %v198 = vld [vmem:[%s169 + $0xa0] sm:$0xff]
      %v199 = vld [vmem:[%s169 + $0xa8] sm:$0xff]
      %v200 = vld [vmem:[%s169 + $0xb0] sm:$0xff]
      %v201 = vld [vmem:[%s169 + $0xb8] sm:$0xff]
      %v202 = vld [vmem:[%s169 + $0xc0] sm:$0xff]
      %v203 = vld [vmem:[%s169 + $0xc8] sm:$0xff]
      %v204 = vld [vmem:[%s169 + $0xd0] sm:$0xff]
      %v205 = vld [vmem:[%s169 + $0xd8] sm:$0xff]
      %v206 = vld [vmem:[%s169 + $0xe0] sm:$0xff]
      %v207 = vld [vmem:[%s169 + $0xe8] sm:$0xff]
      %v208 = vld [vmem:[%s169 + $0xf0] sm:$0xff]
      %v209 = vld [vmem:[%s169 + $0xf8] sm:$0xff]
      %v210 = vld [vmem:[%s1] sm:$0xf]
      %v211 = vld [vmem:[%s1 + $0x4] sm:$0xf]
      %v212 = vld [vmem:[%s1 + $0x8] sm:$0xf]
      %v213 = vld [vmem:[%s1 + $0xc] sm:$0xf]
      %v214 = vld [vmem:[%s1 + $0x10] sm:$0xf]
      %v215 = vld [vmem:[%s1 + $0x14] sm:$0xf]
      %v216 = vld [vmem:[%s1 + $0x18] sm:$0xf]
      %v217 = vld [vmem:[%s1 + $0x1c] sm:$0xf]
      %v218 = vld [vmem:[%s1 + $0x20] sm:$0xf]
      %v219 = vld [vmem:[%s1 + $0x24] sm:$0xf]
      %v220 = vld [vmem:[%s1 + $0x28] sm:$0xf]
      %v221 = vld [vmem:[%s1 + $0x2c] sm:$0xf]
      %v222 = vld [vmem:[%s1 + $0x30] sm:$0xf]
      %v223 = vld [vmem:[%s1 + $0x34] sm:$0xf]
      %v224 = vld [vmem:[%s1 + $0x38] sm:$0xf]
      %v225 = vld [vmem:[%s1 + $0x3c] sm:$0xf]
      %v226 = vld [vmem:[%s1 + $0x40] sm:$0xf]
      %v227 = vld [vmem:[%s1 + $0x44] sm:$0xf]
      %v228 = vld [vmem:[%s2] sm:$0x1]
      %v230 = vlaneseq
      %v231 = vshrl.u32 %v230, 7
      %v232 = vsub.s32 0, %v231
      %v233 = vrot.slane %v228, %v232
      %v267 = vunpack.c.l.b16 %v178
      %v268 = vunpack.c.h.b16 %v178
      %v269 = vunpack.c.l.b16 %v179
      %v270 = vunpack.c.h.b16 %v179
      %v271 = vunpack.c.l.b16 %v180
      %v272 = vunpack.c.h.b16 %v180
      %v273 = vunpack.c.l.b16 %v181
      %v274 = vunpack.c.h.b16 %v181
      %v275 = vunpack.c.l.b16 %v182
      %v276 = vunpack.c.h.b16 %v182
      %v277 = vunpack.c.l.b16 %v183
      %v278 = vunpack.c.h.b16 %v183
      %v279 = vunpack.c.l.b16 %v184
      %v280 = vunpack.c.h.b16 %v184
      %v281 = vunpack.c.l.b16 %v185
      %v282 = vunpack.c.h.b16 %v185
      %v283 = vunpack.c.l.b16 %v186
      %v284 = vunpack.c.h.b16 %v186
      %v285 = vunpack.c.l.b16 %v187
      %v286 = vunpack.c.h.b16 %v187
      %v287 = vunpack.c.l.b16 %v188
      %v288 = vunpack.c.h.b16 %v188
      %v289 = vunpack.c.l.b16 %v189
      %v290 = vunpack.c.h.b16 %v189
      %v291 = vunpack.c.l.b16 %v190
      %v292 = vunpack.c.h.b16 %v190
      %v293 = vunpack.c.l.b16 %v191
      %v294 = vunpack.c.h.b16 %v191
      %v295 = vunpack.c.l.b16 %v192
      %v296 = vunpack.c.h.b16 %v192
      %v297 = vunpack.c.l.b16 %v193
      %v298 = vunpack.c.h.b16 %v193
      %v299 = vunpack.c.l.b16 %v194
      %v300 = vunpack.c.h.b16 %v194
      %v301 = vunpack.c.l.b16 %v195
      %v302 = vunpack.c.h.b16 %v195
      %v303 = vunpack.c.l.b16 %v196
      %v304 = vunpack.c.h.b16 %v196
      %v305 = vunpack.c.l.b16 %v197
      %v306 = vunpack.c.h.b16 %v197
      %v307 = vunpack.c.l.b16 %v198
      %v308 = vunpack.c.h.b16 %v198
      %v309 = vunpack.c.l.b16 %v199
      %v310 = vunpack.c.h.b16 %v199
      %v311 = vunpack.c.l.b16 %v200
      %v312 = vunpack.c.h.b16 %v200
      %v313 = vunpack.c.l.b16 %v201
      %v314 = vunpack.c.h.b16 %v201
      %v315 = vunpack.c.l.b16 %v202
      %v316 = vunpack.c.h.b16 %v202
      %v317 = vunpack.c.l.b16 %v203
      %v318 = vunpack.c.h.b16 %v203
      %v319 = vunpack.c.l.b16 %v204
      %v320 = vunpack.c.h.b16 %v204
      %v321 = vunpack.c.l.b16 %v205
      %v322 = vunpack.c.h.b16 %v205
      %v323 = vunpack.c.l.b16 %v206
      %v324 = vunpack.c.h.b16 %v206
      %v325 = vunpack.c.l.b16 %v207
      %v326 = vunpack.c.h.b16 %v207
      %v327 = vunpack.c.l.b16 %v208
      %v328 = vunpack.c.h.b16 %v208
      %v329 = vunpack.c.l.b16 %v209
      %v330 = vunpack.c.h.b16 %v209
      %v331 = vpack.c.b16 %v269, %v267
      %v332 = vpack.c.b16 %v270, %v268
      %v333 = vpack.c.b16 %v273, %v271
      %v334 = vpack.c.b16 %v274, %v272
      %v335 = vpack.c.b16 %v277, %v275
      %v336 = vpack.c.b16 %v278, %v276
      %v337 = vpack.c.b16 %v281, %v279
      %v338 = vpack.c.b16 %v282, %v280
      %v339 = vpack.c.b16 %v285, %v283
      %v340 = vpack.c.b16 %v286, %v284
      %v341 = vpack.c.b16 %v289, %v287
      %v342 = vpack.c.b16 %v290, %v288
      %v343 = vpack.c.b16 %v293, %v291
      %v344 = vpack.c.b16 %v294, %v292
      %v345 = vpack.c.b16 %v297, %v295
      %v346 = vpack.c.b16 %v298, %v296
      %v347 = vpack.c.b16 %v301, %v299
      %v348 = vpack.c.b16 %v302, %v300
      %v349 = vpack.c.b16 %v305, %v303
      %v350 = vpack.c.b16 %v306, %v304
      %v351 = vpack.c.b16 %v309, %v307
      %v352 = vpack.c.b16 %v310, %v308
      %v353 = vpack.c.b16 %v313, %v311
      %v354 = vpack.c.b16 %v314, %v312
      %v355 = vpack.c.b16 %v317, %v315
      %v356 = vpack.c.b16 %v318, %v316
      %v357 = vpack.c.b16 %v321, %v319
      %v358 = vpack.c.b16 %v322, %v320
      %v359 = vpack.c.b16 %v325, %v323
      %v360 = vpack.c.b16 %v326, %v324
      %v361 = vpack.c.b16 %v329, %v327
      %v362 = vpack.c.b16 %v330, %v328
      %v397 = vunpack.c.l.b16 %v210
      %v398 = vunpack.c.l.b16 %v211
      %v399 = vunpack.c.l.b16 %v212
      %v400 = vunpack.c.l.b16 %v213
      %v401 = vunpack.c.l.b16 %v214
      %v402 = vunpack.c.l.b16 %v215
      %v403 = vunpack.c.l.b16 %v216
      %v404 = vunpack.c.l.b16 %v217
      %v405 = vunpack.c.l.b16 %v218
      %v406 = vunpack.c.l.b16 %v219
      %v407 = vunpack.c.l.b16 %v220
      %v408 = vunpack.c.l.b16 %v221
      %v409 = vunpack.c.l.b16 %v222
      %v410 = vunpack.c.l.b16 %v223
      %v411 = vunpack.c.l.b16 %v224
      %v412 = vunpack.c.l.b16 %v225
      %v413 = vunpack.c.l.b16 %v226
      %v414 = vunpack.c.l.b16 %v227
      %v415 = vpack.c.b16 %v398, %v397
      %v416 = vpack.c.b16 %v400, %v399
      %v417 = vpack.c.b16 %v402, %v401
      %v418 = vpack.c.b16 %v404, %v403
      %v419 = vpack.c.b16 %v406, %v405
      %v420 = vpack.c.b16 %v408, %v407
      %v421 = vpack.c.b16 %v410, %v409
      %v422 = vpack.c.b16 %v412, %v411
      %v423 = vpack.c.b16 %v414, %v413
      %vm433 = vcmask 130048
      %v435 = vsel %vm433, %v332, 0
      %v438 = vsel %vm433, %v334, 0
      %v441 = vsel %vm433, %v336, 0
      %v444 = vsel %vm433, %v338, 0
      %v447 = vsel %vm433, %v340, 0
      %v450 = vsel %vm433, %v342, 0
      %v453 = vsel %vm433, %v344, 0
      %v456 = vsel %vm433, %v346, 0
      %v459 = vsel %vm433, %v348, 0
      %v462 = vsel %vm433, %v350, 0
      %v465 = vsel %vm433, %v352, 0
      %v468 = vsel %vm433, %v354, 0
      %v471 = vsel %vm433, %v356, 0
      %v474 = vsel %vm433, %v358, 0
      %v477 = vsel %vm433, %v360, 0
      %v480 = vsel %vm433, %v362, 0
      %482 = vmatprep.subr.bf16.mxu0 0
      %483 = vmatpush1.bf16.msra.mxu0 %v415
      %484 = vmatprep.subr.bf16.mxu0 0
      %485 = vmatpush1.bf16.msra.mxu0 %v416
      %486 = vmatprep.subr.bf16.mxu0 0
      %487 = vmatpush1.bf16.msra.mxu0 %v417
      %488 = vmatprep.subr.bf16.mxu0 0
      %489 = vmatpush1.bf16.msra.mxu0 %v418
      %490 = vmatprep.subr.bf16.mxu0 0
      %491 = vmatpush1.bf16.msra.mxu0 %v419
      %492 = vmatprep.subr.bf16.mxu0 0
      %493 = vmatpush1.bf16.msra.mxu0 %v420
      %494 = vmatprep.subr.bf16.mxu0 0
      %495 = vmatpush1.bf16.msra.mxu0 %v421
      %496 = vmatprep.subr.bf16.mxu0 0
      %497 = vmatpush1.bf16.msra.mxu0 %v422
      %498 = vmatprep.subr.bf16.mxu0 0
      %499 = vmatpush1.bf16.msra.mxu0 %v423
      %500 = vmatprep.subr.bf16.mxu0 0
      %501 = vmatpush1.bf16.msra.mxu0 0
      %502 = vmatprep.subr.bf16.mxu0 0
      %503 = vmatpush1.bf16.msra.mxu0 0
      %504 = vmatprep.subr.bf16.mxu0 0
      %505 = vmatpush1.bf16.msra.mxu0 0
      %506 = vmatprep.subr.bf16.mxu0 0
      %507 = vmatpush1.bf16.msra.mxu0 0
      %508 = vmatprep.subr.bf16.mxu0 0
      %509 = vmatpush1.bf16.msra.mxu0 0
      %510 = vmatprep.subr.bf16.mxu0 0
      %511 = vmatpush1.bf16.msra.mxu0 0
      %512 = vmatprep.subr.bf16.mxu0 0
      %513 = vmatpush1.bf16.msra.mxu0 0
      %514 = vmatprep.mubr.bf16.mxu0 %v435
      %515 = vmatmul.mubr.bf16.gmra.mrb[0].mxu0 %v331
      %v516 = vpop.f32.mrb[0].mxu0
      %v517 = vadd.f32 %v233, %v516
      %v518 = vpop.f32.mrb[0].mxu0
      %v519 = vpop.f32.mrb[0].mxu0
      %v520 = vadd.f32 %v233, %v519
      %v521 = vpop.f32.mrb[0].mxu0
      %522 = vmatprep.mubr.bf16.mxu0 %v438
      %523 = vmatmul.mubr.bf16.gmra.mrb[0].mxu0 %v333
      %v524 = vpop.f32.mrb[0].mxu0
      %v525 = vadd.f32 %v233, %v524
      %v526 = vpop.f32.mrb[0].mxu0
      %v527 = vpop.f32.mrb[0].mxu0
      %v528 = vadd.f32 %v233, %v527
      %v529 = vpop.f32.mrb[0].mxu0
      %530 = vmatprep.mubr.bf16.mxu0 %v441
      %531 = vmatmul.mubr.bf16.gmra.mrb[0].mxu0 %v335
      %v532 = vpop.f32.mrb[0].mxu0
      %v533 = vadd.f32 %v233, %v532
      %v534 = vpop.f32.mrb[0].mxu0
      %v535 = vpop.f32.mrb[0].mxu0
      %v536 = vadd.f32 %v233, %v535
      %v537 = vpop.f32.mrb[0].mxu0
      %538 = vmatprep.mubr.bf16.mxu0 %v444
      %539 = vmatmul.mubr.bf16.gmra.mrb[0].mxu0 %v337
      %v540 = vpop.f32.mrb[0].mxu0
      %v541 = vadd.f32 %v233, %v540
      %v542 = vpop.f32.mrb[0].mxu0
      %v543 = vpop.f32.mrb[0].mxu0
      %v544 = vadd.f32 %v233, %v543
      %v545 = vpop.f32.mrb[0].mxu0
      %546 = vmatprep.mubr.bf16.mxu0 %v447
      %547 = vmatmul.mubr.bf16.gmra.mrb[0].mxu0 %v339
      %v548 = vpop.f32.mrb[0].mxu0
      %v549 = vadd.f32 %v233, %v548
      %v550 = vpop.f32.mrb[0].mxu0
      %v551 = vpop.f32.mrb[0].mxu0
      %v552 = vadd.f32 %v233, %v551
      %v553 = vpop.f32.mrb[0].mxu0
      %554 = vmatprep.mubr.bf16.mxu0 %v450
      %555 = vmatmul.mubr.bf16.gmra.mrb[0].mxu0 %v341
      %v556 = vpop.f32.mrb[0].mxu0
      %v557 = vadd.f32 %v233, %v556
      %v558 = vpop.f32.mrb[0].mxu0
      %v559 = vpop.f32.mrb[0].mxu0
      %v560 = vadd.f32 %v233, %v559
      %v561 = vpop.f32.mrb[0].mxu0
      %562 = vmatprep.mubr.bf16.mxu0 %v453
      %563 = vmatmul.mubr.bf16.gmra.mrb[0].mxu0 %v343
      %v564 = vpop.f32.mrb[0].mxu0
      %v565 = vadd.f32 %v233, %v564
      %v566 = vpop.f32.mrb[0].mxu0
      %v567 = vpop.f32.mrb[0].mxu0
      %v568 = vadd.f32 %v233, %v567
      %v569 = vpop.f32.mrb[0].mxu0
      %570 = vmatprep.mubr.bf16.mxu0 %v456
      %571 = vmatmul.mubr.bf16.gmra.mrb[0].mxu0 %v345
      %v572 = vpop.f32.mrb[0].mxu0
      %v573 = vadd.f32 %v233, %v572
      %v574 = vpop.f32.mrb[0].mxu0
      %v575 = vpop.f32.mrb[0].mxu0
      %v576 = vadd.f32 %v233, %v575
      %v577 = vpop.f32.mrb[0].mxu0
      %578 = vmatprep.mubr.bf16.mxu0 %v459
      %579 = vmatmul.mubr.bf16.gmra.mrb[0].mxu0 %v347
      %v580 = vpop.f32.mrb[0].mxu0
      %v581 = vadd.f32 %v233, %v580
      %v582 = vpop.f32.mrb[0].mxu0
      %v583 = vpop.f32.mrb[0].mxu0
      %v584 = vadd.f32 %v233, %v583
      %v585 = vpop.f32.mrb[0].mxu0
      %586 = vmatprep.mubr.bf16.mxu0 %v462
      %587 = vmatmul.mubr.bf16.gmra.mrb[0].mxu0 %v349
      %v588 = vpop.f32.mrb[0].mxu0
      %v589 = vadd.f32 %v233, %v588
      %v590 = vpop.f32.mrb[0].mxu0
      %v591 = vpop.f32.mrb[0].mxu0
      %v592 = vadd.f32 %v233, %v591
      %v593 = vpop.f32.mrb[0].mxu0
      %594 = vmatprep.mubr.bf16.mxu0 %v465
      %595 = vmatmul.mubr.bf16.gmra.mrb[0].mxu0 %v351
      %v596 = vpop.f32.mrb[0].mxu0
      %v597 = vadd.f32 %v233, %v596
      %v598 = vpop.f32.mrb[0].mxu0
      %v599 = vpop.f32.mrb[0].mxu0
      %v600 = vadd.f32 %v233, %v599
      %v601 = vpop.f32.mrb[0].mxu0
      %602 = vmatprep.mubr.bf16.mxu0 %v468
      %603 = vmatmul.mubr.bf16.gmra.mrb[0].mxu0 %v353
      %v604 = vpop.f32.mrb[0].mxu0
      %v605 = vadd.f32 %v233, %v604
      %v606 = vpop.f32.mrb[0].mxu0
      %v607 = vpop.f32.mrb[0].mxu0
      %v608 = vadd.f32 %v233, %v607
      %v609 = vpop.f32.mrb[0].mxu0
      %610 = vmatprep.mubr.bf16.mxu0 %v471
      %611 = vmatmul.mubr.bf16.gmra.mrb[0].mxu0 %v355
      %v612 = vpop.f32.mrb[0].mxu0
      %v613 = vadd.f32 %v233, %v612
      %v614 = vpop.f32.mrb[0].mxu0
      %v615 = vpop.f32.mrb[0].mxu0
      %v616 = vadd.f32 %v233, %v615
      %v617 = vpop.f32.mrb[0].mxu0
      %618 = vmatprep.mubr.bf16.mxu0 %v474
      %619 = vmatmul.mubr.bf16.gmra.mrb[0].mxu0 %v357
      %v620 = vpop.f32.mrb[0].mxu0
      %v621 = vadd.f32 %v233, %v620
      %v622 = vpop.f32.mrb[0].mxu0
      %v623 = vpop.f32.mrb[0].mxu0
      %v624 = vadd.f32 %v233, %v623
      %v625 = vpop.f32.mrb[0].mxu0
      %626 = vmatprep.mubr.bf16.mxu0 %v477
      %627 = vmatmul.mubr.bf16.gmra.mrb[0].mxu0 %v359
      %v628 = vpop.f32.mrb[0].mxu0
      %v629 = vadd.f32 %v233, %v628
      %v630 = vpop.f32.mrb[0].mxu0
      %v631 = vpop.f32.mrb[0].mxu0
      %v632 = vadd.f32 %v233, %v631
      %v633 = vpop.f32.mrb[0].mxu0
      %634 = vmatprep.mubr.bf16.mxu0 %v480
      %635 = vmatmul.mubr.bf16.gmra.mrb[0].mxu0 %v361
      %v636 = vpop.f32.mrb[0].mxu0
      %v637 = vadd.f32 %v233, %v636
      %v638 = vpop.f32.mrb[0].mxu0
      %v639 = vpop.f32.mrb[0].mxu0
      %v640 = vadd.f32 %v233, %v639
      %v641 = vpop.f32.mrb[0].mxu0
      %642 = vdwg.mxu0
      %v643 = vmax.f32 %v517, 0.0
      %v644 = vmax.f32 %v520, 0.0
      %v645 = vmax.f32 %v525, 0.0
      %v646 = vmax.f32 %v528, 0.0
      %v647 = vmax.f32 %v533, 0.0
      %v648 = vmax.f32 %v536, 0.0
      %v649 = vmax.f32 %v541, 0.0
      %v650 = vmax.f32 %v544, 0.0
      %v651 = vmax.f32 %v549, 0.0
      %v652 = vmax.f32 %v552, 0.0
      %v653 = vmax.f32 %v557, 0.0
      %v654 = vmax.f32 %v560, 0.0
      %v655 = vmax.f32 %v565, 0.0
      %v656 = vmax.f32 %v568, 0.0
      %v657 = vmax.f32 %v573, 0.0
      %v658 = vmax.f32 %v576, 0.0
      %v659 = vmax.f32 %v581, 0.0
      %v660 = vmax.f32 %v584, 0.0
      %v661 = vmax.f32 %v589, 0.0
      %v662 = vmax.f32 %v592, 0.0
      %v663 = vmax.f32 %v597, 0.0
      %v664 = vmax.f32 %v600, 0.0
      %v665 = vmax.f32 %v605, 0.0
      %v666 = vmax.f32 %v608, 0.0
      %v667 = vmax.f32 %v613, 0.0
      %v668 = vmax.f32 %v616, 0.0
      %v669 = vmax.f32 %v621, 0.0
      %v670 = vmax.f32 %v624, 0.0
      %v671 = vmax.f32 %v629, 0.0
      %v672 = vmax.f32 %v632, 0.0
      %v673 = vmax.f32 %v637, 0.0
      %v674 = vmax.f32 %v640, 0.0
      %675 = vst.msk [vmem:[%s175] sm:$0xff] %vm433, %v643
      %676 = vst.msk [vmem:[%s175 + $0x8] sm:$0xff] %vm433, %v644
      %677 = vst.msk [vmem:[%s175 + $0x10] sm:$0xff] %vm433, %v645
      %678 = vst.msk [vmem:[%s175 + $0x18] sm:$0xff] %vm433, %v646
      %679 = vst.msk [vmem:[%s175 + $0x20] sm:$0xff] %vm433, %v647
      %680 = vst.msk [vmem:[%s175 + $0x28] sm:$0xff] %vm433, %v648
      %681 = vst.msk [vmem:[%s175 + $0x30] sm:$0xff] %vm433, %v649
      %682 = vst.msk [vmem:[%s175 + $0x38] sm:$0xff] %vm433, %v650
      %683 = vst.msk [vmem:[%s175 + $0x40] sm:$0xff] %vm433, %v651
      %684 = vst.msk [vmem:[%s175 + $0x48] sm:$0xff] %vm433, %v652
      %685 = vst.msk [vmem:[%s175 + $0x50] sm:$0xff] %vm433, %v653
      %686 = vst.msk [vmem:[%s175 + $0x58] sm:$0xff] %vm433, %v654
      %687 = vst.msk [vmem:[%s175 + $0x60] sm:$0xff] %vm433, %v655
      %688 = vst.msk [vmem:[%s175 + $0x68] sm:$0xff] %vm433, %v656
      %689 = vst.msk [vmem:[%s175 + $0x70] sm:$0xff] %vm433, %v657
      %690 = vst.msk [vmem:[%s175 + $0x78] sm:$0xff] %vm433, %v658
      %691 = vst.msk [vmem:[%s175 + $0x80] sm:$0xff] %vm433, %v659
      %692 = vst.msk [vmem:[%s175 + $0x88] sm:$0xff] %vm433, %v660
      %693 = vst.msk [vmem:[%s175 + $0x90] sm:$0xff] %vm433, %v661
      %694 = vst.msk [vmem:[%s175 + $0x98] sm:$0xff] %vm433, %v662
      %695 = vst.msk [vmem:[%s175 + $0xa0] sm:$0xff] %vm433, %v663
      %696 = vst.msk [vmem:[%s175 + $0xa8] sm:$0xff] %vm433, %v664
      %697 = vst.msk [vmem:[%s175 + $0xb0] sm:$0xff] %vm433, %v665
      %698 = vst.msk [vmem:[%s175 + $0xb8] sm:$0xff] %vm433, %v666
      %699 = vst.msk [vmem:[%s175 + $0xc0] sm:$0xff] %vm433, %v667
      %700 = vst.msk [vmem:[%s175 + $0xc8] sm:$0xff] %vm433, %v668
      %701 = vst.msk [vmem:[%s175 + $0xd0] sm:$0xff] %vm433, %v669
      %702 = vst.msk [vmem:[%s175 + $0xd8] sm:$0xff] %vm433, %v670
      %703 = vst.msk [vmem:[%s175 + $0xe0] sm:$0xff] %vm433, %v671
      %704 = vst.msk [vmem:[%s175 + $0xe8] sm:$0xff] %vm433, %v672
      %705 = vst.msk [vmem:[%s175 + $0xf0] sm:$0xff] %vm433, %v673
      %706 = vst.msk [vmem:[%s175 + $0xf8] sm:$0xff] %vm433, %v674
      %s707 = smul.u32 32, %s14
      %p708 = scmp.lt.s32.totalorder %s707, 63
      %s709 = scalar_select %p708, %s707, 63
      %s710 = smul.addr %s709, 8
      %s711 = scalar_lea.vmem %s3, %s710
      // Predicated region
      $region33: #{meta_learner_forward.13} parent=31 // pred_check
        %p712 = pneg %p100
      $region34: #{meta_learner_forward.13} parent=31 // pred_check_branch
        %714 = sbr.rel (%p712) target = $region36
      $region35: #{meta_learner_forward.13} parent=31 // pred_region
        %s715 = smul.u32 32, %s14
      $region36: #{meta_learner_forward.13} parent=31 // pred_fallthru
        _
    $region32: #{meta_learner_forward.13} parent=5 // pred_fallthru
      _
    %p716 = scmp.le.s32.totalorder 2, %s9
    // Predicated region
    $region37: #{meta_learner_forward.13} parent=5 // pred_check
      %p717 = pneg %p716
    $region38: #{meta_learner_forward.13} parent=5 // pred_check_branch
      %719 = sbr.rel (%p717) target = $region40
    $region39: #{meta_learner_forward.13} parent=5 // pred_region
      %s720 = ssub.s32 %s9, 2
      // Predicated region
      $region41: #{meta_learner_forward.13} parent=39 // pred_check
        %p721 = pneg %p106
      $region42: #{meta_learner_forward.13} parent=39 // pred_check_branch
        %723 = sbr.rel (%p721) target = $region44
      $region43: #{meta_learner_forward.13} parent=39 // pred_region
        %s724 = smul.u32 32, %s15
        %p725 = scmp.lt.s32.totalorder %s724, 63
        %s726 = scalar_select %p725, %s724, 63
        %s727 = smul.addr %s726, 8
        %s728 = scalar_lea.vmem %s3, %s727
      $region44: #{meta_learner_forward.13} parent=39 // pred_fallthru
        _
    $region40: #{meta_learner_forward.13} parent=5 // pred_fallthru
      _
  $region6: #{meta_learner_forward.13} parent=0 // loop_footer
    %s13 = sadd.s32 1, %s9
  $region7: #{meta_learner_forward.13} parent=0 // loop_footer_branch
    %8 = sbr.rel target = $region3
  $region8: #{meta_learner_forward.13} parent=0 // loop_exit
    _

// kernel: meta_learner_forward.14
$region0: #{meta_learner_forward.14}
  #allocation0 [shape = 'u32[]', space=smem, size = 0x4, offset = 0x4, fixed_abs, tag = 'smem constant byte address 0x4 - core index']
  #allocation1 [shape = 'u32[144,128]{1,0:T(1,128)}', space=vmem, size = 0x12000, scoped, tag = 'internal scratch']
  %s0 = inlined_call_operand.vmem [shape: bf16[8,256], index: 0, kind: input, shape index: {}]
  %s1 = inlined_call_operand.vmem [shape: bf16[256,4], index: 1, kind: input, shape index: {}]
  %s2 = inlined_call_operand.vmem [shape: f32[1,4], index: 2, kind: input, shape index: {}]
  %s3 = inlined_call_operand.vmem [shape: f32[8,4], index: 3, kind: output, shape index: {}]
  %s4 = sld [smem:[#allocation0]]
  $region22: #{meta_learner_forward.14} parent=0
    _
  %s6 = ssub.s32 1, %s4
  %s7 = scalar_select 0, %s6, %s4
  // Predicated region
  $region2: #{meta_learner_forward.14} parent=0 // pred_check
    _
  $region3: #{meta_learner_forward.14} parent=0 // pred_check_branch
    %9 = sbr.rel (0) target = $region5
  $region4: #{meta_learner_forward.14} parent=0 // pred_region
    _
  $region5: #{meta_learner_forward.14} parent=0 // pred_fallthru
    _
  // Predicated region
  $region6: #{meta_learner_forward.14} parent=0 // pred_check
    _
  $region7: #{meta_learner_forward.14} parent=0 // pred_check_branch
    %11 = sbr.rel (0) target = $region9
  $region8: #{meta_learner_forward.14} parent=0 // pred_region
    _
  $region9: #{meta_learner_forward.14} parent=0 // pred_fallthru
    _
  // Predicated region
  $region10: #{meta_learner_forward.14} parent=0 // pred_check
    _
  $region11: #{meta_learner_forward.14} parent=0 // pred_check_branch
    %13 = sbr.rel (0) target = $region13
  $region12: #{meta_learner_forward.14} parent=0 // pred_region
    _
  $region13: #{meta_learner_forward.14} parent=0 // pred_fallthru
    _
  %v15 = vld [vmem:[%s0] sm:$0xff]
  %v16 = vld [vmem:[%s1] sm:$0xf]
  %v17 = vld [vmem:[%s1 + $0x4] sm:$0xf]
  %v18 = vld [vmem:[%s1 + $0x8] sm:$0xf]
  %v19 = vld [vmem:[%s1 + $0xc] sm:$0xf]
  %v20 = vld [vmem:[%s1 + $0x10] sm:$0xf]
  %v21 = vld [vmem:[%s1 + $0x14] sm:$0xf]
  %v22 = vld [vmem:[%s1 + $0x18] sm:$0xf]
  %v23 = vld [vmem:[%s1 + $0x1c] sm:$0xf]
  %v24 = vld [vmem:[%s1 + $0x20] sm:$0xf]
  %v25 = vld [vmem:[%s1 + $0x24] sm:$0xf]
  %v26 = vld [vmem:[%s1 + $0x28] sm:$0xf]
  %v27 = vld [vmem:[%s1 + $0x2c] sm:$0xf]
  %v28 = vld [vmem:[%s1 + $0x30] sm:$0xf]
  %v29 = vld [vmem:[%s1 + $0x34] sm:$0xf]
  %v30 = vld [vmem:[%s1 + $0x38] sm:$0xf]
  %v31 = vld [vmem:[%s1 + $0x3c] sm:$0xf]
  %v32 = vld [vmem:[%s1 + $0x40] sm:$0xf]
  %v33 = vld [vmem:[%s1 + $0x44] sm:$0xf]
  %v34 = vld [vmem:[%s1 + $0x48] sm:$0xf]
  %v35 = vld [vmem:[%s1 + $0x4c] sm:$0xf]
  %v36 = vld [vmem:[%s1 + $0x50] sm:$0xf]
  %v37 = vld [vmem:[%s1 + $0x54] sm:$0xf]
  %v38 = vld [vmem:[%s1 + $0x58] sm:$0xf]
  %v39 = vld [vmem:[%s1 + $0x5c] sm:$0xf]
  %v40 = vld [vmem:[%s1 + $0x60] sm:$0xf]
  %v41 = vld [vmem:[%s1 + $0x64] sm:$0xf]
  %v42 = vld [vmem:[%s1 + $0x68] sm:$0xf]
  %v43 = vld [vmem:[%s1 + $0x6c] sm:$0xf]
  %v44 = vld [vmem:[%s1 + $0x70] sm:$0xf]
  %v45 = vld [vmem:[%s1 + $0x74] sm:$0xf]
  %v46 = vld [vmem:[%s1 + $0x78] sm:$0xf]
  %v47 = vld [vmem:[%s1 + $0x7c] sm:$0xf]
  %v48 = vld [vmem:[%s2] sm:$0x1]
  %v50 = vlaneseq
  %v51 = vshrl.u32 %v50, 7
  %v52 = vsub.s32 0, %v51
  %v53 = vrot.slane %v48, %v52
  %v56 = vunpack.c.l.b16 %v15
  %v57 = vunpack.c.h.b16 %v15
  %v58 = vpack.c.b16 %v56, %v56
  %v59 = vpack.c.b16 %v57, %v57
  %v94 = vunpack.c.l.b16 %v16
  %v95 = vunpack.c.l.b16 %v17
  %v96 = vunpack.c.l.b16 %v18
  %v97 = vunpack.c.l.b16 %v19
  %v98 = vunpack.c.l.b16 %v20
  %v99 = vunpack.c.l.b16 %v21
  %v100 = vunpack.c.l.b16 %v22
  %v101 = vunpack.c.l.b16 %v23
  %v102 = vunpack.c.l.b16 %v24
  %v103 = vunpack.c.l.b16 %v25
  %v104 = vunpack.c.l.b16 %v26
  %v105 = vunpack.c.l.b16 %v27
  %v106 = vunpack.c.l.b16 %v28
  %v107 = vunpack.c.l.b16 %v29
  %v108 = vunpack.c.l.b16 %v30
  %v109 = vunpack.c.l.b16 %v31
  %v110 = vunpack.c.l.b16 %v32
  %v111 = vunpack.c.l.b16 %v33
  %v112 = vunpack.c.l.b16 %v34
  %v113 = vunpack.c.l.b16 %v35
  %v114 = vunpack.c.l.b16 %v36
  %v115 = vunpack.c.l.b16 %v37
  %v116 = vunpack.c.l.b16 %v38
  %v117 = vunpack.c.l.b16 %v39
  %v118 = vunpack.c.l.b16 %v40
  %v119 = vunpack.c.l.b16 %v41
  %v120 = vunpack.c.l.b16 %v42
  %v121 = vunpack.c.l.b16 %v43
  %v122 = vunpack.c.l.b16 %v44
  %v123 = vunpack.c.l.b16 %v45
  %v124 = vunpack.c.l.b16 %v46
  %v125 = vunpack.c.l.b16 %v47
  %v126 = vpack.c.b16 %v95, %v94
  %v127 = vpack.c.b16 %v97, %v96
  %v128 = vpack.c.b16 %v99, %v98
  %v129 = vpack.c.b16 %v101, %v100
  %v130 = vpack.c.b16 %v103, %v102
  %v131 = vpack.c.b16 %v105, %v104
  %v132 = vpack.c.b16 %v107, %v106
  %v133 = vpack.c.b16 %v109, %v108
  %v134 = vpack.c.b16 %v111, %v110
  %v135 = vpack.c.b16 %v113, %v112
  %v136 = vpack.c.b16 %v115, %v114
  %v137 = vpack.c.b16 %v117, %v116
  %v138 = vpack.c.b16 %v119, %v118
  %v139 = vpack.c.b16 %v121, %v120
  %v140 = vpack.c.b16 %v123, %v122
  %v141 = vpack.c.b16 %v125, %v124
  %158 = vmatprep.subr.bf16.mxu0 0
  %159 = vmatpush1.bf16.msra.mxu0 %v126
  %160 = vmatprep.subr.bf16.mxu0 0
  %161 = vmatpush1.bf16.msra.mxu0 %v127
  %162 = vmatprep.subr.bf16.mxu0 0
  %163 = vmatpush1.bf16.msra.mxu0 %v128
  %164 = vmatprep.subr.bf16.mxu0 0
  %165 = vmatpush1.bf16.msra.mxu0 %v129
  %166 = vmatprep.subr.bf16.mxu0 0
  %167 = vmatpush1.bf16.msra.mxu0 %v130
  %168 = vmatprep.subr.bf16.mxu0 0
  %169 = vmatpush1.bf16.msra.mxu0 %v131
  %170 = vmatprep.subr.bf16.mxu0 0
  %171 = vmatpush1.bf16.msra.mxu0 %v132
  %172 = vmatprep.subr.bf16.mxu0 0
  %173 = vmatpush1.bf16.msra.mxu0 %v133
  %174 = vmatprep.subr.bf16.mxu0 0
  %175 = vmatpush1.bf16.msra.mxu0 %v134
  %176 = vmatprep.subr.bf16.mxu0 0
  %177 = vmatpush1.bf16.msra.mxu0 %v135
  %178 = vmatprep.subr.bf16.mxu0 0
  %179 = vmatpush1.bf16.msra.mxu0 %v136
  %180 = vmatprep.subr.bf16.mxu0 0
  %181 = vmatpush1.bf16.msra.mxu0 %v137
  %182 = vmatprep.subr.bf16.mxu0 0
  %183 = vmatpush1.bf16.msra.mxu0 %v138
  %184 = vmatprep.subr.bf16.mxu0 0
  %185 = vmatpush1.bf16.msra.mxu0 %v139
  %186 = vmatprep.subr.bf16.mxu0 0
  %187 = vmatpush1.bf16.msra.mxu0 %v140
  %188 = vmatprep.subr.bf16.mxu0 0
  %189 = vmatpush1.bf16.msra.mxu0 %v141
  %190 = vmatprep.mubr.bf16.mxu0 %v59
  %191 = vmatmul.mubr.bf16.gmra.mrb[0].mxu0 %v58
  %v192 = vpop.f32.mrb[0].mxu0
  %v193 = vadd.f32 %v53, %v192
  %v194 = vpop.f32.mrb[0].mxu0
  %v195 = vpop.f32.mrb[0].mxu0
  %v196 = vpop.f32.mrb[0].mxu0
  %197 = vdwg.mxu0
  %vm198 = vcmask 31744
  %199 = vst.msk [vmem:[%s3] sm:$0xff] %vm198, %v193
  // Predicated region
  $region14: #{meta_learner_forward.14} parent=0 // pred_check
    _
  $region15: #{meta_learner_forward.14} parent=0 // pred_check_branch
    %201 = sbr.rel (0) target = $region17
  $region16: #{meta_learner_forward.14} parent=0 // pred_region
    _
  $region17: #{meta_learner_forward.14} parent=0 // pred_fallthru
    _
  // Predicated region
  $region18: #{meta_learner_forward.14} parent=0 // pred_check
    _
  $region19: #{meta_learner_forward.14} parent=0 // pred_check_branch
    %203 = sbr.rel (0) target = $region21
  $region20: #{meta_learner_forward.14} parent=0 // pred_region
    _
  $region21: #{meta_learner_forward.14} parent=0 // pred_fallthru
    _

// kernel: sub.91
$region0: #{sub.91}
  #allocation0 [shape = 's32[1]{0}', space=sflag, size = 0x4, scoped, tag = 'scoped memory for sub.91']
  %s0 = inlined_call_operand.vmem [shape: f32[256,4], index: 0, kind: input, shape index: {}]
  %s1 = inlined_call_operand.vmem [shape: f32[256,4], index: 1, kind: input, shape index: {}]
  %s2 = inlined_call_operand.vmem [shape: bf16[256,4], index: 2, kind: output, shape index: {}]
  %v3 = vld [vmem:[%s0] sm:$0xf]
  %v4 = vld [vmem:[%s1] sm:$0xf]
  %5 = xla_tuple %v3, %v4
  %6 = xla_tuple %5
  %v7 = vsub.f32 %v3, %v4
  %8 = xla_tuple %v7
  %v9 = vpack.c.bf16 0.0, %v7
  %10 = vst [vmem:[%s2] sm:$0x3] %v9
  %s11 = scalar_lea.vmem %s0, 4
  %v12 = vld [vmem:[%s11] sm:$0xf]
  %s13 = scalar_lea.vmem %s1, 4
  %v14 = vld [vmem:[%s13] sm:$0xf]
  %15 = xla_tuple %v12, %v14
  %16 = xla_tuple %15
  %v17 = vsub.f32 %v12, %v14
  %18 = xla_tuple %v17
  %s19 = scalar_lea.vmem %s2, 2
  %v20 = vpack.c.bf16 0.0, %v17
  %21 = vst [vmem:[%s19] sm:$0x3] %v20

</llo_original>
